<compile_context>
chip_gen: v7x
topology: tpu7x:2x2x1
jax: 0.10.0
libtpu: 0.0.40
codegen_flags: <defaults>
</compile_context>

<pallas_src>
import jax
import jax.numpy as jnp
from jax.experimental import pallas as pl
from jax.experimental.pallas import tpu as pltpu

_LANE = 128
_N_NODE = 1024


def _round_up(x, m):
    return (x + m - 1) // m * m


def _cdiv(a, b):
    return (a + b - 1) // b


def pareto_set_forward(pref, kparams, n_dim, *, tile_b=512):
    """pref: (B, n_obj) float32.  kparams from prepare_kernel_params.
    Returns (B, n_dim)."""
    w1, b1, w2, b2, w3p, b3p = kparams
    B, n_obj = pref.shape
    n_out_pad = w3p.shape[1]

    # Adaptive batch tile: cap at tile_b (512 keeps VMEM comfortable on v7x's
    # per-TC budget), but balance tiles so e.g. B=260 doesn't pad out to 512.
    num_tiles = max(1, _cdiv(B, tile_b))
    TB = _round_up(_cdiv(B, num_tiles), 8)
    B_pad = _round_up(B, TB)
    if B_pad != B:
        pref = jnp.pad(pref, ((0, B_pad - B), (0, 0)))
    grid = (B_pad // TB,)

    # Constant block index + single buffer => each weight is loaded from HBM
    # once, stays VMEM-resident across all batch tiles, no dead second buffer.
    def resident(arr):
        return pl.BlockSpec(arr.shape, lambda i: (0, 0),
                            pipeline_mode=pl.Buffered(1))

    def kernel(pref_ref, w1_ref, b1_ref, w2_ref, b2_ref, w3_ref, b3_ref, out_ref):
        n_node = w1_ref.shape[1]

        # fc1 + relu on the VPU: K = n_obj is tiny, an MXU dot would be >95%
        # contraction padding.  Input and fc1 weights stay f32.
        x = pref_ref[...]                                        # (TB, n_obj) f32
        h = jnp.broadcast_to(b1_ref[...], (TB, n_node))
        for k in range(n_obj):                                   # static, tiny
            h = h + x[:, k:k + 1] * w1_ref[k:k + 1, :]
        h = jnp.maximum(h, 0.0).astype(jnp.bfloat16)

        # fc2 + relu (dominant matmul; bf16 weights, f32 accumulation on MXU)
        h = jnp.dot(h, w2_ref[...], preferred_element_type=jnp.float32) + b2_ref[...]
        h = jnp.maximum(h, 0.0).astype(jnp.bfloat16)

        # fc3 (lane-padded to 128 output columns) + sigmoid(z / 1)
        z = jnp.dot(h, w3_ref[...], preferred_element_type=jnp.float32) + b3_ref[...]
        # sigmoid via EUP exp + EUP approx reciprocal (keeps epilogue off VALU)
        sig = pl.reciprocal(1.0 + jnp.exp(-z), approx=True)
        out_ref[...] = sig.astype(out_ref.dtype)

    out_bf16 = pl.pallas_call(
        kernel,
        out_shape=jax.ShapeDtypeStruct((B_pad, n_out_pad), jnp.bfloat16),
        grid=grid,
        in_specs=[
            pl.BlockSpec((TB, n_obj), lambda i: (i, 0)),
            resident(w1), resident(b1),
            resident(w2), resident(b2),
            resident(w3p), resident(b3p),
        ],
        out_specs=pl.BlockSpec((TB, n_out_pad), lambda i: (i, 0)),
        compiler_params=pltpu.CompilerParams(
            dimension_semantics=("parallel",),
        ),
    )(pref, w1, b1, w2, b2, w3p, b3p)

    out = out_bf16[:B, :n_dim].astype(jnp.float32)
    # TODO(synk): true float64 parity with the PyTorch module requires
    # jax_enable_x64; without it this cast is a no-op and the result stays f32.
    return out.astype(jnp.float64)


def init_params(key, n_dim, n_obj, n_node=_N_NODE):
    """Deterministic init mimicking nn.Linear (U(-1/sqrt(fan_in), 1/sqrt(fan_in)))."""
    ks = jax.random.split(key, 6)

    def linear(kw, kb, fan_in, fan_out):
        bound = 1.0 / jnp.sqrt(jnp.float32(fan_in))
        w = jax.random.uniform(kw, (fan_in, fan_out), jnp.float32, -bound, bound)
        b = jax.random.uniform(kb, (1, fan_out), jnp.float32, -bound, bound)
        return w, b

    w1, b1 = linear(ks[0], ks[1], n_obj, n_node)
    w2, b2 = linear(ks[2], ks[3], n_node, n_node)
    w3, b3 = linear(ks[4], ks[5], n_node, n_dim)
    return (w1, b1, w2, b2, w3, b3)


def prepare_kernel_params(params):
    """fc1 stays f32 (tiny, computed on the VPU); fc2/fc3 weights go bf16 to
    halve the dominant HBM weight stream; fc3 is zero-padded to a lane-dense
    128-column output."""
    w1, b1, w2, b2, w3, b3 = params
    n_dim = w3.shape[1]
    n_pad = _round_up(max(n_dim, 1), _LANE)
    w3p = jnp.zeros((w3.shape[0], n_pad), jnp.float32).at[:, :n_dim].set(w3)
    b3p = jnp.zeros((1, n_pad), jnp.float32).at[:, :n_dim].set(b3)
    return (
        w1, b1,
        w2.astype(jnp.bfloat16), b2,
        w3p.astype(jnp.bfloat16), b3p,
    )


if __name__ == "__main__":
    n_obj = 3    # number of objectives (input features)
    n_dim = 8    # decision-variable dimension (output features)
    batch = 8

    key = jax.random.PRNGKey(0)
    k_param, k_pref = jax.random.split(key)

    params = init_params(k_param, n_dim=n_dim, n_obj=n_obj)
    kparams = prepare_kernel_params(params)

    # preference vectors on the simplex, as the model normally consumes
    raw = jax.random.uniform(k_pref, (batch, n_obj), jnp.float32)
    pref = raw / jnp.sum(raw, axis=1, keepdims=True)

    out = pareto_set_forward(pref, kparams, n_dim)
    out = jax.block_until_ready(out)

    # sanity: shape and range of sigmoid output
    assert out.shape == (batch, n_dim)
    assert bool(jnp.all((out > 0.0) & (out < 1.0)))

    # End-to-end correctness vs a pure-JAX f32 reference built from the
    # ORIGINAL (un-quantized) parameters: validates the bf16 weights, bf16
    # output and approx-reciprocal sigmoid against the PyTorch-equivalent math.
    w1, b1, w2, b2, w3, b3 = params
    h = jnp.maximum(pref @ w1 + b1, 0.0)
    h = jnp.maximum(h @ w2 + b2, 0.0)
    ref = jax.nn.sigmoid(h @ w3 + b3)
    err = float(jnp.max(jnp.abs(out.astype(jnp.float32) - ref)))
    assert bool(jnp.allclose(out.astype(jnp.float32), ref, atol=2e-2, rtol=0.0)), err

    print("KERNEL_OK")
</pallas_src>

<mosaic_0001>
module attributes {stable_mosaic.version = 11 : i64} {
  func.func @kernel(%arg0: i32, %arg1: memref<8x3xf32, #tpu.memory_space<vmem>>, %arg2: memref<3x1024xf32, #tpu.memory_space<vmem>>, %arg3: memref<1x1024xf32, #tpu.memory_space<vmem>>, %arg4: memref<1024x1024xbf16, #tpu.memory_space<vmem>>, %arg5: memref<1x1024xf32, #tpu.memory_space<vmem>>, %arg6: memref<1024x128xbf16, #tpu.memory_space<vmem>>, %arg7: memref<1x128xf32, #tpu.memory_space<vmem>>, %arg8: memref<8x128xbf16, #tpu.memory_space<vmem>>) attributes {dimension_semantics = [#tpu.dimension_semantics<parallel>], iteration_bounds = array<i64: 1>, scalar_prefetch = 0 : i64, scratch_operands = 0 : i64, tpu.core_type = #tpu.core_type<tc>, window_params = [{transform_indices = @transform_0, window_bounds = array<i64: 8, 3>}, {pipeline_mode = #tpu.pipeline_mode<synchronous>, transform_indices = @transform_1, window_bounds = array<i64: 3, 1024>}, {pipeline_mode = #tpu.pipeline_mode<synchronous>, transform_indices = @transform_2, window_bounds = array<i64: 1, 1024>}, {pipeline_mode = #tpu.pipeline_mode<synchronous>, transform_indices = @transform_3, window_bounds = array<i64: 1024, 1024>}, {pipeline_mode = #tpu.pipeline_mode<synchronous>, transform_indices = @transform_4, window_bounds = array<i64: 1, 1024>}, {pipeline_mode = #tpu.pipeline_mode<synchronous>, transform_indices = @transform_5, window_bounds = array<i64: 1024, 128>}, {pipeline_mode = #tpu.pipeline_mode<synchronous>, transform_indices = @transform_6, window_bounds = array<i64: 1, 128>}, {transform_indices = @transform_7, window_bounds = array<i64: 8, 128>}]} {
    %c0 = arith.constant 0 : index
    %c0_0 = arith.constant 0 : index
    %0 = vector.load %arg1[%c0, %c0_0] : memref<8x3xf32, #tpu.memory_space<vmem>>, vector<8x3xf32>
    %c0_1 = arith.constant 0 : index
    %c0_2 = arith.constant 0 : index
    %1 = vector.load %arg3[%c0_1, %c0_2] : memref<1x1024xf32, #tpu.memory_space<vmem>>, vector<1x1024xf32>
    %2 = vector.shape_cast %1 : vector<1x1024xf32> to vector<1x1024xf32>
    %3 = vector.broadcast %2 : vector<1x1024xf32> to vector<8x1024xf32>
    %4 = vector.extract_strided_slice %0 {offsets = [0, 0], sizes = [8, 1], strides = [1, 1]} : vector<8x3xf32> to vector<8x1xf32>
    %c0_3 = arith.constant 0 : index
    %c0_4 = arith.constant 0 : index
    %5 = vector.load %arg2[%c0_3, %c0_4] : memref<3x1024xf32, #tpu.memory_space<vmem>>, vector<1x1024xf32>
    %6 = vector.broadcast %4 : vector<8x1xf32> to vector<8x1024xf32>
    %7 = vector.broadcast %5 : vector<1x1024xf32> to vector<8x1024xf32>
    %8 = arith.mulf %6, %7 : vector<8x1024xf32>
    %9 = arith.addf %3, %8 : vector<8x1024xf32>
    %10 = vector.extract_strided_slice %0 {offsets = [0, 1], sizes = [8, 1], strides = [1, 1]} : vector<8x3xf32> to vector<8x1xf32>
    %c1 = arith.constant 1 : index
    %c0_5 = arith.constant 0 : index
    %11 = vector.load %arg2[%c1, %c0_5] : memref<3x1024xf32, #tpu.memory_space<vmem>>, vector<1x1024xf32>
    %12 = vector.broadcast %10 : vector<8x1xf32> to vector<8x1024xf32>
    %13 = vector.broadcast %11 : vector<1x1024xf32> to vector<8x1024xf32>
    %14 = arith.mulf %12, %13 : vector<8x1024xf32>
    %15 = arith.addf %9, %14 : vector<8x1024xf32>
    %16 = vector.extract_strided_slice %0 {offsets = [0, 2], sizes = [8, 1], strides = [1, 1]} : vector<8x3xf32> to vector<8x1xf32>
    %c2 = arith.constant 2 : index
    %c0_6 = arith.constant 0 : index
    %17 = vector.load %arg2[%c2, %c0_6] : memref<3x1024xf32, #tpu.memory_space<vmem>>, vector<1x1024xf32>
    %18 = vector.broadcast %16 : vector<8x1xf32> to vector<8x1024xf32>
    %19 = vector.broadcast %17 : vector<1x1024xf32> to vector<8x1024xf32>
    %20 = arith.mulf %18, %19 : vector<8x1024xf32>
    %21 = arith.addf %15, %20 : vector<8x1024xf32>
    %cst = arith.constant 0.000000e+00 : f32
    %22 = vector.broadcast %cst : f32 to vector<8x1024xf32>
    %23 = arith.maximumf %21, %22 : vector<8x1024xf32>
    %24 = arith.truncf %23 : vector<8x1024xf32> to vector<8x1024xbf16>
    %c0_7 = arith.constant 0 : index
    %c0_8 = arith.constant 0 : index
    %25 = vector.load %arg4[%c0_7, %c0_8] : memref<1024x1024xbf16, #tpu.memory_space<vmem>>, vector<1024x1024xbf16>
    %cst_9 = arith.constant dense<0.000000e+00> : vector<8x1024xf32>
    %26 = tpu.matmul %24, %25, %cst_9 {dimension_numbers = #tpu.dot_dimension_numbers<[1], [0], [0], [1], [0, 0, 1, 1], [], []>} : vector<8x1024xbf16>, vector<1024x1024xbf16>, vector<8x1024xf32> -> vector<8x1024xf32>
    %c0_10 = arith.constant 0 : index
    %c0_11 = arith.constant 0 : index
    %27 = vector.load %arg5[%c0_10, %c0_11] : memref<1x1024xf32, #tpu.memory_space<vmem>>, vector<1x1024xf32>
    %28 = vector.broadcast %27 : vector<1x1024xf32> to vector<8x1024xf32>
    %29 = arith.addf %26, %28 : vector<8x1024xf32>
    %cst_12 = arith.constant 0.000000e+00 : f32
    %30 = vector.broadcast %cst_12 : f32 to vector<8x1024xf32>
    %31 = arith.maximumf %29, %30 : vector<8x1024xf32>
    %32 = arith.truncf %31 : vector<8x1024xf32> to vector<8x1024xbf16>
    %c0_13 = arith.constant 0 : index
    %c0_14 = arith.constant 0 : index
    %33 = vector.load %arg6[%c0_13, %c0_14] : memref<1024x128xbf16, #tpu.memory_space<vmem>>, vector<1024x128xbf16>
    %cst_15 = arith.constant dense<0.000000e+00> : vector<8x128xf32>
    %34 = tpu.matmul %32, %33, %cst_15 {dimension_numbers = #tpu.dot_dimension_numbers<[1], [0], [0], [1], [0, 0, 1, 1], [], []>} : vector<8x1024xbf16>, vector<1024x128xbf16>, vector<8x128xf32> -> vector<8x128xf32>
    %c0_16 = arith.constant 0 : index
    %c0_17 = arith.constant 0 : index
    %35 = vector.load %arg7[%c0_16, %c0_17] : memref<1x128xf32, #tpu.memory_space<vmem>>, vector<1x128xf32>
    %36 = vector.broadcast %35 : vector<1x128xf32> to vector<8x128xf32>
    %37 = arith.addf %34, %36 : vector<8x128xf32>
    %cst_18 = arith.constant 0.000000e+00 : f32
    %38 = vector.broadcast %cst_18 : f32 to vector<8x128xf32>
    %39 = arith.subf %38, %37 : vector<8x128xf32>
    %40 = math.exp %39 : vector<8x128xf32>
    %cst_19 = arith.constant 1.000000e+00 : f32
    %41 = vector.broadcast %cst_19 : f32 to vector<8x128xf32>
    %42 = arith.addf %41, %40 : vector<8x128xf32>
    %43 = tpu.reciprocal %42 {approx = true} : vector<8x128xf32> -> vector<8x128xf32>
    %44 = arith.truncf %43 : vector<8x128xf32> to vector<8x128xbf16>
    %c0_20 = arith.constant 0 : index
    %c0_21 = arith.constant 0 : index
    %45 = vector.load %arg8[%c0_20, %c0_21] : memref<8x128xbf16, #tpu.memory_space<vmem>>, vector<8x128xbf16>
    tpu.vector_store %arg8[%c0_20, %c0_21], %44 {strides = array<i32>} : memref<8x128xbf16, #tpu.memory_space<vmem>>, vector<8x128xbf16>,
    return
  }
  func.func @transform_0(%arg0: i32) -> (i32, i32) {
    %c0_i32 = arith.constant 0 : i32
    %c0_i32_0 = arith.constant 0 : i32
    return %arg0, %c0_i32 : i32, i32
  }
  func.func @transform_1(%arg0: i32) -> (i32, i32) {
    %c0_i32 = arith.constant 0 : i32
    %c0_i32_0 = arith.constant 0 : i32
    %c0_i32_1 = arith.constant 0 : i32
    return %c0_i32, %c0_i32_0 : i32, i32
  }
  func.func @transform_2(%arg0: i32) -> (i32, i32) {
    %c0_i32 = arith.constant 0 : i32
    %c0_i32_0 = arith.constant 0 : i32
    %c0_i32_1 = arith.constant 0 : i32
    return %c0_i32, %c0_i32_0 : i32, i32
  }
  func.func @transform_3(%arg0: i32) -> (i32, i32) {
    %c0_i32 = arith.constant 0 : i32
    %c0_i32_0 = arith.constant 0 : i32
    %c0_i32_1 = arith.constant 0 : i32
    return %c0_i32, %c0_i32_0 : i32, i32
  }
  func.func @transform_4(%arg0: i32) -> (i32, i32) {
    %c0_i32 = arith.constant 0 : i32
    %c0_i32_0 = arith.constant 0 : i32
    %c0_i32_1 = arith.constant 0 : i32
    return %c0_i32, %c0_i32_0 : i32, i32
  }
  func.func @transform_5(%arg0: i32) -> (i32, i32) {
    %c0_i32 = arith.constant 0 : i32
    %c0_i32_0 = arith.constant 0 : i32
    %c0_i32_1 = arith.constant 0 : i32
    return %c0_i32, %c0_i32_0 : i32, i32
  }
  func.func @transform_6(%arg0: i32) -> (i32, i32) {
    %c0_i32 = arith.constant 0 : i32
    %c0_i32_0 = arith.constant 0 : i32
    %c0_i32_1 = arith.constant 0 : i32
    return %c0_i32, %c0_i32_0 : i32, i32
  }
  func.func @transform_7(%arg0: i32) -> (i32, i32) {
    %c0_i32 = arith.constant 0 : i32
    %c0_i32_0 = arith.constant 0 : i32
    return %arg0, %c0_i32 : i32, i32
  }
}

</mosaic_0001>

<llo_original>
// kernel: tpu_custom_call.1
$region0: #{tpu_custom_call.1}
  #allocation0 [shape = 'u32[]', space=smem, size = 0x4, offset = 0x4, fixed_abs, tag = 'smem constant byte address 0x4 - core index']
  #allocation1 [shape = 'u32[144,128]{1,0:T(1,128)}', space=vmem, size = 0x12000, scoped, tag = 'internal scratch']
  %s0 = inlined_call_operand.vmem [shape: f32[8,3], index: 0, kind: input, shape index: {}]
  %s1 = inlined_call_operand.hbm [shape: f32[3,1024], index: 1, kind: input, shape index: {}]
  %s2 = inlined_call_operand.hbm [shape: f32[1,1024], index: 2, kind: input, shape index: {}]
  %s3 = inlined_call_operand.hbm [shape: bf16[1024,1024], index: 3, kind: input, shape index: {}]
  %s4 = inlined_call_operand.hbm [shape: f32[1,1024], index: 4, kind: input, shape index: {}]
  %s5 = inlined_call_operand.hbm [shape: bf16[1024,128], index: 5, kind: input, shape index: {}]
  %s6 = inlined_call_operand.hbm [shape: f32[1,128], index: 6, kind: input, shape index: {}]
  %s7 = inlined_call_operand.hbm [shape: bf16[8,128], index: 7, kind: output, shape index: {}]
  %s8 = sld [smem:[#allocation0]]
  $region62: #{tpu_custom_call.1} parent=0
    _
  %s10 = ssub.s32 1, %s8
  %s11 = scalar_select 0, %s10, %s8
  $region1: #{tpu_custom_call.1} parent=0
    #allocation2 [shape = 'u8[16384]{0}', space=vmem, size = 0x4000, scoped, tag = 'input window, operand 1, single buffered']
    #allocation3 [shape = 's32[1]{0}', space=sflag, size = 0x4, scoped, tag = 'scoped memory for tpu_custom_call.1']
    #allocation4 [shape = 's32[1]{0}', space=sflag, size = 0x4, scoped, tag = 'scoped memory for tpu_custom_call.1']
    #allocation5 [shape = 'u8[4096]{0}', space=vmem, size = 0x1000, scoped, tag = 'input window, operand 2, single buffered']
    #allocation6 [shape = 's32[1]{0}', space=sflag, size = 0x4, scoped, tag = 'scoped memory for tpu_custom_call.1']
    #allocation7 [shape = 'u8[2097152]{0}', space=vmem, size = 0x200000, scoped, tag = 'input window, operand 3, single buffered']
    #allocation8 [shape = 'u8[4096]{0}', space=vmem, size = 0x1000, scoped, tag = 'input window, operand 4, single buffered']
    #allocation9 [shape = 's32[1]{0}', space=sflag, size = 0x4, scoped, tag = 'scoped memory for tpu_custom_call.1']
    #allocation10 [shape = 'u8[262144]{0}', space=vmem, size = 0x40000, scoped, tag = 'input window, operand 5, single buffered']
    #allocation11 [shape = 'u8[512]{0}', space=vmem, size = 0x400, scoped, tag = 'input window, operand 6, single buffered']
    #allocation12 [shape = 's32[1]{0}', space=sflag, size = 0x4, scoped, tag = 'scoped memory for tpu_custom_call.1']
    #allocation13 [shape = 'u8[2048]{0}', space=vmem, size = 0x800, scoped, tag = 'output window, operand 0, single buffered']
    %12 = vsyncpa [#allocation3], 0
    %13 = vsyncpa [#allocation6], 0
    %14 = vsyncpa [#allocation9], 0
    %15 = vsyncpa [#allocation12], 0
    %16 = vsyncpa [#allocation4], 0
    // Predicated region
    $region2: #{tpu_custom_call.1} parent=1 // pred_check
      _
    $region3: #{tpu_custom_call.1} parent=1 // pred_check_branch
      %18 = sbr.rel (0) target = $region5
    $region4: #{tpu_custom_call.1} parent=1 // pred_region
      _
    $region5: #{tpu_custom_call.1} parent=1 // pred_fallthru
      _
    // Predicated region
    $region6: #{tpu_custom_call.1} parent=1 // pred_check
      _
    $region7: #{tpu_custom_call.1} parent=1 // pred_check_branch
      %20 = sbr.rel (0) target = $region9
    $region8: #{tpu_custom_call.1} parent=1 // pred_region
      %s22 = ssub.s32 512, 512
      %23 = vsyncadd [#allocation3], %s22
      %s25 = sshll.u32 [#allocation2], 4
      %s26 = int_to_ptr.vmem [resolvable:$true] %s25
      %28 = dma.hbm_to_vmem [thread:$0]  %s1, 512, %s26, [#allocation3]
    $region9: #{tpu_custom_call.1} parent=1 // pred_fallthru
      _
    // Predicated region
    $region10: #{tpu_custom_call.1} parent=1 // pred_check
      _
    $region11: #{tpu_custom_call.1} parent=1 // pred_check_branch
      %30 = sbr.rel (0) target = $region13
    $region12: #{tpu_custom_call.1} parent=1 // pred_region
      %s32 = ssub.s32 128, 128
      %33 = vsyncadd [#allocation6], %s32
      %s35 = sshll.u32 [#allocation5], 4
      %s36 = int_to_ptr.vmem [resolvable:$true] %s35
      %38 = dma.hbm_to_vmem [thread:$0]  %s2, 128, %s36, [#allocation6]
    $region13: #{tpu_custom_call.1} parent=1 // pred_fallthru
      _
    // Predicated region
    $region14: #{tpu_custom_call.1} parent=1 // pred_check
      _
    $region15: #{tpu_custom_call.1} parent=1 // pred_check_branch
      %40 = sbr.rel (0) target = $region17
    $region16: #{tpu_custom_call.1} parent=1 // pred_region
      %s42 = ssub.s32 65536, 65536
      %43 = vsyncadd [#allocation6], %s42
      %s44 = sshll.u32 [#allocation7], 4
      %s45 = int_to_ptr.vmem [resolvable:$true] %s44
      %50 = dma.hbm_to_vmem [thread:$0]  %s3, 65536, %s45, [#allocation6], 512, 512, 32
    $region17: #{tpu_custom_call.1} parent=1 // pred_fallthru
      _
    // Predicated region
    $region18: #{tpu_custom_call.1} parent=1 // pred_check
      _
    $region19: #{tpu_custom_call.1} parent=1 // pred_check_branch
      %52 = sbr.rel (0) target = $region21
    $region20: #{tpu_custom_call.1} parent=1 // pred_region
      %s54 = ssub.s32 128, 128
      %55 = vsyncadd [#allocation9], %s54
      %s57 = sshll.u32 [#allocation8], 4
      %s58 = int_to_ptr.vmem [resolvable:$true] %s57
      %60 = dma.hbm_to_vmem [thread:$0]  %s4, 128, %s58, [#allocation9]
    $region21: #{tpu_custom_call.1} parent=1 // pred_fallthru
      _
    // Predicated region
    $region22: #{tpu_custom_call.1} parent=1 // pred_check
      _
    $region23: #{tpu_custom_call.1} parent=1 // pred_check_branch
      %62 = sbr.rel (0) target = $region25
    $region24: #{tpu_custom_call.1} parent=1 // pred_region
      %s64 = ssub.s32 8192, 8192
      %65 = vsyncadd [#allocation9], %s64
      %s66 = sshll.u32 [#allocation10], 4
      %s67 = int_to_ptr.vmem [resolvable:$true] %s66
      %72 = dma.hbm_to_vmem [thread:$0]  %s5, 8192, %s67, [#allocation9], 64, 64, 4
    $region25: #{tpu_custom_call.1} parent=1 // pred_fallthru
      _
    // Predicated region
    $region26: #{tpu_custom_call.1} parent=1 // pred_check
      _
    $region27: #{tpu_custom_call.1} parent=1 // pred_check_branch
      %74 = sbr.rel (0) target = $region29
    $region28: #{tpu_custom_call.1} parent=1 // pred_region
      %s76 = ssub.s32 16, 16
      %77 = vsyncadd [#allocation12], %s76
      %s79 = sshll.u32 [#allocation11], 4
      %s80 = int_to_ptr.vmem [resolvable:$true] %s79
      %82 = dma.hbm_to_vmem [thread:$0]  %s6, 16, %s80, [#allocation12]
    $region29: #{tpu_custom_call.1} parent=1 // pred_fallthru
      _
    // Predicated region
    $region30: #{tpu_custom_call.1} parent=1 // pred_check
      _
    $region31: #{tpu_custom_call.1} parent=1 // pred_check_branch
      %84 = sbr.rel (0) target = $region33
    $region32: #{tpu_custom_call.1} parent=1 // pred_region
      %85 = dma.done [#allocation3], 512
    $region33: #{tpu_custom_call.1} parent=1 // pred_fallthru
      _
    // Predicated region
    $region34: #{tpu_custom_call.1} parent=1 // pred_check
      _
    $region35: #{tpu_custom_call.1} parent=1 // pred_check_branch
      %87 = sbr.rel (0) target = $region37
    $region36: #{tpu_custom_call.1} parent=1 // pred_region
      %88 = dma.done [#allocation6], 128
    $region37: #{tpu_custom_call.1} parent=1 // pred_fallthru
      _
    // Predicated region
    $region38: #{tpu_custom_call.1} parent=1 // pred_check
      _
    $region39: #{tpu_custom_call.1} parent=1 // pred_check_branch
      %90 = sbr.rel (0) target = $region41
    $region40: #{tpu_custom_call.1} parent=1 // pred_region
      %91 = dma.done [#allocation6], 65536
    $region41: #{tpu_custom_call.1} parent=1 // pred_fallthru
      _
    // Predicated region
    $region42: #{tpu_custom_call.1} parent=1 // pred_check
      _
    $region43: #{tpu_custom_call.1} parent=1 // pred_check_branch
      %93 = sbr.rel (0) target = $region45
    $region44: #{tpu_custom_call.1} parent=1 // pred_region
      %94 = dma.done [#allocation9], 128
    $region45: #{tpu_custom_call.1} parent=1 // pred_fallthru
      _
    // Predicated region
    $region46: #{tpu_custom_call.1} parent=1 // pred_check
      _
    $region47: #{tpu_custom_call.1} parent=1 // pred_check_branch
      %96 = sbr.rel (0) target = $region49
    $region48: #{tpu_custom_call.1} parent=1 // pred_region
      %97 = dma.done [#allocation9], 8192
    $region49: #{tpu_custom_call.1} parent=1 // pred_fallthru
      _
    // Predicated region
    $region50: #{tpu_custom_call.1} parent=1 // pred_check
      _
    $region51: #{tpu_custom_call.1} parent=1 // pred_check_branch
      %99 = sbr.rel (0) target = $region53
    $region52: #{tpu_custom_call.1} parent=1 // pred_region
      %100 = dma.done [#allocation12], 16
    $region53: #{tpu_custom_call.1} parent=1 // pred_fallthru
      _
    %v102 = vld [vmem:[%s0] sm:$0xff]
    %v103 = vld [vmem:[#allocation5] sm:$0xff]
    %v105 = vlaneseq
    %v106 = vshrl.u32 %v105, 7
    %v107 = vsub.s32 0, %v106
    %v108 = vrot.slane %v103, %v107
    %v109 = vlaneseq
    %v110 = vshrl.u32 %v109, 7
    %v111 = vsub.s32 1, %v110
    %v112 = vrot.slane %v103, %v111
    %v113 = vlaneseq
    %v114 = vshrl.u32 %v113, 7
    %v115 = vsub.s32 2, %v114
    %v116 = vrot.slane %v103, %v115
    %v117 = vlaneseq
    %v118 = vshrl.u32 %v117, 7
    %v119 = vsub.s32 3, %v118
    %v120 = vrot.slane %v103, %v119
    %v121 = vlaneseq
    %v122 = vshrl.u32 %v121, 7
    %v123 = vsub.s32 4, %v122
    %v124 = vrot.slane %v103, %v123
    %v125 = vlaneseq
    %v126 = vshrl.u32 %v125, 7
    %v127 = vsub.s32 5, %v126
    %v128 = vrot.slane %v103, %v127
    %v129 = vlaneseq
    %v130 = vshrl.u32 %v129, 7
    %v131 = vsub.s32 6, %v130
    %v132 = vrot.slane %v103, %v131
    %v133 = vlaneseq
    %v134 = vshrl.u32 %v133, 7
    %v135 = vsub.s32 7, %v134
    %v136 = vrot.slane %v103, %v135
    %v145 = vld [vmem:[#allocation2] ss:$4 sm:$0xff]
    %147 = vset.pattern.permute.xlu0 0
    %148 = vperm.xlu0 %147, %v102
    %v149 = vpop.permute.xlu0 %148
    %v152 = vlaneseq
    %v153 = vshrl.u32 %v152, 7
    %v154 = vsub.s32 0, %v153
    %v155 = vrot.slane %v145, %v154
    %v156 = vlaneseq
    %v157 = vshrl.u32 %v156, 7
    %v158 = vsub.s32 1, %v157
    %v159 = vrot.slane %v145, %v158
    %v160 = vlaneseq
    %v161 = vshrl.u32 %v160, 7
    %v162 = vsub.s32 2, %v161
    %v163 = vrot.slane %v145, %v162
    %v164 = vlaneseq
    %v165 = vshrl.u32 %v164, 7
    %v166 = vsub.s32 3, %v165
    %v167 = vrot.slane %v145, %v166
    %v168 = vlaneseq
    %v169 = vshrl.u32 %v168, 7
    %v170 = vsub.s32 4, %v169
    %v171 = vrot.slane %v145, %v170
    %v172 = vlaneseq
    %v173 = vshrl.u32 %v172, 7
    %v174 = vsub.s32 5, %v173
    %v175 = vrot.slane %v145, %v174
    %v176 = vlaneseq
    %v177 = vshrl.u32 %v176, 7
    %v178 = vsub.s32 6, %v177
    %v179 = vrot.slane %v145, %v178
    %v180 = vlaneseq
    %v181 = vshrl.u32 %v180, 7
    %v182 = vsub.s32 7, %v181
    %v183 = vrot.slane %v145, %v182
    %v192 = vmul.f32 %v149, %v155
    %v193 = vmul.f32 %v149, %v159
    %v194 = vmul.f32 %v149, %v163
    %v195 = vmul.f32 %v149, %v167
    %v196 = vmul.f32 %v149, %v171
    %v197 = vmul.f32 %v149, %v175
    %v198 = vmul.f32 %v149, %v179
    %v199 = vmul.f32 %v149, %v183
    %v200 = vadd.f32 %v108, %v192
    %v201 = vadd.f32 %v112, %v193
    %v202 = vadd.f32 %v116, %v194
    %v203 = vadd.f32 %v120, %v195
    %v204 = vadd.f32 %v124, %v196
    %v205 = vadd.f32 %v128, %v197
    %v206 = vadd.f32 %v132, %v198
    %v207 = vadd.f32 %v136, %v199
    %s208 = scalar_lea.vmem [#allocation2], 1
    %v209 = vld [vmem:[%s208] ss:$4 sm:$0xff]
    %210 = vset.pattern.permute.xlu0 1
    %211 = vperm.xlu0 %210, %v102
    %v212 = vpop.permute.xlu0 %211
    %v215 = vlaneseq
    %v216 = vshrl.u32 %v215, 7
    %v217 = vsub.s32 0, %v216
    %v218 = vrot.slane %v209, %v217
    %v219 = vlaneseq
    %v220 = vshrl.u32 %v219, 7
    %v221 = vsub.s32 1, %v220
    %v222 = vrot.slane %v209, %v221
    %v223 = vlaneseq
    %v224 = vshrl.u32 %v223, 7
    %v225 = vsub.s32 2, %v224
    %v226 = vrot.slane %v209, %v225
    %v227 = vlaneseq
    %v228 = vshrl.u32 %v227, 7
    %v229 = vsub.s32 3, %v228
    %v230 = vrot.slane %v209, %v229
    %v231 = vlaneseq
    %v232 = vshrl.u32 %v231, 7
    %v233 = vsub.s32 4, %v232
    %v234 = vrot.slane %v209, %v233
    %v235 = vlaneseq
    %v236 = vshrl.u32 %v235, 7
    %v237 = vsub.s32 5, %v236
    %v238 = vrot.slane %v209, %v237
    %v239 = vlaneseq
    %v240 = vshrl.u32 %v239, 7
    %v241 = vsub.s32 6, %v240
    %v242 = vrot.slane %v209, %v241
    %v243 = vlaneseq
    %v244 = vshrl.u32 %v243, 7
    %v245 = vsub.s32 7, %v244
    %v246 = vrot.slane %v209, %v245
    %v255 = vmul.f32 %v212, %v218
    %v256 = vmul.f32 %v212, %v222
    %v257 = vmul.f32 %v212, %v226
    %v258 = vmul.f32 %v212, %v230
    %v259 = vmul.f32 %v212, %v234
    %v260 = vmul.f32 %v212, %v238
    %v261 = vmul.f32 %v212, %v242
    %v262 = vmul.f32 %v212, %v246
    %v263 = vadd.f32 %v200, %v255
    %v264 = vadd.f32 %v201, %v256
    %v265 = vadd.f32 %v202, %v257
    %v266 = vadd.f32 %v203, %v258
    %v267 = vadd.f32 %v204, %v259
    %v268 = vadd.f32 %v205, %v260
    %v269 = vadd.f32 %v206, %v261
    %v270 = vadd.f32 %v207, %v262
    %s271 = scalar_lea.vmem [#allocation2], 2
    %v272 = vld [vmem:[%s271] ss:$4 sm:$0xff]
    %273 = vset.pattern.permute.xlu0 2
    %274 = vperm.xlu0 %273, %v102
    %v275 = vpop.permute.xlu0 %274
    %v278 = vlaneseq
    %v279 = vshrl.u32 %v278, 7
    %v280 = vsub.s32 0, %v279
    %v281 = vrot.slane %v272, %v280
    %v282 = vlaneseq
    %v283 = vshrl.u32 %v282, 7
    %v284 = vsub.s32 1, %v283
    %v285 = vrot.slane %v272, %v284
    %v286 = vlaneseq
    %v287 = vshrl.u32 %v286, 7
    %v288 = vsub.s32 2, %v287
    %v289 = vrot.slane %v272, %v288
    %v290 = vlaneseq
    %v291 = vshrl.u32 %v290, 7
    %v292 = vsub.s32 3, %v291
    %v293 = vrot.slane %v272, %v292
    %v294 = vlaneseq
    %v295 = vshrl.u32 %v294, 7
    %v296 = vsub.s32 4, %v295
    %v297 = vrot.slane %v272, %v296
    %v298 = vlaneseq
    %v299 = vshrl.u32 %v298, 7
    %v300 = vsub.s32 5, %v299
    %v301 = vrot.slane %v272, %v300
    %v302 = vlaneseq
    %v303 = vshrl.u32 %v302, 7
    %v304 = vsub.s32 6, %v303
    %v305 = vrot.slane %v272, %v304
    %v306 = vlaneseq
    %v307 = vshrl.u32 %v306, 7
    %v308 = vsub.s32 7, %v307
    %v309 = vrot.slane %v272, %v308
    %v318 = vmul.f32 %v275, %v281
    %v319 = vmul.f32 %v275, %v285
    %v320 = vmul.f32 %v275, %v289
    %v321 = vmul.f32 %v275, %v293
    %v322 = vmul.f32 %v275, %v297
    %v323 = vmul.f32 %v275, %v301
    %v324 = vmul.f32 %v275, %v305
    %v325 = vmul.f32 %v275, %v309
    %v326 = vadd.f32 %v263, %v318
    %v327 = vadd.f32 %v264, %v319
    %v328 = vadd.f32 %v265, %v320
    %v329 = vadd.f32 %v266, %v321
    %v330 = vadd.f32 %v267, %v322
    %v331 = vadd.f32 %v268, %v323
    %v332 = vadd.f32 %v269, %v324
    %v333 = vadd.f32 %v270, %v325
    %v334 = vmax.f32 %v326, 0.0
    %v335 = vmax.f32 %v327, 0.0
    %v336 = vmax.f32 %v328, 0.0
    %v337 = vmax.f32 %v329, 0.0
    %v338 = vmax.f32 %v330, 0.0
    %v339 = vmax.f32 %v331, 0.0
    %v340 = vmax.f32 %v332, 0.0
    %v341 = vmax.f32 %v333, 0.0
    %v342 = vpack.c.bf16 %v334, %v334
    %v343 = vpack.c.bf16 %v335, %v335
    %v344 = vpack.c.bf16 %v336, %v336
    %v345 = vpack.c.bf16 %v337, %v337
    %v346 = vpack.c.bf16 %v338, %v338
    %v347 = vpack.c.bf16 %v339, %v339
    %v348 = vpack.c.bf16 %v340, %v340
    %v349 = vpack.c.bf16 %v341, %v341
    %v350 = vld [vmem:[#allocation7] sm:$0xff]
    %v351 = vld [vmem:[#allocation7 + $0x8] sm:$0xff]
    %v352 = vld [vmem:[#allocation7 + $0x10] sm:$0xff]
    %v353 = vld [vmem:[#allocation7 + $0x18] sm:$0xff]
    %v354 = vld [vmem:[#allocation7 + $0x20] sm:$0xff]
    %v355 = vld [vmem:[#allocation7 + $0x28] sm:$0xff]
    %v356 = vld [vmem:[#allocation7 + $0x30] sm:$0xff]
    %v357 = vld [vmem:[#allocation7 + $0x38] sm:$0xff]
    %v358 = vld [vmem:[#allocation7 + $0x40] sm:$0xff]
    %v359 = vld [vmem:[#allocation7 + $0x48] sm:$0xff]
    %v360 = vld [vmem:[#allocation7 + $0x50] sm:$0xff]
    %v361 = vld [vmem:[#allocation7 + $0x58] sm:$0xff]
    %v362 = vld [vmem:[#allocation7 + $0x60] sm:$0xff]
    %v363 = vld [vmem:[#allocation7 + $0x68] sm:$0xff]
    %v364 = vld [vmem:[#allocation7 + $0x70] sm:$0xff]
    %v365 = vld [vmem:[#allocation7 + $0x78] sm:$0xff]
    %v366 = vld [vmem:[#allocation7 + $0x80] sm:$0xff]
    %v367 = vld [vmem:[#allocation7 + $0x88] sm:$0xff]
    %v368 = vld [vmem:[#allocation7 + $0x90] sm:$0xff]
    %v369 = vld [vmem:[#allocation7 + $0x98] sm:$0xff]
    %v370 = vld [vmem:[#allocation7 + $0xa0] sm:$0xff]
    %v371 = vld [vmem:[#allocation7 + $0xa8] sm:$0xff]
    %v372 = vld [vmem:[#allocation7 + $0xb0] sm:$0xff]
    %v373 = vld [vmem:[#allocation7 + $0xb8] sm:$0xff]
    %v374 = vld [vmem:[#allocation7 + $0xc0] sm:$0xff]
    %v375 = vld [vmem:[#allocation7 + $0xc8] sm:$0xff]
    %v376 = vld [vmem:[#allocation7 + $0xd0] sm:$0xff]
    %v377 = vld [vmem:[#allocation7 + $0xd8] sm:$0xff]
    %v378 = vld [vmem:[#allocation7 + $0xe0] sm:$0xff]
    %v379 = vld [vmem:[#allocation7 + $0xe8] sm:$0xff]
    %v380 = vld [vmem:[#allocation7 + $0xf0] sm:$0xff]
    %v381 = vld [vmem:[#allocation7 + $0xf8] sm:$0xff]
    %v382 = vld [vmem:[#allocation7 + $0x100] sm:$0xff]
    %v383 = vld [vmem:[#allocation7 + $0x108] sm:$0xff]
    %v384 = vld [vmem:[#allocation7 + $0x110] sm:$0xff]
    %v385 = vld [vmem:[#allocation7 + $0x118] sm:$0xff]
    %v386 = vld [vmem:[#allocation7 + $0x120] sm:$0xff]
    %v387 = vld [vmem:[#allocation7 + $0x128] sm:$0xff]
    %v388 = vld [vmem:[#allocation7 + $0x130] sm:$0xff]
    %v389 = vld [vmem:[#allocation7 + $0x138] sm:$0xff]
    %v390 = vld [vmem:[#allocation7 + $0x140] sm:$0xff]
    %v391 = vld [vmem:[#allocation7 + $0x148] sm:$0xff]
    %v392 = vld [vmem:[#allocation7 + $0x150] sm:$0xff]
    %v393 = vld [vmem:[#allocation7 + $0x158] sm:$0xff]
    %v394 = vld [vmem:[#allocation7 + $0x160] sm:$0xff]
    %v395 = vld [vmem:[#allocation7 + $0x168] sm:$0xff]
    %v396 = vld [vmem:[#allocation7 + $0x170] sm:$0xff]
    %v397 = vld [vmem:[#allocation7 + $0x178] sm:$0xff]
    %v398 = vld [vmem:[#allocation7 + $0x180] sm:$0xff]
    %v399 = vld [vmem:[#allocation7 + $0x188] sm:$0xff]
    %v400 = vld [vmem:[#allocation7 + $0x190] sm:$0xff]
    %v401 = vld [vmem:[#allocation7 + $0x198] sm:$0xff]
    %v402 = vld [vmem:[#allocation7 + $0x1a0] sm:$0xff]
    %v403 = vld [vmem:[#allocation7 + $0x1a8] sm:$0xff]
    %v404 = vld [vmem:[#allocation7 + $0x1b0] sm:$0xff]
    %v405 = vld [vmem:[#allocation7 + $0x1b8] sm:$0xff]
    %v406 = vld [vmem:[#allocation7 + $0x1c0] sm:$0xff]
    %v407 = vld [vmem:[#allocation7 + $0x1c8] sm:$0xff]
    %v408 = vld [vmem:[#allocation7 + $0x1d0] sm:$0xff]
    %v409 = vld [vmem:[#allocation7 + $0x1d8] sm:$0xff]
    %v410 = vld [vmem:[#allocation7 + $0x1e0] sm:$0xff]
    %v411 = vld [vmem:[#allocation7 + $0x1e8] sm:$0xff]
    %v412 = vld [vmem:[#allocation7 + $0x1f0] sm:$0xff]
    %v413 = vld [vmem:[#allocation7 + $0x1f8] sm:$0xff]
    %v414 = vld [vmem:[#allocation7 + $0x200] sm:$0xff]
    %v415 = vld [vmem:[#allocation7 + $0x208] sm:$0xff]
    %v416 = vld [vmem:[#allocation7 + $0x210] sm:$0xff]
    %v417 = vld [vmem:[#allocation7 + $0x218] sm:$0xff]
    %v418 = vld [vmem:[#allocation7 + $0x220] sm:$0xff]
    %v419 = vld [vmem:[#allocation7 + $0x228] sm:$0xff]
    %v420 = vld [vmem:[#allocation7 + $0x230] sm:$0xff]
    %v421 = vld [vmem:[#allocation7 + $0x238] sm:$0xff]
    %v422 = vld [vmem:[#allocation7 + $0x240] sm:$0xff]
    %v423 = vld [vmem:[#allocation7 + $0x248] sm:$0xff]
    %v424 = vld [vmem:[#allocation7 + $0x250] sm:$0xff]
    %v425 = vld [vmem:[#allocation7 + $0x258] sm:$0xff]
    %v426 = vld [vmem:[#allocation7 + $0x260] sm:$0xff]
    %v427 = vld [vmem:[#allocation7 + $0x268] sm:$0xff]
    %v428 = vld [vmem:[#allocation7 + $0x270] sm:$0xff]
    %v429 = vld [vmem:[#allocation7 + $0x278] sm:$0xff]
    %v430 = vld [vmem:[#allocation7 + $0x280] sm:$0xff]
    %v431 = vld [vmem:[#allocation7 + $0x288] sm:$0xff]
    %v432 = vld [vmem:[#allocation7 + $0x290] sm:$0xff]
    %v433 = vld [vmem:[#allocation7 + $0x298] sm:$0xff]
    %v434 = vld [vmem:[#allocation7 + $0x2a0] sm:$0xff]
    %v435 = vld [vmem:[#allocation7 + $0x2a8] sm:$0xff]
    %v436 = vld [vmem:[#allocation7 + $0x2b0] sm:$0xff]
    %v437 = vld [vmem:[#allocation7 + $0x2b8] sm:$0xff]
    %v438 = vld [vmem:[#allocation7 + $0x2c0] sm:$0xff]
    %v439 = vld [vmem:[#allocation7 + $0x2c8] sm:$0xff]
    %v440 = vld [vmem:[#allocation7 + $0x2d0] sm:$0xff]
    %v441 = vld [vmem:[#allocation7 + $0x2d8] sm:$0xff]
    %v442 = vld [vmem:[#allocation7 + $0x2e0] sm:$0xff]
    %v443 = vld [vmem:[#allocation7 + $0x2e8] sm:$0xff]
    %v444 = vld [vmem:[#allocation7 + $0x2f0] sm:$0xff]
    %v445 = vld [vmem:[#allocation7 + $0x2f8] sm:$0xff]
    %v446 = vld [vmem:[#allocation7 + $0x300] sm:$0xff]
    %v447 = vld [vmem:[#allocation7 + $0x308] sm:$0xff]
    %v448 = vld [vmem:[#allocation7 + $0x310] sm:$0xff]
    %v449 = vld [vmem:[#allocation7 + $0x318] sm:$0xff]
    %v450 = vld [vmem:[#allocation7 + $0x320] sm:$0xff]
    %v451 = vld [vmem:[#allocation7 + $0x328] sm:$0xff]
    %v452 = vld [vmem:[#allocation7 + $0x330] sm:$0xff]
    %v453 = vld [vmem:[#allocation7 + $0x338] sm:$0xff]
    %v454 = vld [vmem:[#allocation7 + $0x340] sm:$0xff]
    %v455 = vld [vmem:[#allocation7 + $0x348] sm:$0xff]
    %v456 = vld [vmem:[#allocation7 + $0x350] sm:$0xff]
    %v457 = vld [vmem:[#allocation7 + $0x358] sm:$0xff]
    %v458 = vld [vmem:[#allocation7 + $0x360] sm:$0xff]
    %v459 = vld [vmem:[#allocation7 + $0x368] sm:$0xff]
    %v460 = vld [vmem:[#allocation7 + $0x370] sm:$0xff]
    %v461 = vld [vmem:[#allocation7 + $0x378] sm:$0xff]
    %v462 = vld [vmem:[#allocation7 + $0x380] sm:$0xff]
    %v463 = vld [vmem:[#allocation7 + $0x388] sm:$0xff]
    %v464 = vld [vmem:[#allocation7 + $0x390] sm:$0xff]
    %v465 = vld [vmem:[#allocation7 + $0x398] sm:$0xff]
    %v466 = vld [vmem:[#allocation7 + $0x3a0] sm:$0xff]
    %v467 = vld [vmem:[#allocation7 + $0x3a8] sm:$0xff]
    %v468 = vld [vmem:[#allocation7 + $0x3b0] sm:$0xff]
    %v469 = vld [vmem:[#allocation7 + $0x3b8] sm:$0xff]
    %v470 = vld [vmem:[#allocation7 + $0x3c0] sm:$0xff]
    %v471 = vld [vmem:[#allocation7 + $0x3c8] sm:$0xff]
    %v472 = vld [vmem:[#allocation7 + $0x3d0] sm:$0xff]
    %v473 = vld [vmem:[#allocation7 + $0x3d8] sm:$0xff]
    %v474 = vld [vmem:[#allocation7 + $0x3e0] sm:$0xff]
    %v475 = vld [vmem:[#allocation7 + $0x3e8] sm:$0xff]
    %v476 = vld [vmem:[#allocation7 + $0x3f0] sm:$0xff]
    %v477 = vld [vmem:[#allocation7 + $0x3f8] sm:$0xff]
    %v478 = vld [vmem:[#allocation7 + $0x400] sm:$0xff]
    %v479 = vld [vmem:[#allocation7 + $0x408] sm:$0xff]
    %v480 = vld [vmem:[#allocation7 + $0x410] sm:$0xff]
    %v481 = vld [vmem:[#allocation7 + $0x418] sm:$0xff]
    %v482 = vld [vmem:[#allocation7 + $0x420] sm:$0xff]
    %v483 = vld [vmem:[#allocation7 + $0x428] sm:$0xff]
    %v484 = vld [vmem:[#allocation7 + $0x430] sm:$0xff]
    %v485 = vld [vmem:[#allocation7 + $0x438] sm:$0xff]
    %v486 = vld [vmem:[#allocation7 + $0x440] sm:$0xff]
    %v487 = vld [vmem:[#allocation7 + $0x448] sm:$0xff]
    %v488 = vld [vmem:[#allocation7 + $0x450] sm:$0xff]
    %v489 = vld [vmem:[#allocation7 + $0x458] sm:$0xff]
    %v490 = vld [vmem:[#allocation7 + $0x460] sm:$0xff]
    %v491 = vld [vmem:[#allocation7 + $0x468] sm:$0xff]
    %v492 = vld [vmem:[#allocation7 + $0x470] sm:$0xff]
    %v493 = vld [vmem:[#allocation7 + $0x478] sm:$0xff]
    %v494 = vld [vmem:[#allocation7 + $0x480] sm:$0xff]
    %v495 = vld [vmem:[#allocation7 + $0x488] sm:$0xff]
    %v496 = vld [vmem:[#allocation7 + $0x490] sm:$0xff]
    %v497 = vld [vmem:[#allocation7 + $0x498] sm:$0xff]
    %v498 = vld [vmem:[#allocation7 + $0x4a0] sm:$0xff]
    %v499 = vld [vmem:[#allocation7 + $0x4a8] sm:$0xff]
    %v500 = vld [vmem:[#allocation7 + $0x4b0] sm:$0xff]
    %v501 = vld [vmem:[#allocation7 + $0x4b8] sm:$0xff]
    %v502 = vld [vmem:[#allocation7 + $0x4c0] sm:$0xff]
    %v503 = vld [vmem:[#allocation7 + $0x4c8] sm:$0xff]
    %v504 = vld [vmem:[#allocation7 + $0x4d0] sm:$0xff]
    %v505 = vld [vmem:[#allocation7 + $0x4d8] sm:$0xff]
    %v506 = vld [vmem:[#allocation7 + $0x4e0] sm:$0xff]
    %v507 = vld [vmem:[#allocation7 + $0x4e8] sm:$0xff]
    %v508 = vld [vmem:[#allocation7 + $0x4f0] sm:$0xff]
    %v509 = vld [vmem:[#allocation7 + $0x4f8] sm:$0xff]
    %v510 = vld [vmem:[#allocation7 + $0x500] sm:$0xff]
    %v511 = vld [vmem:[#allocation7 + $0x508] sm:$0xff]
    %v512 = vld [vmem:[#allocation7 + $0x510] sm:$0xff]
    %v513 = vld [vmem:[#allocation7 + $0x518] sm:$0xff]
    %v514 = vld [vmem:[#allocation7 + $0x520] sm:$0xff]
    %v515 = vld [vmem:[#allocation7 + $0x528] sm:$0xff]
    %v516 = vld [vmem:[#allocation7 + $0x530] sm:$0xff]
    %v517 = vld [vmem:[#allocation7 + $0x538] sm:$0xff]
    %v518 = vld [vmem:[#allocation7 + $0x540] sm:$0xff]
    %v519 = vld [vmem:[#allocation7 + $0x548] sm:$0xff]
    %v520 = vld [vmem:[#allocation7 + $0x550] sm:$0xff]
    %v521 = vld [vmem:[#allocation7 + $0x558] sm:$0xff]
    %v522 = vld [vmem:[#allocation7 + $0x560] sm:$0xff]
    %v523 = vld [vmem:[#allocation7 + $0x568] sm:$0xff]
    %v524 = vld [vmem:[#allocation7 + $0x570] sm:$0xff]
    %v525 = vld [vmem:[#allocation7 + $0x578] sm:$0xff]
    %v526 = vld [vmem:[#allocation7 + $0x580] sm:$0xff]
    %v527 = vld [vmem:[#allocation7 + $0x588] sm:$0xff]
    %v528 = vld [vmem:[#allocation7 + $0x590] sm:$0xff]
    %v529 = vld [vmem:[#allocation7 + $0x598] sm:$0xff]
    %v530 = vld [vmem:[#allocation7 + $0x5a0] sm:$0xff]
    %v531 = vld [vmem:[#allocation7 + $0x5a8] sm:$0xff]
    %v532 = vld [vmem:[#allocation7 + $0x5b0] sm:$0xff]
    %v533 = vld [vmem:[#allocation7 + $0x5b8] sm:$0xff]
    %v534 = vld [vmem:[#allocation7 + $0x5c0] sm:$0xff]
    %v535 = vld [vmem:[#allocation7 + $0x5c8] sm:$0xff]
    %v536 = vld [vmem:[#allocation7 + $0x5d0] sm:$0xff]
    %v537 = vld [vmem:[#allocation7 + $0x5d8] sm:$0xff]
    %v538 = vld [vmem:[#allocation7 + $0x5e0] sm:$0xff]
    %v539 = vld [vmem:[#allocation7 + $0x5e8] sm:$0xff]
    %v540 = vld [vmem:[#allocation7 + $0x5f0] sm:$0xff]
    %v541 = vld [vmem:[#allocation7 + $0x5f8] sm:$0xff]
    %v542 = vld [vmem:[#allocation7 + $0x600] sm:$0xff]
    %v543 = vld [vmem:[#allocation7 + $0x608] sm:$0xff]
    %v544 = vld [vmem:[#allocation7 + $0x610] sm:$0xff]
    %v545 = vld [vmem:[#allocation7 + $0x618] sm:$0xff]
    %v546 = vld [vmem:[#allocation7 + $0x620] sm:$0xff]
    %v547 = vld [vmem:[#allocation7 + $0x628] sm:$0xff]
    %v548 = vld [vmem:[#allocation7 + $0x630] sm:$0xff]
    %v549 = vld [vmem:[#allocation7 + $0x638] sm:$0xff]
    %v550 = vld [vmem:[#allocation7 + $0x640] sm:$0xff]
    %v551 = vld [vmem:[#allocation7 + $0x648] sm:$0xff]
    %v552 = vld [vmem:[#allocation7 + $0x650] sm:$0xff]
    %v553 = vld [vmem:[#allocation7 + $0x658] sm:$0xff]
    %v554 = vld [vmem:[#allocation7 + $0x660] sm:$0xff]
    %v555 = vld [vmem:[#allocation7 + $0x668] sm:$0xff]
    %v556 = vld [vmem:[#allocation7 + $0x670] sm:$0xff]
    %v557 = vld [vmem:[#allocation7 + $0x678] sm:$0xff]
    %v558 = vld [vmem:[#allocation7 + $0x680] sm:$0xff]
    %v559 = vld [vmem:[#allocation7 + $0x688] sm:$0xff]
    %v560 = vld [vmem:[#allocation7 + $0x690] sm:$0xff]
    %v561 = vld [vmem:[#allocation7 + $0x698] sm:$0xff]
    %v562 = vld [vmem:[#allocation7 + $0x6a0] sm:$0xff]
    %v563 = vld [vmem:[#allocation7 + $0x6a8] sm:$0xff]
    %v564 = vld [vmem:[#allocation7 + $0x6b0] sm:$0xff]
    %v565 = vld [vmem:[#allocation7 + $0x6b8] sm:$0xff]
    %v566 = vld [vmem:[#allocation7 + $0x6c0] sm:$0xff]
    %v567 = vld [vmem:[#allocation7 + $0x6c8] sm:$0xff]
    %v568 = vld [vmem:[#allocation7 + $0x6d0] sm:$0xff]
    %v569 = vld [vmem:[#allocation7 + $0x6d8] sm:$0xff]
    %v570 = vld [vmem:[#allocation7 + $0x6e0] sm:$0xff]
    %v571 = vld [vmem:[#allocation7 + $0x6e8] sm:$0xff]
    %v572 = vld [vmem:[#allocation7 + $0x6f0] sm:$0xff]
    %v573 = vld [vmem:[#allocation7 + $0x6f8] sm:$0xff]
    %v574 = vld [vmem:[#allocation7 + $0x700] sm:$0xff]
    %v575 = vld [vmem:[#allocation7 + $0x708] sm:$0xff]
    %v576 = vld [vmem:[#allocation7 + $0x710] sm:$0xff]
    %v577 = vld [vmem:[#allocation7 + $0x718] sm:$0xff]
    %v578 = vld [vmem:[#allocation7 + $0x720] sm:$0xff]
    %v579 = vld [vmem:[#allocation7 + $0x728] sm:$0xff]
    %v580 = vld [vmem:[#allocation7 + $0x730] sm:$0xff]
    %v581 = vld [vmem:[#allocation7 + $0x738] sm:$0xff]
    %v582 = vld [vmem:[#allocation7 + $0x740] sm:$0xff]
    %v583 = vld [vmem:[#allocation7 + $0x748] sm:$0xff]
    %v584 = vld [vmem:[#allocation7 + $0x750] sm:$0xff]
    %v585 = vld [vmem:[#allocation7 + $0x758] sm:$0xff]
    %v586 = vld [vmem:[#allocation7 + $0x760] sm:$0xff]
    %v587 = vld [vmem:[#allocation7 + $0x768] sm:$0xff]
    %v588 = vld [vmem:[#allocation7 + $0x770] sm:$0xff]
    %v589 = vld [vmem:[#allocation7 + $0x778] sm:$0xff]
    %v590 = vld [vmem:[#allocation7 + $0x780] sm:$0xff]
    %v591 = vld [vmem:[#allocation7 + $0x788] sm:$0xff]
    %v592 = vld [vmem:[#allocation7 + $0x790] sm:$0xff]
    %v593 = vld [vmem:[#allocation7 + $0x798] sm:$0xff]
    %v594 = vld [vmem:[#allocation7 + $0x7a0] sm:$0xff]
    %v595 = vld [vmem:[#allocation7 + $0x7a8] sm:$0xff]
    %v596 = vld [vmem:[#allocation7 + $0x7b0] sm:$0xff]
    %v597 = vld [vmem:[#allocation7 + $0x7b8] sm:$0xff]
    %v598 = vld [vmem:[#allocation7 + $0x7c0] sm:$0xff]
    %v599 = vld [vmem:[#allocation7 + $0x7c8] sm:$0xff]
    %v600 = vld [vmem:[#allocation7 + $0x7d0] sm:$0xff]
    %v601 = vld [vmem:[#allocation7 + $0x7d8] sm:$0xff]
    %v602 = vld [vmem:[#allocation7 + $0x7e0] sm:$0xff]
    %v603 = vld [vmem:[#allocation7 + $0x7e8] sm:$0xff]
    %v604 = vld [vmem:[#allocation7 + $0x7f0] sm:$0xff]
    %v605 = vld [vmem:[#allocation7 + $0x7f8] sm:$0xff]
    %v606 = vld [vmem:[#allocation7 + $0x800] sm:$0xff]
    %v607 = vld [vmem:[#allocation7 + $0x808] sm:$0xff]
    %v608 = vld [vmem:[#allocation7 + $0x810] sm:$0xff]
    %v609 = vld [vmem:[#allocation7 + $0x818] sm:$0xff]
    %v610 = vld [vmem:[#allocation7 + $0x820] sm:$0xff]
    %v611 = vld [vmem:[#allocation7 + $0x828] sm:$0xff]
    %v612 = vld [vmem:[#allocation7 + $0x830] sm:$0xff]
    %v613 = vld [vmem:[#allocation7 + $0x838] sm:$0xff]
    %v614 = vld [vmem:[#allocation7 + $0x840] sm:$0xff]
    %v615 = vld [vmem:[#allocation7 + $0x848] sm:$0xff]
    %v616 = vld [vmem:[#allocation7 + $0x850] sm:$0xff]
    %v617 = vld [vmem:[#allocation7 + $0x858] sm:$0xff]
    %v618 = vld [vmem:[#allocation7 + $0x860] sm:$0xff]
    %v619 = vld [vmem:[#allocation7 + $0x868] sm:$0xff]
    %v620 = vld [vmem:[#allocation7 + $0x870] sm:$0xff]
    %v621 = vld [vmem:[#allocation7 + $0x878] sm:$0xff]
    %v622 = vld [vmem:[#allocation7 + $0x880] sm:$0xff]
    %v623 = vld [vmem:[#allocation7 + $0x888] sm:$0xff]
    %v624 = vld [vmem:[#allocation7 + $0x890] sm:$0xff]
    %v625 = vld [vmem:[#allocation7 + $0x898] sm:$0xff]
    %v626 = vld [vmem:[#allocation7 + $0x8a0] sm:$0xff]
    %v627 = vld [vmem:[#allocation7 + $0x8a8] sm:$0xff]
    %v628 = vld [vmem:[#allocation7 + $0x8b0] sm:$0xff]
    %v629 = vld [vmem:[#allocation7 + $0x8b8] sm:$0xff]
    %v630 = vld [vmem:[#allocation7 + $0x8c0] sm:$0xff]
    %v631 = vld [vmem:[#allocation7 + $0x8c8] sm:$0xff]
    %v632 = vld [vmem:[#allocation7 + $0x8d0] sm:$0xff]
    %v633 = vld [vmem:[#allocation7 + $0x8d8] sm:$0xff]
    %v634 = vld [vmem:[#allocation7 + $0x8e0] sm:$0xff]
    %v635 = vld [vmem:[#allocation7 + $0x8e8] sm:$0xff]
    %v636 = vld [vmem:[#allocation7 + $0x8f0] sm:$0xff]
    %v637 = vld [vmem:[#allocation7 + $0x8f8] sm:$0xff]
    %v638 = vld [vmem:[#allocation7 + $0x900] sm:$0xff]
    %v639 = vld [vmem:[#allocation7 + $0x908] sm:$0xff]
    %v640 = vld [vmem:[#allocation7 + $0x910] sm:$0xff]
    %v641 = vld [vmem:[#allocation7 + $0x918] sm:$0xff]
    %v642 = vld [vmem:[#allocation7 + $0x920] sm:$0xff]
    %v643 = vld [vmem:[#allocation7 + $0x928] sm:$0xff]
    %v644 = vld [vmem:[#allocation7 + $0x930] sm:$0xff]
    %v645 = vld [vmem:[#allocation7 + $0x938] sm:$0xff]
    %v646 = vld [vmem:[#allocation7 + $0x940] sm:$0xff]
    %v647 = vld [vmem:[#allocation7 + $0x948] sm:$0xff]
    %v648 = vld [vmem:[#allocation7 + $0x950] sm:$0xff]
    %v649 = vld [vmem:[#allocation7 + $0x958] sm:$0xff]
    %v650 = vld [vmem:[#allocation7 + $0x960] sm:$0xff]
    %v651 = vld [vmem:[#allocation7 + $0x968] sm:$0xff]
    %v652 = vld [vmem:[#allocation7 + $0x970] sm:$0xff]
    %v653 = vld [vmem:[#allocation7 + $0x978] sm:$0xff]
    %v654 = vld [vmem:[#allocation7 + $0x980] sm:$0xff]
    %v655 = vld [vmem:[#allocation7 + $0x988] sm:$0xff]
    %v656 = vld [vmem:[#allocation7 + $0x990] sm:$0xff]
    %v657 = vld [vmem:[#allocation7 + $0x998] sm:$0xff]
    %v658 = vld [vmem:[#allocation7 + $0x9a0] sm:$0xff]
    %v659 = vld [vmem:[#allocation7 + $0x9a8] sm:$0xff]
    %v660 = vld [vmem:[#allocation7 + $0x9b0] sm:$0xff]
    %v661 = vld [vmem:[#allocation7 + $0x9b8] sm:$0xff]
    %v662 = vld [vmem:[#allocation7 + $0x9c0] sm:$0xff]
    %v663 = vld [vmem:[#allocation7 + $0x9c8] sm:$0xff]
    %v664 = vld [vmem:[#allocation7 + $0x9d0] sm:$0xff]
    %v665 = vld [vmem:[#allocation7 + $0x9d8] sm:$0xff]
    %v666 = vld [vmem:[#allocation7 + $0x9e0] sm:$0xff]
    %v667 = vld [vmem:[#allocation7 + $0x9e8] sm:$0xff]
    %v668 = vld [vmem:[#allocation7 + $0x9f0] sm:$0xff]
    %v669 = vld [vmem:[#allocation7 + $0x9f8] sm:$0xff]
    %v670 = vld [vmem:[#allocation7 + $0xa00] sm:$0xff]
    %v671 = vld [vmem:[#allocation7 + $0xa08] sm:$0xff]
    %v672 = vld [vmem:[#allocation7 + $0xa10] sm:$0xff]
    %v673 = vld [vmem:[#allocation7 + $0xa18] sm:$0xff]
    %v674 = vld [vmem:[#allocation7 + $0xa20] sm:$0xff]
    %v675 = vld [vmem:[#allocation7 + $0xa28] sm:$0xff]
    %v676 = vld [vmem:[#allocation7 + $0xa30] sm:$0xff]
    %v677 = vld [vmem:[#allocation7 + $0xa38] sm:$0xff]
    %v678 = vld [vmem:[#allocation7 + $0xa40] sm:$0xff]
    %v679 = vld [vmem:[#allocation7 + $0xa48] sm:$0xff]
    %v680 = vld [vmem:[#allocation7 + $0xa50] sm:$0xff]
    %v681 = vld [vmem:[#allocation7 + $0xa58] sm:$0xff]
    %v682 = vld [vmem:[#allocation7 + $0xa60] sm:$0xff]
    %v683 = vld [vmem:[#allocation7 + $0xa68] sm:$0xff]
    %v684 = vld [vmem:[#allocation7 + $0xa70] sm:$0xff]
    %v685 = vld [vmem:[#allocation7 + $0xa78] sm:$0xff]
    %v686 = vld [vmem:[#allocation7 + $0xa80] sm:$0xff]
    %v687 = vld [vmem:[#allocation7 + $0xa88] sm:$0xff]
    %v688 = vld [vmem:[#allocation7 + $0xa90] sm:$0xff]
    %v689 = vld [vmem:[#allocation7 + $0xa98] sm:$0xff]
    %v690 = vld [vmem:[#allocation7 + $0xaa0] sm:$0xff]
    %v691 = vld [vmem:[#allocation7 + $0xaa8] sm:$0xff]
    %v692 = vld [vmem:[#allocation7 + $0xab0] sm:$0xff]
    %v693 = vld [vmem:[#allocation7 + $0xab8] sm:$0xff]
    %v694 = vld [vmem:[#allocation7 + $0xac0] sm:$0xff]
    %v695 = vld [vmem:[#allocation7 + $0xac8] sm:$0xff]
    %v696 = vld [vmem:[#allocation7 + $0xad0] sm:$0xff]
    %v697 = vld [vmem:[#allocation7 + $0xad8] sm:$0xff]
    %v698 = vld [vmem:[#allocation7 + $0xae0] sm:$0xff]
    %v699 = vld [vmem:[#allocation7 + $0xae8] sm:$0xff]
    %v700 = vld [vmem:[#allocation7 + $0xaf0] sm:$0xff]
    %v701 = vld [vmem:[#allocation7 + $0xaf8] sm:$0xff]
    %v702 = vld [vmem:[#allocation7 + $0xb00] sm:$0xff]
    %v703 = vld [vmem:[#allocation7 + $0xb08] sm:$0xff]
    %v704 = vld [vmem:[#allocation7 + $0xb10] sm:$0xff]
    %v705 = vld [vmem:[#allocation7 + $0xb18] sm:$0xff]
    %v706 = vld [vmem:[#allocation7 + $0xb20] sm:$0xff]
    %v707 = vld [vmem:[#allocation7 + $0xb28] sm:$0xff]
    %v708 = vld [vmem:[#allocation7 + $0xb30] sm:$0xff]
    %v709 = vld [vmem:[#allocation7 + $0xb38] sm:$0xff]
    %v710 = vld [vmem:[#allocation7 + $0xb40] sm:$0xff]
    %v711 = vld [vmem:[#allocation7 + $0xb48] sm:$0xff]
    %v712 = vld [vmem:[#allocation7 + $0xb50] sm:$0xff]
    %v713 = vld [vmem:[#allocation7 + $0xb58] sm:$0xff]
    %v714 = vld [vmem:[#allocation7 + $0xb60] sm:$0xff]
    %v715 = vld [vmem:[#allocation7 + $0xb68] sm:$0xff]
    %v716 = vld [vmem:[#allocation7 + $0xb70] sm:$0xff]
    %v717 = vld [vmem:[#allocation7 + $0xb78] sm:$0xff]
    %v718 = vld [vmem:[#allocation7 + $0xb80] sm:$0xff]
    %v719 = vld [vmem:[#allocation7 + $0xb88] sm:$0xff]
    %v720 = vld [vmem:[#allocation7 + $0xb90] sm:$0xff]
    %v721 = vld [vmem:[#allocation7 + $0xb98] sm:$0xff]
    %v722 = vld [vmem:[#allocation7 + $0xba0] sm:$0xff]
    %v723 = vld [vmem:[#allocation7 + $0xba8] sm:$0xff]
    %v724 = vld [vmem:[#allocation7 + $0xbb0] sm:$0xff]
    %v725 = vld [vmem:[#allocation7 + $0xbb8] sm:$0xff]
    %v726 = vld [vmem:[#allocation7 + $0xbc0] sm:$0xff]
    %v727 = vld [vmem:[#allocation7 + $0xbc8] sm:$0xff]
    %v728 = vld [vmem:[#allocation7 + $0xbd0] sm:$0xff]
    %v729 = vld [vmem:[#allocation7 + $0xbd8] sm:$0xff]
    %v730 = vld [vmem:[#allocation7 + $0xbe0] sm:$0xff]
    %v731 = vld [vmem:[#allocation7 + $0xbe8] sm:$0xff]
    %v732 = vld [vmem:[#allocation7 + $0xbf0] sm:$0xff]
    %v733 = vld [vmem:[#allocation7 + $0xbf8] sm:$0xff]
    %v734 = vld [vmem:[#allocation7 + $0xc00] sm:$0xff]
    %v735 = vld [vmem:[#allocation7 + $0xc08] sm:$0xff]
    %v736 = vld [vmem:[#allocation7 + $0xc10] sm:$0xff]
    %v737 = vld [vmem:[#allocation7 + $0xc18] sm:$0xff]
    %v738 = vld [vmem:[#allocation7 + $0xc20] sm:$0xff]
    %v739 = vld [vmem:[#allocation7 + $0xc28] sm:$0xff]
    %v740 = vld [vmem:[#allocation7 + $0xc30] sm:$0xff]
    %v741 = vld [vmem:[#allocation7 + $0xc38] sm:$0xff]
    %v742 = vld [vmem:[#allocation7 + $0xc40] sm:$0xff]
    %v743 = vld [vmem:[#allocation7 + $0xc48] sm:$0xff]
    %v744 = vld [vmem:[#allocation7 + $0xc50] sm:$0xff]
    %v745 = vld [vmem:[#allocation7 + $0xc58] sm:$0xff]
    %v746 = vld [vmem:[#allocation7 + $0xc60] sm:$0xff]
    %v747 = vld [vmem:[#allocation7 + $0xc68] sm:$0xff]
    %v748 = vld [vmem:[#allocation7 + $0xc70] sm:$0xff]
    %v749 = vld [vmem:[#allocation7 + $0xc78] sm:$0xff]
    %v750 = vld [vmem:[#allocation7 + $0xc80] sm:$0xff]
    %v751 = vld [vmem:[#allocation7 + $0xc88] sm:$0xff]
    %v752 = vld [vmem:[#allocation7 + $0xc90] sm:$0xff]
    %v753 = vld [vmem:[#allocation7 + $0xc98] sm:$0xff]
    %v754 = vld [vmem:[#allocation7 + $0xca0] sm:$0xff]
    %v755 = vld [vmem:[#allocation7 + $0xca8] sm:$0xff]
    %v756 = vld [vmem:[#allocation7 + $0xcb0] sm:$0xff]
    %v757 = vld [vmem:[#allocation7 + $0xcb8] sm:$0xff]
    %v758 = vld [vmem:[#allocation7 + $0xcc0] sm:$0xff]
    %v759 = vld [vmem:[#allocation7 + $0xcc8] sm:$0xff]
    %v760 = vld [vmem:[#allocation7 + $0xcd0] sm:$0xff]
    %v761 = vld [vmem:[#allocation7 + $0xcd8] sm:$0xff]
    %v762 = vld [vmem:[#allocation7 + $0xce0] sm:$0xff]
    %v763 = vld [vmem:[#allocation7 + $0xce8] sm:$0xff]
    %v764 = vld [vmem:[#allocation7 + $0xcf0] sm:$0xff]
    %v765 = vld [vmem:[#allocation7 + $0xcf8] sm:$0xff]
    %v766 = vld [vmem:[#allocation7 + $0xd00] sm:$0xff]
    %v767 = vld [vmem:[#allocation7 + $0xd08] sm:$0xff]
    %v768 = vld [vmem:[#allocation7 + $0xd10] sm:$0xff]
    %v769 = vld [vmem:[#allocation7 + $0xd18] sm:$0xff]
    %v770 = vld [vmem:[#allocation7 + $0xd20] sm:$0xff]
    %v771 = vld [vmem:[#allocation7 + $0xd28] sm:$0xff]
    %v772 = vld [vmem:[#allocation7 + $0xd30] sm:$0xff]
    %v773 = vld [vmem:[#allocation7 + $0xd38] sm:$0xff]
    %v774 = vld [vmem:[#allocation7 + $0xd40] sm:$0xff]
    %v775 = vld [vmem:[#allocation7 + $0xd48] sm:$0xff]
    %v776 = vld [vmem:[#allocation7 + $0xd50] sm:$0xff]
    %v777 = vld [vmem:[#allocation7 + $0xd58] sm:$0xff]
    %v778 = vld [vmem:[#allocation7 + $0xd60] sm:$0xff]
    %v779 = vld [vmem:[#allocation7 + $0xd68] sm:$0xff]
    %v780 = vld [vmem:[#allocation7 + $0xd70] sm:$0xff]
    %v781 = vld [vmem:[#allocation7 + $0xd78] sm:$0xff]
    %v782 = vld [vmem:[#allocation7 + $0xd80] sm:$0xff]
    %v783 = vld [vmem:[#allocation7 + $0xd88] sm:$0xff]
    %v784 = vld [vmem:[#allocation7 + $0xd90] sm:$0xff]
    %v785 = vld [vmem:[#allocation7 + $0xd98] sm:$0xff]
    %v786 = vld [vmem:[#allocation7 + $0xda0] sm:$0xff]
    %v787 = vld [vmem:[#allocation7 + $0xda8] sm:$0xff]
    %v788 = vld [vmem:[#allocation7 + $0xdb0] sm:$0xff]
    %v789 = vld [vmem:[#allocation7 + $0xdb8] sm:$0xff]
    %v790 = vld [vmem:[#allocation7 + $0xdc0] sm:$0xff]
    %v791 = vld [vmem:[#allocation7 + $0xdc8] sm:$0xff]
    %v792 = vld [vmem:[#allocation7 + $0xdd0] sm:$0xff]
    %v793 = vld [vmem:[#allocation7 + $0xdd8] sm:$0xff]
    %v794 = vld [vmem:[#allocation7 + $0xde0] sm:$0xff]
    %v795 = vld [vmem:[#allocation7 + $0xde8] sm:$0xff]
    %v796 = vld [vmem:[#allocation7 + $0xdf0] sm:$0xff]
    %v797 = vld [vmem:[#allocation7 + $0xdf8] sm:$0xff]
    %v798 = vld [vmem:[#allocation7 + $0xe00] sm:$0xff]
    %v799 = vld [vmem:[#allocation7 + $0xe08] sm:$0xff]
    %v800 = vld [vmem:[#allocation7 + $0xe10] sm:$0xff]
    %v801 = vld [vmem:[#allocation7 + $0xe18] sm:$0xff]
    %v802 = vld [vmem:[#allocation7 + $0xe20] sm:$0xff]
    %v803 = vld [vmem:[#allocation7 + $0xe28] sm:$0xff]
    %v804 = vld [vmem:[#allocation7 + $0xe30] sm:$0xff]
    %v805 = vld [vmem:[#allocation7 + $0xe38] sm:$0xff]
    %v806 = vld [vmem:[#allocation7 + $0xe40] sm:$0xff]
    %v807 = vld [vmem:[#allocation7 + $0xe48] sm:$0xff]
    %v808 = vld [vmem:[#allocation7 + $0xe50] sm:$0xff]
    %v809 = vld [vmem:[#allocation7 + $0xe58] sm:$0xff]
    %v810 = vld [vmem:[#allocation7 + $0xe60] sm:$0xff]
    %v811 = vld [vmem:[#allocation7 + $0xe68] sm:$0xff]
    %v812 = vld [vmem:[#allocation7 + $0xe70] sm:$0xff]
    %v813 = vld [vmem:[#allocation7 + $0xe78] sm:$0xff]
    %v814 = vld [vmem:[#allocation7 + $0xe80] sm:$0xff]
    %v815 = vld [vmem:[#allocation7 + $0xe88] sm:$0xff]
    %v816 = vld [vmem:[#allocation7 + $0xe90] sm:$0xff]
    %v817 = vld [vmem:[#allocation7 + $0xe98] sm:$0xff]
    %v818 = vld [vmem:[#allocation7 + $0xea0] sm:$0xff]
    %v819 = vld [vmem:[#allocation7 + $0xea8] sm:$0xff]
    %v820 = vld [vmem:[#allocation7 + $0xeb0] sm:$0xff]
    %v821 = vld [vmem:[#allocation7 + $0xeb8] sm:$0xff]
    %v822 = vld [vmem:[#allocation7 + $0xec0] sm:$0xff]
    %v823 = vld [vmem:[#allocation7 + $0xec8] sm:$0xff]
    %v824 = vld [vmem:[#allocation7 + $0xed0] sm:$0xff]
    %v825 = vld [vmem:[#allocation7 + $0xed8] sm:$0xff]
    %v826 = vld [vmem:[#allocation7 + $0xee0] sm:$0xff]
    %v827 = vld [vmem:[#allocation7 + $0xee8] sm:$0xff]
    %v828 = vld [vmem:[#allocation7 + $0xef0] sm:$0xff]
    %v829 = vld [vmem:[#allocation7 + $0xef8] sm:$0xff]
    %v830 = vld [vmem:[#allocation7 + $0xf00] sm:$0xff]
    %v831 = vld [vmem:[#allocation7 + $0xf08] sm:$0xff]
    %v832 = vld [vmem:[#allocation7 + $0xf10] sm:$0xff]
    %v833 = vld [vmem:[#allocation7 + $0xf18] sm:$0xff]
    %v834 = vld [vmem:[#allocation7 + $0xf20] sm:$0xff]
    %v835 = vld [vmem:[#allocation7 + $0xf28] sm:$0xff]
    %v836 = vld [vmem:[#allocation7 + $0xf30] sm:$0xff]
    %v837 = vld [vmem:[#allocation7 + $0xf38] sm:$0xff]
    %v838 = vld [vmem:[#allocation7 + $0xf40] sm:$0xff]
    %v839 = vld [vmem:[#allocation7 + $0xf48] sm:$0xff]
    %v840 = vld [vmem:[#allocation7 + $0xf50] sm:$0xff]
    %v841 = vld [vmem:[#allocation7 + $0xf58] sm:$0xff]
    %v842 = vld [vmem:[#allocation7 + $0xf60] sm:$0xff]
    %v843 = vld [vmem:[#allocation7 + $0xf68] sm:$0xff]
    %v844 = vld [vmem:[#allocation7 + $0xf70] sm:$0xff]
    %v845 = vld [vmem:[#allocation7 + $0xf78] sm:$0xff]
    %v846 = vld [vmem:[#allocation7 + $0xf80] sm:$0xff]
    %v847 = vld [vmem:[#allocation7 + $0xf88] sm:$0xff]
    %v848 = vld [vmem:[#allocation7 + $0xf90] sm:$0xff]
    %v849 = vld [vmem:[#allocation7 + $0xf98] sm:$0xff]
    %v850 = vld [vmem:[#allocation7 + $0xfa0] sm:$0xff]
    %v851 = vld [vmem:[#allocation7 + $0xfa8] sm:$0xff]
    %v852 = vld [vmem:[#allocation7 + $0xfb0] sm:$0xff]
    %v853 = vld [vmem:[#allocation7 + $0xfb8] sm:$0xff]
    %v854 = vld [vmem:[#allocation7 + $0xfc0] sm:$0xff]
    %v855 = vld [vmem:[#allocation7 + $0xfc8] sm:$0xff]
    %v856 = vld [vmem:[#allocation7 + $0xfd0] sm:$0xff]
    %v857 = vld [vmem:[#allocation7 + $0xfd8] sm:$0xff]
    %v858 = vld [vmem:[#allocation7 + $0xfe0] sm:$0xff]
    %v859 = vld [vmem:[#allocation7 + $0xfe8] sm:$0xff]
    %v860 = vld [vmem:[#allocation7 + $0xff0] sm:$0xff]
    %v861 = vld [vmem:[#allocation7 + $0xff8] sm:$0xff]
    %v862 = vld [vmem:[#allocation8] sm:$0xff]
    %v864 = vlaneseq
    %v865 = vshrl.u32 %v864, 7
    %v866 = vsub.s32 0, %v865
    %v867 = vrot.slane %v862, %v866
    %v868 = vlaneseq
    %v869 = vshrl.u32 %v868, 7
    %v870 = vsub.s32 1, %v869
    %v871 = vrot.slane %v862, %v870
    %v872 = vlaneseq
    %v873 = vshrl.u32 %v872, 7
    %v874 = vsub.s32 2, %v873
    %v875 = vrot.slane %v862, %v874
    %v876 = vlaneseq
    %v877 = vshrl.u32 %v876, 7
    %v878 = vsub.s32 3, %v877
    %v879 = vrot.slane %v862, %v878
    %v880 = vlaneseq
    %v881 = vshrl.u32 %v880, 7
    %v882 = vsub.s32 4, %v881
    %v883 = vrot.slane %v862, %v882
    %v884 = vlaneseq
    %v885 = vshrl.u32 %v884, 7
    %v886 = vsub.s32 5, %v885
    %v887 = vrot.slane %v862, %v886
    %v888 = vlaneseq
    %v889 = vshrl.u32 %v888, 7
    %v890 = vsub.s32 6, %v889
    %v891 = vrot.slane %v862, %v890
    %v892 = vlaneseq
    %v893 = vshrl.u32 %v892, 7
    %v894 = vsub.s32 7, %v893
    %v895 = vrot.slane %v862, %v894
    %v1416 = vunpack.c.l.b16 %v350
    %v1417 = vunpack.c.h.b16 %v350
    %v1418 = vunpack.c.l.b16 %v351
    %v1419 = vunpack.c.h.b16 %v351
    %v1420 = vunpack.c.l.b16 %v352
    %v1421 = vunpack.c.h.b16 %v352
    %v1422 = vunpack.c.l.b16 %v353
    %v1423 = vunpack.c.h.b16 %v353
    %v1424 = vunpack.c.l.b16 %v354
    %v1425 = vunpack.c.h.b16 %v354
    %v1426 = vunpack.c.l.b16 %v355
    %v1427 = vunpack.c.h.b16 %v355
    %v1428 = vunpack.c.l.b16 %v356
    %v1429 = vunpack.c.h.b16 %v356
    %v1430 = vunpack.c.l.b16 %v357
    %v1431 = vunpack.c.h.b16 %v357
    %v1432 = vunpack.c.l.b16 %v358
    %v1433 = vunpack.c.h.b16 %v358
    %v1434 = vunpack.c.l.b16 %v359
    %v1435 = vunpack.c.h.b16 %v359
    %v1436 = vunpack.c.l.b16 %v360
    %v1437 = vunpack.c.h.b16 %v360
    %v1438 = vunpack.c.l.b16 %v361
    %v1439 = vunpack.c.h.b16 %v361
    %v1440 = vunpack.c.l.b16 %v362
    %v1441 = vunpack.c.h.b16 %v362
    %v1442 = vunpack.c.l.b16 %v363
    %v1443 = vunpack.c.h.b16 %v363
    %v1444 = vunpack.c.l.b16 %v364
    %v1445 = vunpack.c.h.b16 %v364
    %v1446 = vunpack.c.l.b16 %v365
    %v1447 = vunpack.c.h.b16 %v365
    %v1448 = vunpack.c.l.b16 %v366
    %v1449 = vunpack.c.h.b16 %v366
    %v1450 = vunpack.c.l.b16 %v367
    %v1451 = vunpack.c.h.b16 %v367
    %v1452 = vunpack.c.l.b16 %v368
    %v1453 = vunpack.c.h.b16 %v368
    %v1454 = vunpack.c.l.b16 %v369
    %v1455 = vunpack.c.h.b16 %v369
    %v1456 = vunpack.c.l.b16 %v370
    %v1457 = vunpack.c.h.b16 %v370
    %v1458 = vunpack.c.l.b16 %v371
    %v1459 = vunpack.c.h.b16 %v371
    %v1460 = vunpack.c.l.b16 %v372
    %v1461 = vunpack.c.h.b16 %v372
    %v1462 = vunpack.c.l.b16 %v373
    %v1463 = vunpack.c.h.b16 %v373
    %v1464 = vunpack.c.l.b16 %v374
    %v1465 = vunpack.c.h.b16 %v374
    %v1466 = vunpack.c.l.b16 %v375
    %v1467 = vunpack.c.h.b16 %v375
    %v1468 = vunpack.c.l.b16 %v376
    %v1469 = vunpack.c.h.b16 %v376
    %v1470 = vunpack.c.l.b16 %v377
    %v1471 = vunpack.c.h.b16 %v377
    %v1472 = vunpack.c.l.b16 %v378
    %v1473 = vunpack.c.h.b16 %v378
    %v1474 = vunpack.c.l.b16 %v379
    %v1475 = vunpack.c.h.b16 %v379
    %v1476 = vunpack.c.l.b16 %v380
    %v1477 = vunpack.c.h.b16 %v380
    %v1478 = vunpack.c.l.b16 %v381
    %v1479 = vunpack.c.h.b16 %v381
    %v1480 = vunpack.c.l.b16 %v382
    %v1481 = vunpack.c.h.b16 %v382
    %v1482 = vunpack.c.l.b16 %v383
    %v1483 = vunpack.c.h.b16 %v383
    %v1484 = vunpack.c.l.b16 %v384
    %v1485 = vunpack.c.h.b16 %v384
    %v1486 = vunpack.c.l.b16 %v385
    %v1487 = vunpack.c.h.b16 %v385
    %v1488 = vunpack.c.l.b16 %v386
    %v1489 = vunpack.c.h.b16 %v386
    %v1490 = vunpack.c.l.b16 %v387
    %v1491 = vunpack.c.h.b16 %v387
    %v1492 = vunpack.c.l.b16 %v388
    %v1493 = vunpack.c.h.b16 %v388
    %v1494 = vunpack.c.l.b16 %v389
    %v1495 = vunpack.c.h.b16 %v389
    %v1496 = vunpack.c.l.b16 %v390
    %v1497 = vunpack.c.h.b16 %v390
    %v1498 = vunpack.c.l.b16 %v391
    %v1499 = vunpack.c.h.b16 %v391
    %v1500 = vunpack.c.l.b16 %v392
    %v1501 = vunpack.c.h.b16 %v392
    %v1502 = vunpack.c.l.b16 %v393
    %v1503 = vunpack.c.h.b16 %v393
    %v1504 = vunpack.c.l.b16 %v394
    %v1505 = vunpack.c.h.b16 %v394
    %v1506 = vunpack.c.l.b16 %v395
    %v1507 = vunpack.c.h.b16 %v395
    %v1508 = vunpack.c.l.b16 %v396
    %v1509 = vunpack.c.h.b16 %v396
    %v1510 = vunpack.c.l.b16 %v397
    %v1511 = vunpack.c.h.b16 %v397
    %v1512 = vunpack.c.l.b16 %v398
    %v1513 = vunpack.c.h.b16 %v398
    %v1514 = vunpack.c.l.b16 %v399
    %v1515 = vunpack.c.h.b16 %v399
    %v1516 = vunpack.c.l.b16 %v400
    %v1517 = vunpack.c.h.b16 %v400
    %v1518 = vunpack.c.l.b16 %v401
    %v1519 = vunpack.c.h.b16 %v401
    %v1520 = vunpack.c.l.b16 %v402
    %v1521 = vunpack.c.h.b16 %v402
    %v1522 = vunpack.c.l.b16 %v403
    %v1523 = vunpack.c.h.b16 %v403
    %v1524 = vunpack.c.l.b16 %v404
    %v1525 = vunpack.c.h.b16 %v404
    %v1526 = vunpack.c.l.b16 %v405
    %v1527 = vunpack.c.h.b16 %v405
    %v1528 = vunpack.c.l.b16 %v406
    %v1529 = vunpack.c.h.b16 %v406
    %v1530 = vunpack.c.l.b16 %v407
    %v1531 = vunpack.c.h.b16 %v407
    %v1532 = vunpack.c.l.b16 %v408
    %v1533 = vunpack.c.h.b16 %v408
    %v1534 = vunpack.c.l.b16 %v409
    %v1535 = vunpack.c.h.b16 %v409
    %v1536 = vunpack.c.l.b16 %v410
    %v1537 = vunpack.c.h.b16 %v410
    %v1538 = vunpack.c.l.b16 %v411
    %v1539 = vunpack.c.h.b16 %v411
    %v1540 = vunpack.c.l.b16 %v412
    %v1541 = vunpack.c.h.b16 %v412
    %v1542 = vunpack.c.l.b16 %v413
    %v1543 = vunpack.c.h.b16 %v413
    %v1544 = vunpack.c.l.b16 %v414
    %v1545 = vunpack.c.h.b16 %v414
    %v1546 = vunpack.c.l.b16 %v415
    %v1547 = vunpack.c.h.b16 %v415
    %v1548 = vunpack.c.l.b16 %v416
    %v1549 = vunpack.c.h.b16 %v416
    %v1550 = vunpack.c.l.b16 %v417
    %v1551 = vunpack.c.h.b16 %v417
    %v1552 = vunpack.c.l.b16 %v418
    %v1553 = vunpack.c.h.b16 %v418
    %v1554 = vunpack.c.l.b16 %v419
    %v1555 = vunpack.c.h.b16 %v419
    %v1556 = vunpack.c.l.b16 %v420
    %v1557 = vunpack.c.h.b16 %v420
    %v1558 = vunpack.c.l.b16 %v421
    %v1559 = vunpack.c.h.b16 %v421
    %v1560 = vunpack.c.l.b16 %v422
    %v1561 = vunpack.c.h.b16 %v422
    %v1562 = vunpack.c.l.b16 %v423
    %v1563 = vunpack.c.h.b16 %v423
    %v1564 = vunpack.c.l.b16 %v424
    %v1565 = vunpack.c.h.b16 %v424
    %v1566 = vunpack.c.l.b16 %v425
    %v1567 = vunpack.c.h.b16 %v425
    %v1568 = vunpack.c.l.b16 %v426
    %v1569 = vunpack.c.h.b16 %v426
    %v1570 = vunpack.c.l.b16 %v427
    %v1571 = vunpack.c.h.b16 %v427
    %v1572 = vunpack.c.l.b16 %v428
    %v1573 = vunpack.c.h.b16 %v428
    %v1574 = vunpack.c.l.b16 %v429
    %v1575 = vunpack.c.h.b16 %v429
    %v1576 = vunpack.c.l.b16 %v430
    %v1577 = vunpack.c.h.b16 %v430
    %v1578 = vunpack.c.l.b16 %v431
    %v1579 = vunpack.c.h.b16 %v431
    %v1580 = vunpack.c.l.b16 %v432
    %v1581 = vunpack.c.h.b16 %v432
    %v1582 = vunpack.c.l.b16 %v433
    %v1583 = vunpack.c.h.b16 %v433
    %v1584 = vunpack.c.l.b16 %v434
    %v1585 = vunpack.c.h.b16 %v434
    %v1586 = vunpack.c.l.b16 %v435
    %v1587 = vunpack.c.h.b16 %v435
    %v1588 = vunpack.c.l.b16 %v436
    %v1589 = vunpack.c.h.b16 %v436
    %v1590 = vunpack.c.l.b16 %v437
    %v1591 = vunpack.c.h.b16 %v437
    %v1592 = vunpack.c.l.b16 %v438
    %v1593 = vunpack.c.h.b16 %v438
    %v1594 = vunpack.c.l.b16 %v439
    %v1595 = vunpack.c.h.b16 %v439
    %v1596 = vunpack.c.l.b16 %v440
    %v1597 = vunpack.c.h.b16 %v440
    %v1598 = vunpack.c.l.b16 %v441
    %v1599 = vunpack.c.h.b16 %v441
    %v1600 = vunpack.c.l.b16 %v442
    %v1601 = vunpack.c.h.b16 %v442
    %v1602 = vunpack.c.l.b16 %v443
    %v1603 = vunpack.c.h.b16 %v443
    %v1604 = vunpack.c.l.b16 %v444
    %v1605 = vunpack.c.h.b16 %v444
    %v1606 = vunpack.c.l.b16 %v445
    %v1607 = vunpack.c.h.b16 %v445
    %v1608 = vunpack.c.l.b16 %v446
    %v1609 = vunpack.c.h.b16 %v446
    %v1610 = vunpack.c.l.b16 %v447
    %v1611 = vunpack.c.h.b16 %v447
    %v1612 = vunpack.c.l.b16 %v448
    %v1613 = vunpack.c.h.b16 %v448
    %v1614 = vunpack.c.l.b16 %v449
    %v1615 = vunpack.c.h.b16 %v449
    %v1616 = vunpack.c.l.b16 %v450
    %v1617 = vunpack.c.h.b16 %v450
    %v1618 = vunpack.c.l.b16 %v451
    %v1619 = vunpack.c.h.b16 %v451
    %v1620 = vunpack.c.l.b16 %v452
    %v1621 = vunpack.c.h.b16 %v452
    %v1622 = vunpack.c.l.b16 %v453
    %v1623 = vunpack.c.h.b16 %v453
    %v1624 = vunpack.c.l.b16 %v454
    %v1625 = vunpack.c.h.b16 %v454
    %v1626 = vunpack.c.l.b16 %v455
    %v1627 = vunpack.c.h.b16 %v455
    %v1628 = vunpack.c.l.b16 %v456
    %v1629 = vunpack.c.h.b16 %v456
    %v1630 = vunpack.c.l.b16 %v457
    %v1631 = vunpack.c.h.b16 %v457
    %v1632 = vunpack.c.l.b16 %v458
    %v1633 = vunpack.c.h.b16 %v458
    %v1634 = vunpack.c.l.b16 %v459
    %v1635 = vunpack.c.h.b16 %v459
    %v1636 = vunpack.c.l.b16 %v460
    %v1637 = vunpack.c.h.b16 %v460
    %v1638 = vunpack.c.l.b16 %v461
    %v1639 = vunpack.c.h.b16 %v461
    %v1640 = vunpack.c.l.b16 %v462
    %v1641 = vunpack.c.h.b16 %v462
    %v1642 = vunpack.c.l.b16 %v463
    %v1643 = vunpack.c.h.b16 %v463
    %v1644 = vunpack.c.l.b16 %v464
    %v1645 = vunpack.c.h.b16 %v464
    %v1646 = vunpack.c.l.b16 %v465
    %v1647 = vunpack.c.h.b16 %v465
    %v1648 = vunpack.c.l.b16 %v466
    %v1649 = vunpack.c.h.b16 %v466
    %v1650 = vunpack.c.l.b16 %v467
    %v1651 = vunpack.c.h.b16 %v467
    %v1652 = vunpack.c.l.b16 %v468
    %v1653 = vunpack.c.h.b16 %v468
    %v1654 = vunpack.c.l.b16 %v469
    %v1655 = vunpack.c.h.b16 %v469
    %v1656 = vunpack.c.l.b16 %v470
    %v1657 = vunpack.c.h.b16 %v470
    %v1658 = vunpack.c.l.b16 %v471
    %v1659 = vunpack.c.h.b16 %v471
    %v1660 = vunpack.c.l.b16 %v472
    %v1661 = vunpack.c.h.b16 %v472
    %v1662 = vunpack.c.l.b16 %v473
    %v1663 = vunpack.c.h.b16 %v473
    %v1664 = vunpack.c.l.b16 %v474
    %v1665 = vunpack.c.h.b16 %v474
    %v1666 = vunpack.c.l.b16 %v475
    %v1667 = vunpack.c.h.b16 %v475
    %v1668 = vunpack.c.l.b16 %v476
    %v1669 = vunpack.c.h.b16 %v476
    %v1670 = vunpack.c.l.b16 %v477
    %v1671 = vunpack.c.h.b16 %v477
    %v1672 = vunpack.c.l.b16 %v478
    %v1673 = vunpack.c.h.b16 %v478
    %v1674 = vunpack.c.l.b16 %v479
    %v1675 = vunpack.c.h.b16 %v479
    %v1676 = vunpack.c.l.b16 %v480
    %v1677 = vunpack.c.h.b16 %v480
    %v1678 = vunpack.c.l.b16 %v481
    %v1679 = vunpack.c.h.b16 %v481
    %v1680 = vunpack.c.l.b16 %v482
    %v1681 = vunpack.c.h.b16 %v482
    %v1682 = vunpack.c.l.b16 %v483
    %v1683 = vunpack.c.h.b16 %v483
    %v1684 = vunpack.c.l.b16 %v484
    %v1685 = vunpack.c.h.b16 %v484
    %v1686 = vunpack.c.l.b16 %v485
    %v1687 = vunpack.c.h.b16 %v485
    %v1688 = vunpack.c.l.b16 %v486
    %v1689 = vunpack.c.h.b16 %v486
    %v1690 = vunpack.c.l.b16 %v487
    %v1691 = vunpack.c.h.b16 %v487
    %v1692 = vunpack.c.l.b16 %v488
    %v1693 = vunpack.c.h.b16 %v488
    %v1694 = vunpack.c.l.b16 %v489
    %v1695 = vunpack.c.h.b16 %v489
    %v1696 = vunpack.c.l.b16 %v490
    %v1697 = vunpack.c.h.b16 %v490
    %v1698 = vunpack.c.l.b16 %v491
    %v1699 = vunpack.c.h.b16 %v491
    %v1700 = vunpack.c.l.b16 %v492
    %v1701 = vunpack.c.h.b16 %v492
    %v1702 = vunpack.c.l.b16 %v493
    %v1703 = vunpack.c.h.b16 %v493
    %v1704 = vunpack.c.l.b16 %v494
    %v1705 = vunpack.c.h.b16 %v494
    %v1706 = vunpack.c.l.b16 %v495
    %v1707 = vunpack.c.h.b16 %v495
    %v1708 = vunpack.c.l.b16 %v496
    %v1709 = vunpack.c.h.b16 %v496
    %v1710 = vunpack.c.l.b16 %v497
    %v1711 = vunpack.c.h.b16 %v497
    %v1712 = vunpack.c.l.b16 %v498
    %v1713 = vunpack.c.h.b16 %v498
    %v1714 = vunpack.c.l.b16 %v499
    %v1715 = vunpack.c.h.b16 %v499
    %v1716 = vunpack.c.l.b16 %v500
    %v1717 = vunpack.c.h.b16 %v500
    %v1718 = vunpack.c.l.b16 %v501
    %v1719 = vunpack.c.h.b16 %v501
    %v1720 = vunpack.c.l.b16 %v502
    %v1721 = vunpack.c.h.b16 %v502
    %v1722 = vunpack.c.l.b16 %v503
    %v1723 = vunpack.c.h.b16 %v503
    %v1724 = vunpack.c.l.b16 %v504
    %v1725 = vunpack.c.h.b16 %v504
    %v1726 = vunpack.c.l.b16 %v505
    %v1727 = vunpack.c.h.b16 %v505
    %v1728 = vunpack.c.l.b16 %v506
    %v1729 = vunpack.c.h.b16 %v506
    %v1730 = vunpack.c.l.b16 %v507
    %v1731 = vunpack.c.h.b16 %v507
    %v1732 = vunpack.c.l.b16 %v508
    %v1733 = vunpack.c.h.b16 %v508
    %v1734 = vunpack.c.l.b16 %v509
    %v1735 = vunpack.c.h.b16 %v509
    %v1736 = vunpack.c.l.b16 %v510
    %v1737 = vunpack.c.h.b16 %v510
    %v1738 = vunpack.c.l.b16 %v511
    %v1739 = vunpack.c.h.b16 %v511
    %v1740 = vunpack.c.l.b16 %v512
    %v1741 = vunpack.c.h.b16 %v512
    %v1742 = vunpack.c.l.b16 %v513
    %v1743 = vunpack.c.h.b16 %v513
    %v1744 = vunpack.c.l.b16 %v514
    %v1745 = vunpack.c.h.b16 %v514
    %v1746 = vunpack.c.l.b16 %v515
    %v1747 = vunpack.c.h.b16 %v515
    %v1748 = vunpack.c.l.b16 %v516
    %v1749 = vunpack.c.h.b16 %v516
    %v1750 = vunpack.c.l.b16 %v517
    %v1751 = vunpack.c.h.b16 %v517
    %v1752 = vunpack.c.l.b16 %v518
    %v1753 = vunpack.c.h.b16 %v518
    %v1754 = vunpack.c.l.b16 %v519
    %v1755 = vunpack.c.h.b16 %v519
    %v1756 = vunpack.c.l.b16 %v520
    %v1757 = vunpack.c.h.b16 %v520
    %v1758 = vunpack.c.l.b16 %v521
    %v1759 = vunpack.c.h.b16 %v521
    %v1760 = vunpack.c.l.b16 %v522
    %v1761 = vunpack.c.h.b16 %v522
    %v1762 = vunpack.c.l.b16 %v523
    %v1763 = vunpack.c.h.b16 %v523
    %v1764 = vunpack.c.l.b16 %v524
    %v1765 = vunpack.c.h.b16 %v524
    %v1766 = vunpack.c.l.b16 %v525
    %v1767 = vunpack.c.h.b16 %v525
    %v1768 = vunpack.c.l.b16 %v526
    %v1769 = vunpack.c.h.b16 %v526
    %v1770 = vunpack.c.l.b16 %v527
    %v1771 = vunpack.c.h.b16 %v527
    %v1772 = vunpack.c.l.b16 %v528
    %v1773 = vunpack.c.h.b16 %v528
    %v1774 = vunpack.c.l.b16 %v529
    %v1775 = vunpack.c.h.b16 %v529
    %v1776 = vunpack.c.l.b16 %v530
    %v1777 = vunpack.c.h.b16 %v530
    %v1778 = vunpack.c.l.b16 %v531
    %v1779 = vunpack.c.h.b16 %v531
    %v1780 = vunpack.c.l.b16 %v532
    %v1781 = vunpack.c.h.b16 %v532
    %v1782 = vunpack.c.l.b16 %v533
    %v1783 = vunpack.c.h.b16 %v533
    %v1784 = vunpack.c.l.b16 %v534
    %v1785 = vunpack.c.h.b16 %v534
    %v1786 = vunpack.c.l.b16 %v535
    %v1787 = vunpack.c.h.b16 %v535
    %v1788 = vunpack.c.l.b16 %v536
    %v1789 = vunpack.c.h.b16 %v536
    %v1790 = vunpack.c.l.b16 %v537
    %v1791 = vunpack.c.h.b16 %v537
    %v1792 = vunpack.c.l.b16 %v538
    %v1793 = vunpack.c.h.b16 %v538
    %v1794 = vunpack.c.l.b16 %v539
    %v1795 = vunpack.c.h.b16 %v539
    %v1796 = vunpack.c.l.b16 %v540
    %v1797 = vunpack.c.h.b16 %v540
    %v1798 = vunpack.c.l.b16 %v541
    %v1799 = vunpack.c.h.b16 %v541
    %v1800 = vunpack.c.l.b16 %v542
    %v1801 = vunpack.c.h.b16 %v542
    %v1802 = vunpack.c.l.b16 %v543
    %v1803 = vunpack.c.h.b16 %v543
    %v1804 = vunpack.c.l.b16 %v544
    %v1805 = vunpack.c.h.b16 %v544
    %v1806 = vunpack.c.l.b16 %v545
    %v1807 = vunpack.c.h.b16 %v545
    %v1808 = vunpack.c.l.b16 %v546
    %v1809 = vunpack.c.h.b16 %v546
    %v1810 = vunpack.c.l.b16 %v547
    %v1811 = vunpack.c.h.b16 %v547
    %v1812 = vunpack.c.l.b16 %v548
    %v1813 = vunpack.c.h.b16 %v548
    %v1814 = vunpack.c.l.b16 %v549
    %v1815 = vunpack.c.h.b16 %v549
    %v1816 = vunpack.c.l.b16 %v550
    %v1817 = vunpack.c.h.b16 %v550
    %v1818 = vunpack.c.l.b16 %v551
    %v1819 = vunpack.c.h.b16 %v551
    %v1820 = vunpack.c.l.b16 %v552
    %v1821 = vunpack.c.h.b16 %v552
    %v1822 = vunpack.c.l.b16 %v553
    %v1823 = vunpack.c.h.b16 %v553
    %v1824 = vunpack.c.l.b16 %v554
    %v1825 = vunpack.c.h.b16 %v554
    %v1826 = vunpack.c.l.b16 %v555
    %v1827 = vunpack.c.h.b16 %v555
    %v1828 = vunpack.c.l.b16 %v556
    %v1829 = vunpack.c.h.b16 %v556
    %v1830 = vunpack.c.l.b16 %v557
    %v1831 = vunpack.c.h.b16 %v557
    %v1832 = vunpack.c.l.b16 %v558
    %v1833 = vunpack.c.h.b16 %v558
    %v1834 = vunpack.c.l.b16 %v559
    %v1835 = vunpack.c.h.b16 %v559
    %v1836 = vunpack.c.l.b16 %v560
    %v1837 = vunpack.c.h.b16 %v560
    %v1838 = vunpack.c.l.b16 %v561
    %v1839 = vunpack.c.h.b16 %v561
    %v1840 = vunpack.c.l.b16 %v562
    %v1841 = vunpack.c.h.b16 %v562
    %v1842 = vunpack.c.l.b16 %v563
    %v1843 = vunpack.c.h.b16 %v563
    %v1844 = vunpack.c.l.b16 %v564
    %v1845 = vunpack.c.h.b16 %v564
    %v1846 = vunpack.c.l.b16 %v565
    %v1847 = vunpack.c.h.b16 %v565
    %v1848 = vunpack.c.l.b16 %v566
    %v1849 = vunpack.c.h.b16 %v566
    %v1850 = vunpack.c.l.b16 %v567
    %v1851 = vunpack.c.h.b16 %v567
    %v1852 = vunpack.c.l.b16 %v568
    %v1853 = vunpack.c.h.b16 %v568
    %v1854 = vunpack.c.l.b16 %v569
    %v1855 = vunpack.c.h.b16 %v569
    %v1856 = vunpack.c.l.b16 %v570
    %v1857 = vunpack.c.h.b16 %v570
    %v1858 = vunpack.c.l.b16 %v571
    %v1859 = vunpack.c.h.b16 %v571
    %v1860 = vunpack.c.l.b16 %v572
    %v1861 = vunpack.c.h.b16 %v572
    %v1862 = vunpack.c.l.b16 %v573
    %v1863 = vunpack.c.h.b16 %v573
    %v1864 = vunpack.c.l.b16 %v574
    %v1865 = vunpack.c.h.b16 %v574
    %v1866 = vunpack.c.l.b16 %v575
    %v1867 = vunpack.c.h.b16 %v575
    %v1868 = vunpack.c.l.b16 %v576
    %v1869 = vunpack.c.h.b16 %v576
    %v1870 = vunpack.c.l.b16 %v577
    %v1871 = vunpack.c.h.b16 %v577
    %v1872 = vunpack.c.l.b16 %v578
    %v1873 = vunpack.c.h.b16 %v578
    %v1874 = vunpack.c.l.b16 %v579
    %v1875 = vunpack.c.h.b16 %v579
    %v1876 = vunpack.c.l.b16 %v580
    %v1877 = vunpack.c.h.b16 %v580
    %v1878 = vunpack.c.l.b16 %v581
    %v1879 = vunpack.c.h.b16 %v581
    %v1880 = vunpack.c.l.b16 %v582
    %v1881 = vunpack.c.h.b16 %v582
    %v1882 = vunpack.c.l.b16 %v583
    %v1883 = vunpack.c.h.b16 %v583
    %v1884 = vunpack.c.l.b16 %v584
    %v1885 = vunpack.c.h.b16 %v584
    %v1886 = vunpack.c.l.b16 %v585
    %v1887 = vunpack.c.h.b16 %v585
    %v1888 = vunpack.c.l.b16 %v586
    %v1889 = vunpack.c.h.b16 %v586
    %v1890 = vunpack.c.l.b16 %v587
    %v1891 = vunpack.c.h.b16 %v587
    %v1892 = vunpack.c.l.b16 %v588
    %v1893 = vunpack.c.h.b16 %v588
    %v1894 = vunpack.c.l.b16 %v589
    %v1895 = vunpack.c.h.b16 %v589
    %v1896 = vunpack.c.l.b16 %v590
    %v1897 = vunpack.c.h.b16 %v590
    %v1898 = vunpack.c.l.b16 %v591
    %v1899 = vunpack.c.h.b16 %v591
    %v1900 = vunpack.c.l.b16 %v592
    %v1901 = vunpack.c.h.b16 %v592
    %v1902 = vunpack.c.l.b16 %v593
    %v1903 = vunpack.c.h.b16 %v593
    %v1904 = vunpack.c.l.b16 %v594
    %v1905 = vunpack.c.h.b16 %v594
    %v1906 = vunpack.c.l.b16 %v595
    %v1907 = vunpack.c.h.b16 %v595
    %v1908 = vunpack.c.l.b16 %v596
    %v1909 = vunpack.c.h.b16 %v596
    %v1910 = vunpack.c.l.b16 %v597
    %v1911 = vunpack.c.h.b16 %v597
    %v1912 = vunpack.c.l.b16 %v598
    %v1913 = vunpack.c.h.b16 %v598
    %v1914 = vunpack.c.l.b16 %v599
    %v1915 = vunpack.c.h.b16 %v599
    %v1916 = vunpack.c.l.b16 %v600
    %v1917 = vunpack.c.h.b16 %v600
    %v1918 = vunpack.c.l.b16 %v601
    %v1919 = vunpack.c.h.b16 %v601
    %v1920 = vunpack.c.l.b16 %v602
    %v1921 = vunpack.c.h.b16 %v602
    %v1922 = vunpack.c.l.b16 %v603
    %v1923 = vunpack.c.h.b16 %v603
    %v1924 = vunpack.c.l.b16 %v604
    %v1925 = vunpack.c.h.b16 %v604
    %v1926 = vunpack.c.l.b16 %v605
    %v1927 = vunpack.c.h.b16 %v605
    %v1928 = vunpack.c.l.b16 %v606
    %v1929 = vunpack.c.h.b16 %v606
    %v1930 = vunpack.c.l.b16 %v607
    %v1931 = vunpack.c.h.b16 %v607
    %v1932 = vunpack.c.l.b16 %v608
    %v1933 = vunpack.c.h.b16 %v608
    %v1934 = vunpack.c.l.b16 %v609
    %v1935 = vunpack.c.h.b16 %v609
    %v1936 = vunpack.c.l.b16 %v610
    %v1937 = vunpack.c.h.b16 %v610
    %v1938 = vunpack.c.l.b16 %v611
    %v1939 = vunpack.c.h.b16 %v611
    %v1940 = vunpack.c.l.b16 %v612
    %v1941 = vunpack.c.h.b16 %v612
    %v1942 = vunpack.c.l.b16 %v613
    %v1943 = vunpack.c.h.b16 %v613
    %v1944 = vunpack.c.l.b16 %v614
    %v1945 = vunpack.c.h.b16 %v614
    %v1946 = vunpack.c.l.b16 %v615
    %v1947 = vunpack.c.h.b16 %v615
    %v1948 = vunpack.c.l.b16 %v616
    %v1949 = vunpack.c.h.b16 %v616
    %v1950 = vunpack.c.l.b16 %v617
    %v1951 = vunpack.c.h.b16 %v617
    %v1952 = vunpack.c.l.b16 %v618
    %v1953 = vunpack.c.h.b16 %v618
    %v1954 = vunpack.c.l.b16 %v619
    %v1955 = vunpack.c.h.b16 %v619
    %v1956 = vunpack.c.l.b16 %v620
    %v1957 = vunpack.c.h.b16 %v620
    %v1958 = vunpack.c.l.b16 %v621
    %v1959 = vunpack.c.h.b16 %v621
    %v1960 = vunpack.c.l.b16 %v622
    %v1961 = vunpack.c.h.b16 %v622
    %v1962 = vunpack.c.l.b16 %v623
    %v1963 = vunpack.c.h.b16 %v623
    %v1964 = vunpack.c.l.b16 %v624
    %v1965 = vunpack.c.h.b16 %v624
    %v1966 = vunpack.c.l.b16 %v625
    %v1967 = vunpack.c.h.b16 %v625
    %v1968 = vunpack.c.l.b16 %v626
    %v1969 = vunpack.c.h.b16 %v626
    %v1970 = vunpack.c.l.b16 %v627
    %v1971 = vunpack.c.h.b16 %v627
    %v1972 = vunpack.c.l.b16 %v628
    %v1973 = vunpack.c.h.b16 %v628
    %v1974 = vunpack.c.l.b16 %v629
    %v1975 = vunpack.c.h.b16 %v629
    %v1976 = vunpack.c.l.b16 %v630
    %v1977 = vunpack.c.h.b16 %v630
    %v1978 = vunpack.c.l.b16 %v631
    %v1979 = vunpack.c.h.b16 %v631
    %v1980 = vunpack.c.l.b16 %v632
    %v1981 = vunpack.c.h.b16 %v632
    %v1982 = vunpack.c.l.b16 %v633
    %v1983 = vunpack.c.h.b16 %v633
    %v1984 = vunpack.c.l.b16 %v634
    %v1985 = vunpack.c.h.b16 %v634
    %v1986 = vunpack.c.l.b16 %v635
    %v1987 = vunpack.c.h.b16 %v635
    %v1988 = vunpack.c.l.b16 %v636
    %v1989 = vunpack.c.h.b16 %v636
    %v1990 = vunpack.c.l.b16 %v637
    %v1991 = vunpack.c.h.b16 %v637
    %v1992 = vunpack.c.l.b16 %v638
    %v1993 = vunpack.c.h.b16 %v638
    %v1994 = vunpack.c.l.b16 %v639
    %v1995 = vunpack.c.h.b16 %v639
    %v1996 = vunpack.c.l.b16 %v640
    %v1997 = vunpack.c.h.b16 %v640
    %v1998 = vunpack.c.l.b16 %v641
    %v1999 = vunpack.c.h.b16 %v641
    %v2000 = vunpack.c.l.b16 %v642
    %v2001 = vunpack.c.h.b16 %v642
    %v2002 = vunpack.c.l.b16 %v643
    %v2003 = vunpack.c.h.b16 %v643
    %v2004 = vunpack.c.l.b16 %v644
    %v2005 = vunpack.c.h.b16 %v644
    %v2006 = vunpack.c.l.b16 %v645
    %v2007 = vunpack.c.h.b16 %v645
    %v2008 = vunpack.c.l.b16 %v646
    %v2009 = vunpack.c.h.b16 %v646
    %v2010 = vunpack.c.l.b16 %v647
    %v2011 = vunpack.c.h.b16 %v647
    %v2012 = vunpack.c.l.b16 %v648
    %v2013 = vunpack.c.h.b16 %v648
    %v2014 = vunpack.c.l.b16 %v649
    %v2015 = vunpack.c.h.b16 %v649
    %v2016 = vunpack.c.l.b16 %v650
    %v2017 = vunpack.c.h.b16 %v650
    %v2018 = vunpack.c.l.b16 %v651
    %v2019 = vunpack.c.h.b16 %v651
    %v2020 = vunpack.c.l.b16 %v652
    %v2021 = vunpack.c.h.b16 %v652
    %v2022 = vunpack.c.l.b16 %v653
    %v2023 = vunpack.c.h.b16 %v653
    %v2024 = vunpack.c.l.b16 %v654
    %v2025 = vunpack.c.h.b16 %v654
    %v2026 = vunpack.c.l.b16 %v655
    %v2027 = vunpack.c.h.b16 %v655
    %v2028 = vunpack.c.l.b16 %v656
    %v2029 = vunpack.c.h.b16 %v656
    %v2030 = vunpack.c.l.b16 %v657
    %v2031 = vunpack.c.h.b16 %v657
    %v2032 = vunpack.c.l.b16 %v658
    %v2033 = vunpack.c.h.b16 %v658
    %v2034 = vunpack.c.l.b16 %v659
    %v2035 = vunpack.c.h.b16 %v659
    %v2036 = vunpack.c.l.b16 %v660
    %v2037 = vunpack.c.h.b16 %v660
    %v2038 = vunpack.c.l.b16 %v661
    %v2039 = vunpack.c.h.b16 %v661
    %v2040 = vunpack.c.l.b16 %v662
    %v2041 = vunpack.c.h.b16 %v662
    %v2042 = vunpack.c.l.b16 %v663
    %v2043 = vunpack.c.h.b16 %v663
    %v2044 = vunpack.c.l.b16 %v664
    %v2045 = vunpack.c.h.b16 %v664
    %v2046 = vunpack.c.l.b16 %v665
    %v2047 = vunpack.c.h.b16 %v665
    %v2048 = vunpack.c.l.b16 %v666
    %v2049 = vunpack.c.h.b16 %v666
    %v2050 = vunpack.c.l.b16 %v667
    %v2051 = vunpack.c.h.b16 %v667
    %v2052 = vunpack.c.l.b16 %v668
    %v2053 = vunpack.c.h.b16 %v668
    %v2054 = vunpack.c.l.b16 %v669
    %v2055 = vunpack.c.h.b16 %v669
    %v2056 = vunpack.c.l.b16 %v670
    %v2057 = vunpack.c.h.b16 %v670
    %v2058 = vunpack.c.l.b16 %v671
    %v2059 = vunpack.c.h.b16 %v671
    %v2060 = vunpack.c.l.b16 %v672
    %v2061 = vunpack.c.h.b16 %v672
    %v2062 = vunpack.c.l.b16 %v673
    %v2063 = vunpack.c.h.b16 %v673
    %v2064 = vunpack.c.l.b16 %v674
    %v2065 = vunpack.c.h.b16 %v674
    %v2066 = vunpack.c.l.b16 %v675
    %v2067 = vunpack.c.h.b16 %v675
    %v2068 = vunpack.c.l.b16 %v676
    %v2069 = vunpack.c.h.b16 %v676
    %v2070 = vunpack.c.l.b16 %v677
    %v2071 = vunpack.c.h.b16 %v677
    %v2072 = vunpack.c.l.b16 %v678
    %v2073 = vunpack.c.h.b16 %v678
    %v2074 = vunpack.c.l.b16 %v679
    %v2075 = vunpack.c.h.b16 %v679
    %v2076 = vunpack.c.l.b16 %v680
    %v2077 = vunpack.c.h.b16 %v680
    %v2078 = vunpack.c.l.b16 %v681
    %v2079 = vunpack.c.h.b16 %v681
    %v2080 = vunpack.c.l.b16 %v682
    %v2081 = vunpack.c.h.b16 %v682
    %v2082 = vunpack.c.l.b16 %v683
    %v2083 = vunpack.c.h.b16 %v683
    %v2084 = vunpack.c.l.b16 %v684
    %v2085 = vunpack.c.h.b16 %v684
    %v2086 = vunpack.c.l.b16 %v685
    %v2087 = vunpack.c.h.b16 %v685
    %v2088 = vunpack.c.l.b16 %v686
    %v2089 = vunpack.c.h.b16 %v686
    %v2090 = vunpack.c.l.b16 %v687
    %v2091 = vunpack.c.h.b16 %v687
    %v2092 = vunpack.c.l.b16 %v688
    %v2093 = vunpack.c.h.b16 %v688
    %v2094 = vunpack.c.l.b16 %v689
    %v2095 = vunpack.c.h.b16 %v689
    %v2096 = vunpack.c.l.b16 %v690
    %v2097 = vunpack.c.h.b16 %v690
    %v2098 = vunpack.c.l.b16 %v691
    %v2099 = vunpack.c.h.b16 %v691
    %v2100 = vunpack.c.l.b16 %v692
    %v2101 = vunpack.c.h.b16 %v692
    %v2102 = vunpack.c.l.b16 %v693
    %v2103 = vunpack.c.h.b16 %v693
    %v2104 = vunpack.c.l.b16 %v694
    %v2105 = vunpack.c.h.b16 %v694
    %v2106 = vunpack.c.l.b16 %v695
    %v2107 = vunpack.c.h.b16 %v695
    %v2108 = vunpack.c.l.b16 %v696
    %v2109 = vunpack.c.h.b16 %v696
    %v2110 = vunpack.c.l.b16 %v697
    %v2111 = vunpack.c.h.b16 %v697
    %v2112 = vunpack.c.l.b16 %v698
    %v2113 = vunpack.c.h.b16 %v698
    %v2114 = vunpack.c.l.b16 %v699
    %v2115 = vunpack.c.h.b16 %v699
    %v2116 = vunpack.c.l.b16 %v700
    %v2117 = vunpack.c.h.b16 %v700
    %v2118 = vunpack.c.l.b16 %v701
    %v2119 = vunpack.c.h.b16 %v701
    %v2120 = vunpack.c.l.b16 %v702
    %v2121 = vunpack.c.h.b16 %v702
    %v2122 = vunpack.c.l.b16 %v703
    %v2123 = vunpack.c.h.b16 %v703
    %v2124 = vunpack.c.l.b16 %v704
    %v2125 = vunpack.c.h.b16 %v704
    %v2126 = vunpack.c.l.b16 %v705
    %v2127 = vunpack.c.h.b16 %v705
    %v2128 = vunpack.c.l.b16 %v706
    %v2129 = vunpack.c.h.b16 %v706
    %v2130 = vunpack.c.l.b16 %v707
    %v2131 = vunpack.c.h.b16 %v707
    %v2132 = vunpack.c.l.b16 %v708
    %v2133 = vunpack.c.h.b16 %v708
    %v2134 = vunpack.c.l.b16 %v709
    %v2135 = vunpack.c.h.b16 %v709
    %v2136 = vunpack.c.l.b16 %v710
    %v2137 = vunpack.c.h.b16 %v710
    %v2138 = vunpack.c.l.b16 %v711
    %v2139 = vunpack.c.h.b16 %v711
    %v2140 = vunpack.c.l.b16 %v712
    %v2141 = vunpack.c.h.b16 %v712
    %v2142 = vunpack.c.l.b16 %v713
    %v2143 = vunpack.c.h.b16 %v713
    %v2144 = vunpack.c.l.b16 %v714
    %v2145 = vunpack.c.h.b16 %v714
    %v2146 = vunpack.c.l.b16 %v715
    %v2147 = vunpack.c.h.b16 %v715
    %v2148 = vunpack.c.l.b16 %v716
    %v2149 = vunpack.c.h.b16 %v716
    %v2150 = vunpack.c.l.b16 %v717
    %v2151 = vunpack.c.h.b16 %v717
    %v2152 = vunpack.c.l.b16 %v718
    %v2153 = vunpack.c.h.b16 %v718
    %v2154 = vunpack.c.l.b16 %v719
    %v2155 = vunpack.c.h.b16 %v719
    %v2156 = vunpack.c.l.b16 %v720
    %v2157 = vunpack.c.h.b16 %v720
    %v2158 = vunpack.c.l.b16 %v721
    %v2159 = vunpack.c.h.b16 %v721
    %v2160 = vunpack.c.l.b16 %v722
    %v2161 = vunpack.c.h.b16 %v722
    %v2162 = vunpack.c.l.b16 %v723
    %v2163 = vunpack.c.h.b16 %v723
    %v2164 = vunpack.c.l.b16 %v724
    %v2165 = vunpack.c.h.b16 %v724
    %v2166 = vunpack.c.l.b16 %v725
    %v2167 = vunpack.c.h.b16 %v725
    %v2168 = vunpack.c.l.b16 %v726
    %v2169 = vunpack.c.h.b16 %v726
    %v2170 = vunpack.c.l.b16 %v727
    %v2171 = vunpack.c.h.b16 %v727
    %v2172 = vunpack.c.l.b16 %v728
    %v2173 = vunpack.c.h.b16 %v728
    %v2174 = vunpack.c.l.b16 %v729
    %v2175 = vunpack.c.h.b16 %v729
    %v2176 = vunpack.c.l.b16 %v730
    %v2177 = vunpack.c.h.b16 %v730
    %v2178 = vunpack.c.l.b16 %v731
    %v2179 = vunpack.c.h.b16 %v731
    %v2180 = vunpack.c.l.b16 %v732
    %v2181 = vunpack.c.h.b16 %v732
    %v2182 = vunpack.c.l.b16 %v733
    %v2183 = vunpack.c.h.b16 %v733
    %v2184 = vunpack.c.l.b16 %v734
    %v2185 = vunpack.c.h.b16 %v734
    %v2186 = vunpack.c.l.b16 %v735
    %v2187 = vunpack.c.h.b16 %v735
    %v2188 = vunpack.c.l.b16 %v736
    %v2189 = vunpack.c.h.b16 %v736
    %v2190 = vunpack.c.l.b16 %v737
    %v2191 = vunpack.c.h.b16 %v737
    %v2192 = vunpack.c.l.b16 %v738
    %v2193 = vunpack.c.h.b16 %v738
    %v2194 = vunpack.c.l.b16 %v739
    %v2195 = vunpack.c.h.b16 %v739
    %v2196 = vunpack.c.l.b16 %v740
    %v2197 = vunpack.c.h.b16 %v740
    %v2198 = vunpack.c.l.b16 %v741
    %v2199 = vunpack.c.h.b16 %v741
    %v2200 = vunpack.c.l.b16 %v742
    %v2201 = vunpack.c.h.b16 %v742
    %v2202 = vunpack.c.l.b16 %v743
    %v2203 = vunpack.c.h.b16 %v743
    %v2204 = vunpack.c.l.b16 %v744
    %v2205 = vunpack.c.h.b16 %v744
    %v2206 = vunpack.c.l.b16 %v745
    %v2207 = vunpack.c.h.b16 %v745
    %v2208 = vunpack.c.l.b16 %v746
    %v2209 = vunpack.c.h.b16 %v746
    %v2210 = vunpack.c.l.b16 %v747
    %v2211 = vunpack.c.h.b16 %v747
    %v2212 = vunpack.c.l.b16 %v748
    %v2213 = vunpack.c.h.b16 %v748
    %v2214 = vunpack.c.l.b16 %v749
    %v2215 = vunpack.c.h.b16 %v749
    %v2216 = vunpack.c.l.b16 %v750
    %v2217 = vunpack.c.h.b16 %v750
    %v2218 = vunpack.c.l.b16 %v751
    %v2219 = vunpack.c.h.b16 %v751
    %v2220 = vunpack.c.l.b16 %v752
    %v2221 = vunpack.c.h.b16 %v752
    %v2222 = vunpack.c.l.b16 %v753
    %v2223 = vunpack.c.h.b16 %v753
    %v2224 = vunpack.c.l.b16 %v754
    %v2225 = vunpack.c.h.b16 %v754
    %v2226 = vunpack.c.l.b16 %v755
    %v2227 = vunpack.c.h.b16 %v755
    %v2228 = vunpack.c.l.b16 %v756
    %v2229 = vunpack.c.h.b16 %v756
    %v2230 = vunpack.c.l.b16 %v757
    %v2231 = vunpack.c.h.b16 %v757
    %v2232 = vunpack.c.l.b16 %v758
    %v2233 = vunpack.c.h.b16 %v758
    %v2234 = vunpack.c.l.b16 %v759
    %v2235 = vunpack.c.h.b16 %v759
    %v2236 = vunpack.c.l.b16 %v760
    %v2237 = vunpack.c.h.b16 %v760
    %v2238 = vunpack.c.l.b16 %v761
    %v2239 = vunpack.c.h.b16 %v761
    %v2240 = vunpack.c.l.b16 %v762
    %v2241 = vunpack.c.h.b16 %v762
    %v2242 = vunpack.c.l.b16 %v763
    %v2243 = vunpack.c.h.b16 %v763
    %v2244 = vunpack.c.l.b16 %v764
    %v2245 = vunpack.c.h.b16 %v764
    %v2246 = vunpack.c.l.b16 %v765
    %v2247 = vunpack.c.h.b16 %v765
    %v2248 = vunpack.c.l.b16 %v766
    %v2249 = vunpack.c.h.b16 %v766
    %v2250 = vunpack.c.l.b16 %v767
    %v2251 = vunpack.c.h.b16 %v767
    %v2252 = vunpack.c.l.b16 %v768
    %v2253 = vunpack.c.h.b16 %v768
    %v2254 = vunpack.c.l.b16 %v769
    %v2255 = vunpack.c.h.b16 %v769
    %v2256 = vunpack.c.l.b16 %v770
    %v2257 = vunpack.c.h.b16 %v770
    %v2258 = vunpack.c.l.b16 %v771
    %v2259 = vunpack.c.h.b16 %v771
    %v2260 = vunpack.c.l.b16 %v772
    %v2261 = vunpack.c.h.b16 %v772
    %v2262 = vunpack.c.l.b16 %v773
    %v2263 = vunpack.c.h.b16 %v773
    %v2264 = vunpack.c.l.b16 %v774
    %v2265 = vunpack.c.h.b16 %v774
    %v2266 = vunpack.c.l.b16 %v775
    %v2267 = vunpack.c.h.b16 %v775
    %v2268 = vunpack.c.l.b16 %v776
    %v2269 = vunpack.c.h.b16 %v776
    %v2270 = vunpack.c.l.b16 %v777
    %v2271 = vunpack.c.h.b16 %v777
    %v2272 = vunpack.c.l.b16 %v778
    %v2273 = vunpack.c.h.b16 %v778
    %v2274 = vunpack.c.l.b16 %v779
    %v2275 = vunpack.c.h.b16 %v779
    %v2276 = vunpack.c.l.b16 %v780
    %v2277 = vunpack.c.h.b16 %v780
    %v2278 = vunpack.c.l.b16 %v781
    %v2279 = vunpack.c.h.b16 %v781
    %v2280 = vunpack.c.l.b16 %v782
    %v2281 = vunpack.c.h.b16 %v782
    %v2282 = vunpack.c.l.b16 %v783
    %v2283 = vunpack.c.h.b16 %v783
    %v2284 = vunpack.c.l.b16 %v784
    %v2285 = vunpack.c.h.b16 %v784
    %v2286 = vunpack.c.l.b16 %v785
    %v2287 = vunpack.c.h.b16 %v785
    %v2288 = vunpack.c.l.b16 %v786
    %v2289 = vunpack.c.h.b16 %v786
    %v2290 = vunpack.c.l.b16 %v787
    %v2291 = vunpack.c.h.b16 %v787
    %v2292 = vunpack.c.l.b16 %v788
    %v2293 = vunpack.c.h.b16 %v788
    %v2294 = vunpack.c.l.b16 %v789
    %v2295 = vunpack.c.h.b16 %v789
    %v2296 = vunpack.c.l.b16 %v790
    %v2297 = vunpack.c.h.b16 %v790
    %v2298 = vunpack.c.l.b16 %v791
    %v2299 = vunpack.c.h.b16 %v791
    %v2300 = vunpack.c.l.b16 %v792
    %v2301 = vunpack.c.h.b16 %v792
    %v2302 = vunpack.c.l.b16 %v793
    %v2303 = vunpack.c.h.b16 %v793
    %v2304 = vunpack.c.l.b16 %v794
    %v2305 = vunpack.c.h.b16 %v794
    %v2306 = vunpack.c.l.b16 %v795
    %v2307 = vunpack.c.h.b16 %v795
    %v2308 = vunpack.c.l.b16 %v796
    %v2309 = vunpack.c.h.b16 %v796
    %v2310 = vunpack.c.l.b16 %v797
    %v2311 = vunpack.c.h.b16 %v797
    %v2312 = vunpack.c.l.b16 %v798
    %v2313 = vunpack.c.h.b16 %v798
    %v2314 = vunpack.c.l.b16 %v799
    %v2315 = vunpack.c.h.b16 %v799
    %v2316 = vunpack.c.l.b16 %v800
    %v2317 = vunpack.c.h.b16 %v800
    %v2318 = vunpack.c.l.b16 %v801
    %v2319 = vunpack.c.h.b16 %v801
    %v2320 = vunpack.c.l.b16 %v802
    %v2321 = vunpack.c.h.b16 %v802
    %v2322 = vunpack.c.l.b16 %v803
    %v2323 = vunpack.c.h.b16 %v803
    %v2324 = vunpack.c.l.b16 %v804
    %v2325 = vunpack.c.h.b16 %v804
    %v2326 = vunpack.c.l.b16 %v805
    %v2327 = vunpack.c.h.b16 %v805
    %v2328 = vunpack.c.l.b16 %v806
    %v2329 = vunpack.c.h.b16 %v806
    %v2330 = vunpack.c.l.b16 %v807
    %v2331 = vunpack.c.h.b16 %v807
    %v2332 = vunpack.c.l.b16 %v808
    %v2333 = vunpack.c.h.b16 %v808
    %v2334 = vunpack.c.l.b16 %v809
    %v2335 = vunpack.c.h.b16 %v809
    %v2336 = vunpack.c.l.b16 %v810
    %v2337 = vunpack.c.h.b16 %v810
    %v2338 = vunpack.c.l.b16 %v811
    %v2339 = vunpack.c.h.b16 %v811
    %v2340 = vunpack.c.l.b16 %v812
    %v2341 = vunpack.c.h.b16 %v812
    %v2342 = vunpack.c.l.b16 %v813
    %v2343 = vunpack.c.h.b16 %v813
    %v2344 = vunpack.c.l.b16 %v814
    %v2345 = vunpack.c.h.b16 %v814
    %v2346 = vunpack.c.l.b16 %v815
    %v2347 = vunpack.c.h.b16 %v815
    %v2348 = vunpack.c.l.b16 %v816
    %v2349 = vunpack.c.h.b16 %v816
    %v2350 = vunpack.c.l.b16 %v817
    %v2351 = vunpack.c.h.b16 %v817
    %v2352 = vunpack.c.l.b16 %v818
    %v2353 = vunpack.c.h.b16 %v818
    %v2354 = vunpack.c.l.b16 %v819
    %v2355 = vunpack.c.h.b16 %v819
    %v2356 = vunpack.c.l.b16 %v820
    %v2357 = vunpack.c.h.b16 %v820
    %v2358 = vunpack.c.l.b16 %v821
    %v2359 = vunpack.c.h.b16 %v821
    %v2360 = vunpack.c.l.b16 %v822
    %v2361 = vunpack.c.h.b16 %v822
    %v2362 = vunpack.c.l.b16 %v823
    %v2363 = vunpack.c.h.b16 %v823
    %v2364 = vunpack.c.l.b16 %v824
    %v2365 = vunpack.c.h.b16 %v824
    %v2366 = vunpack.c.l.b16 %v825
    %v2367 = vunpack.c.h.b16 %v825
    %v2368 = vunpack.c.l.b16 %v826
    %v2369 = vunpack.c.h.b16 %v826
    %v2370 = vunpack.c.l.b16 %v827
    %v2371 = vunpack.c.h.b16 %v827
    %v2372 = vunpack.c.l.b16 %v828
    %v2373 = vunpack.c.h.b16 %v828
    %v2374 = vunpack.c.l.b16 %v829
    %v2375 = vunpack.c.h.b16 %v829
    %v2376 = vunpack.c.l.b16 %v830
    %v2377 = vunpack.c.h.b16 %v830
    %v2378 = vunpack.c.l.b16 %v831
    %v2379 = vunpack.c.h.b16 %v831
    %v2380 = vunpack.c.l.b16 %v832
    %v2381 = vunpack.c.h.b16 %v832
    %v2382 = vunpack.c.l.b16 %v833
    %v2383 = vunpack.c.h.b16 %v833
    %v2384 = vunpack.c.l.b16 %v834
    %v2385 = vunpack.c.h.b16 %v834
    %v2386 = vunpack.c.l.b16 %v835
    %v2387 = vunpack.c.h.b16 %v835
    %v2388 = vunpack.c.l.b16 %v836
    %v2389 = vunpack.c.h.b16 %v836
    %v2390 = vunpack.c.l.b16 %v837
    %v2391 = vunpack.c.h.b16 %v837
    %v2392 = vunpack.c.l.b16 %v838
    %v2393 = vunpack.c.h.b16 %v838
    %v2394 = vunpack.c.l.b16 %v839
    %v2395 = vunpack.c.h.b16 %v839
    %v2396 = vunpack.c.l.b16 %v840
    %v2397 = vunpack.c.h.b16 %v840
    %v2398 = vunpack.c.l.b16 %v841
    %v2399 = vunpack.c.h.b16 %v841
    %v2400 = vunpack.c.l.b16 %v842
    %v2401 = vunpack.c.h.b16 %v842
    %v2402 = vunpack.c.l.b16 %v843
    %v2403 = vunpack.c.h.b16 %v843
    %v2404 = vunpack.c.l.b16 %v844
    %v2405 = vunpack.c.h.b16 %v844
    %v2406 = vunpack.c.l.b16 %v845
    %v2407 = vunpack.c.h.b16 %v845
    %v2408 = vunpack.c.l.b16 %v846
    %v2409 = vunpack.c.h.b16 %v846
    %v2410 = vunpack.c.l.b16 %v847
    %v2411 = vunpack.c.h.b16 %v847
    %v2412 = vunpack.c.l.b16 %v848
    %v2413 = vunpack.c.h.b16 %v848
    %v2414 = vunpack.c.l.b16 %v849
    %v2415 = vunpack.c.h.b16 %v849
    %v2416 = vunpack.c.l.b16 %v850
    %v2417 = vunpack.c.h.b16 %v850
    %v2418 = vunpack.c.l.b16 %v851
    %v2419 = vunpack.c.h.b16 %v851
    %v2420 = vunpack.c.l.b16 %v852
    %v2421 = vunpack.c.h.b16 %v852
    %v2422 = vunpack.c.l.b16 %v853
    %v2423 = vunpack.c.h.b16 %v853
    %v2424 = vunpack.c.l.b16 %v854
    %v2425 = vunpack.c.h.b16 %v854
    %v2426 = vunpack.c.l.b16 %v855
    %v2427 = vunpack.c.h.b16 %v855
    %v2428 = vunpack.c.l.b16 %v856
    %v2429 = vunpack.c.h.b16 %v856
    %v2430 = vunpack.c.l.b16 %v857
    %v2431 = vunpack.c.h.b16 %v857
    %v2432 = vunpack.c.l.b16 %v858
    %v2433 = vunpack.c.h.b16 %v858
    %v2434 = vunpack.c.l.b16 %v859
    %v2435 = vunpack.c.h.b16 %v859
    %v2436 = vunpack.c.l.b16 %v860
    %v2437 = vunpack.c.h.b16 %v860
    %v2438 = vunpack.c.l.b16 %v861
    %v2439 = vunpack.c.h.b16 %v861
    %v2440 = vpack.c.b16 %v1424, %v1416
    %v2441 = vpack.c.b16 %v1425, %v1417
    %v2442 = vpack.c.b16 %v1426, %v1418
    %v2443 = vpack.c.b16 %v1427, %v1419
    %v2444 = vpack.c.b16 %v1428, %v1420
    %v2445 = vpack.c.b16 %v1429, %v1421
    %v2446 = vpack.c.b16 %v1430, %v1422
    %v2447 = vpack.c.b16 %v1431, %v1423
    %v2448 = vpack.c.b16 %v1440, %v1432
    %v2449 = vpack.c.b16 %v1441, %v1433
    %v2450 = vpack.c.b16 %v1442, %v1434
    %v2451 = vpack.c.b16 %v1443, %v1435
    %v2452 = vpack.c.b16 %v1444, %v1436
    %v2453 = vpack.c.b16 %v1445, %v1437
    %v2454 = vpack.c.b16 %v1446, %v1438
    %v2455 = vpack.c.b16 %v1447, %v1439
    %v2456 = vpack.c.b16 %v1456, %v1448
    %v2457 = vpack.c.b16 %v1457, %v1449
    %v2458 = vpack.c.b16 %v1458, %v1450
    %v2459 = vpack.c.b16 %v1459, %v1451
    %v2460 = vpack.c.b16 %v1460, %v1452
    %v2461 = vpack.c.b16 %v1461, %v1453
    %v2462 = vpack.c.b16 %v1462, %v1454
    %v2463 = vpack.c.b16 %v1463, %v1455
    %v2464 = vpack.c.b16 %v1472, %v1464
    %v2465 = vpack.c.b16 %v1473, %v1465
    %v2466 = vpack.c.b16 %v1474, %v1466
    %v2467 = vpack.c.b16 %v1475, %v1467
    %v2468 = vpack.c.b16 %v1476, %v1468
    %v2469 = vpack.c.b16 %v1477, %v1469
    %v2470 = vpack.c.b16 %v1478, %v1470
    %v2471 = vpack.c.b16 %v1479, %v1471
    %v2472 = vpack.c.b16 %v1488, %v1480
    %v2473 = vpack.c.b16 %v1489, %v1481
    %v2474 = vpack.c.b16 %v1490, %v1482
    %v2475 = vpack.c.b16 %v1491, %v1483
    %v2476 = vpack.c.b16 %v1492, %v1484
    %v2477 = vpack.c.b16 %v1493, %v1485
    %v2478 = vpack.c.b16 %v1494, %v1486
    %v2479 = vpack.c.b16 %v1495, %v1487
    %v2480 = vpack.c.b16 %v1504, %v1496
    %v2481 = vpack.c.b16 %v1505, %v1497
    %v2482 = vpack.c.b16 %v1506, %v1498
    %v2483 = vpack.c.b16 %v1507, %v1499
    %v2484 = vpack.c.b16 %v1508, %v1500
    %v2485 = vpack.c.b16 %v1509, %v1501
    %v2486 = vpack.c.b16 %v1510, %v1502
    %v2487 = vpack.c.b16 %v1511, %v1503
    %v2488 = vpack.c.b16 %v1520, %v1512
    %v2489 = vpack.c.b16 %v1521, %v1513
    %v2490 = vpack.c.b16 %v1522, %v1514
    %v2491 = vpack.c.b16 %v1523, %v1515
    %v2492 = vpack.c.b16 %v1524, %v1516
    %v2493 = vpack.c.b16 %v1525, %v1517
    %v2494 = vpack.c.b16 %v1526, %v1518
    %v2495 = vpack.c.b16 %v1527, %v1519
    %v2496 = vpack.c.b16 %v1536, %v1528
    %v2497 = vpack.c.b16 %v1537, %v1529
    %v2498 = vpack.c.b16 %v1538, %v1530
    %v2499 = vpack.c.b16 %v1539, %v1531
    %v2500 = vpack.c.b16 %v1540, %v1532
    %v2501 = vpack.c.b16 %v1541, %v1533
    %v2502 = vpack.c.b16 %v1542, %v1534
    %v2503 = vpack.c.b16 %v1543, %v1535
    %v2504 = vpack.c.b16 %v1552, %v1544
    %v2505 = vpack.c.b16 %v1553, %v1545
    %v2506 = vpack.c.b16 %v1554, %v1546
    %v2507 = vpack.c.b16 %v1555, %v1547
    %v2508 = vpack.c.b16 %v1556, %v1548
    %v2509 = vpack.c.b16 %v1557, %v1549
    %v2510 = vpack.c.b16 %v1558, %v1550
    %v2511 = vpack.c.b16 %v1559, %v1551
    %v2512 = vpack.c.b16 %v1568, %v1560
    %v2513 = vpack.c.b16 %v1569, %v1561
    %v2514 = vpack.c.b16 %v1570, %v1562
    %v2515 = vpack.c.b16 %v1571, %v1563
    %v2516 = vpack.c.b16 %v1572, %v1564
    %v2517 = vpack.c.b16 %v1573, %v1565
    %v2518 = vpack.c.b16 %v1574, %v1566
    %v2519 = vpack.c.b16 %v1575, %v1567
    %v2520 = vpack.c.b16 %v1584, %v1576
    %v2521 = vpack.c.b16 %v1585, %v1577
    %v2522 = vpack.c.b16 %v1586, %v1578
    %v2523 = vpack.c.b16 %v1587, %v1579
    %v2524 = vpack.c.b16 %v1588, %v1580
    %v2525 = vpack.c.b16 %v1589, %v1581
    %v2526 = vpack.c.b16 %v1590, %v1582
    %v2527 = vpack.c.b16 %v1591, %v1583
    %v2528 = vpack.c.b16 %v1600, %v1592
    %v2529 = vpack.c.b16 %v1601, %v1593
    %v2530 = vpack.c.b16 %v1602, %v1594
    %v2531 = vpack.c.b16 %v1603, %v1595
    %v2532 = vpack.c.b16 %v1604, %v1596
    %v2533 = vpack.c.b16 %v1605, %v1597
    %v2534 = vpack.c.b16 %v1606, %v1598
    %v2535 = vpack.c.b16 %v1607, %v1599
    %v2536 = vpack.c.b16 %v1616, %v1608
    %v2537 = vpack.c.b16 %v1617, %v1609
    %v2538 = vpack.c.b16 %v1618, %v1610
    %v2539 = vpack.c.b16 %v1619, %v1611
    %v2540 = vpack.c.b16 %v1620, %v1612
    %v2541 = vpack.c.b16 %v1621, %v1613
    %v2542 = vpack.c.b16 %v1622, %v1614
    %v2543 = vpack.c.b16 %v1623, %v1615
    %v2544 = vpack.c.b16 %v1632, %v1624
    %v2545 = vpack.c.b16 %v1633, %v1625
    %v2546 = vpack.c.b16 %v1634, %v1626
    %v2547 = vpack.c.b16 %v1635, %v1627
    %v2548 = vpack.c.b16 %v1636, %v1628
    %v2549 = vpack.c.b16 %v1637, %v1629
    %v2550 = vpack.c.b16 %v1638, %v1630
    %v2551 = vpack.c.b16 %v1639, %v1631
    %v2552 = vpack.c.b16 %v1648, %v1640
    %v2553 = vpack.c.b16 %v1649, %v1641
    %v2554 = vpack.c.b16 %v1650, %v1642
    %v2555 = vpack.c.b16 %v1651, %v1643
    %v2556 = vpack.c.b16 %v1652, %v1644
    %v2557 = vpack.c.b16 %v1653, %v1645
    %v2558 = vpack.c.b16 %v1654, %v1646
    %v2559 = vpack.c.b16 %v1655, %v1647
    %v2560 = vpack.c.b16 %v1664, %v1656
    %v2561 = vpack.c.b16 %v1665, %v1657
    %v2562 = vpack.c.b16 %v1666, %v1658
    %v2563 = vpack.c.b16 %v1667, %v1659
    %v2564 = vpack.c.b16 %v1668, %v1660
    %v2565 = vpack.c.b16 %v1669, %v1661
    %v2566 = vpack.c.b16 %v1670, %v1662
    %v2567 = vpack.c.b16 %v1671, %v1663
    %v2568 = vpack.c.b16 %v1680, %v1672
    %v2569 = vpack.c.b16 %v1681, %v1673
    %v2570 = vpack.c.b16 %v1682, %v1674
    %v2571 = vpack.c.b16 %v1683, %v1675
    %v2572 = vpack.c.b16 %v1684, %v1676
    %v2573 = vpack.c.b16 %v1685, %v1677
    %v2574 = vpack.c.b16 %v1686, %v1678
    %v2575 = vpack.c.b16 %v1687, %v1679
    %v2576 = vpack.c.b16 %v1696, %v1688
    %v2577 = vpack.c.b16 %v1697, %v1689
    %v2578 = vpack.c.b16 %v1698, %v1690
    %v2579 = vpack.c.b16 %v1699, %v1691
    %v2580 = vpack.c.b16 %v1700, %v1692
    %v2581 = vpack.c.b16 %v1701, %v1693
    %v2582 = vpack.c.b16 %v1702, %v1694
    %v2583 = vpack.c.b16 %v1703, %v1695
    %v2584 = vpack.c.b16 %v1712, %v1704
    %v2585 = vpack.c.b16 %v1713, %v1705
    %v2586 = vpack.c.b16 %v1714, %v1706
    %v2587 = vpack.c.b16 %v1715, %v1707
    %v2588 = vpack.c.b16 %v1716, %v1708
    %v2589 = vpack.c.b16 %v1717, %v1709
    %v2590 = vpack.c.b16 %v1718, %v1710
    %v2591 = vpack.c.b16 %v1719, %v1711
    %v2592 = vpack.c.b16 %v1728, %v1720
    %v2593 = vpack.c.b16 %v1729, %v1721
    %v2594 = vpack.c.b16 %v1730, %v1722
    %v2595 = vpack.c.b16 %v1731, %v1723
    %v2596 = vpack.c.b16 %v1732, %v1724
    %v2597 = vpack.c.b16 %v1733, %v1725
    %v2598 = vpack.c.b16 %v1734, %v1726
    %v2599 = vpack.c.b16 %v1735, %v1727
    %v2600 = vpack.c.b16 %v1744, %v1736
    %v2601 = vpack.c.b16 %v1745, %v1737
    %v2602 = vpack.c.b16 %v1746, %v1738
    %v2603 = vpack.c.b16 %v1747, %v1739
    %v2604 = vpack.c.b16 %v1748, %v1740
    %v2605 = vpack.c.b16 %v1749, %v1741
    %v2606 = vpack.c.b16 %v1750, %v1742
    %v2607 = vpack.c.b16 %v1751, %v1743
    %v2608 = vpack.c.b16 %v1760, %v1752
    %v2609 = vpack.c.b16 %v1761, %v1753
    %v2610 = vpack.c.b16 %v1762, %v1754
    %v2611 = vpack.c.b16 %v1763, %v1755
    %v2612 = vpack.c.b16 %v1764, %v1756
    %v2613 = vpack.c.b16 %v1765, %v1757
    %v2614 = vpack.c.b16 %v1766, %v1758
    %v2615 = vpack.c.b16 %v1767, %v1759
    %v2616 = vpack.c.b16 %v1776, %v1768
    %v2617 = vpack.c.b16 %v1777, %v1769
    %v2618 = vpack.c.b16 %v1778, %v1770
    %v2619 = vpack.c.b16 %v1779, %v1771
    %v2620 = vpack.c.b16 %v1780, %v1772
    %v2621 = vpack.c.b16 %v1781, %v1773
    %v2622 = vpack.c.b16 %v1782, %v1774
    %v2623 = vpack.c.b16 %v1783, %v1775
    %v2624 = vpack.c.b16 %v1792, %v1784
    %v2625 = vpack.c.b16 %v1793, %v1785
    %v2626 = vpack.c.b16 %v1794, %v1786
    %v2627 = vpack.c.b16 %v1795, %v1787
    %v2628 = vpack.c.b16 %v1796, %v1788
    %v2629 = vpack.c.b16 %v1797, %v1789
    %v2630 = vpack.c.b16 %v1798, %v1790
    %v2631 = vpack.c.b16 %v1799, %v1791
    %v2632 = vpack.c.b16 %v1808, %v1800
    %v2633 = vpack.c.b16 %v1809, %v1801
    %v2634 = vpack.c.b16 %v1810, %v1802
    %v2635 = vpack.c.b16 %v1811, %v1803
    %v2636 = vpack.c.b16 %v1812, %v1804
    %v2637 = vpack.c.b16 %v1813, %v1805
    %v2638 = vpack.c.b16 %v1814, %v1806
    %v2639 = vpack.c.b16 %v1815, %v1807
    %v2640 = vpack.c.b16 %v1824, %v1816
    %v2641 = vpack.c.b16 %v1825, %v1817
    %v2642 = vpack.c.b16 %v1826, %v1818
    %v2643 = vpack.c.b16 %v1827, %v1819
    %v2644 = vpack.c.b16 %v1828, %v1820
    %v2645 = vpack.c.b16 %v1829, %v1821
    %v2646 = vpack.c.b16 %v1830, %v1822
    %v2647 = vpack.c.b16 %v1831, %v1823
    %v2648 = vpack.c.b16 %v1840, %v1832
    %v2649 = vpack.c.b16 %v1841, %v1833
    %v2650 = vpack.c.b16 %v1842, %v1834
    %v2651 = vpack.c.b16 %v1843, %v1835
    %v2652 = vpack.c.b16 %v1844, %v1836
    %v2653 = vpack.c.b16 %v1845, %v1837
    %v2654 = vpack.c.b16 %v1846, %v1838
    %v2655 = vpack.c.b16 %v1847, %v1839
    %v2656 = vpack.c.b16 %v1856, %v1848
    %v2657 = vpack.c.b16 %v1857, %v1849
    %v2658 = vpack.c.b16 %v1858, %v1850
    %v2659 = vpack.c.b16 %v1859, %v1851
    %v2660 = vpack.c.b16 %v1860, %v1852
    %v2661 = vpack.c.b16 %v1861, %v1853
    %v2662 = vpack.c.b16 %v1862, %v1854
    %v2663 = vpack.c.b16 %v1863, %v1855
    %v2664 = vpack.c.b16 %v1872, %v1864
    %v2665 = vpack.c.b16 %v1873, %v1865
    %v2666 = vpack.c.b16 %v1874, %v1866
    %v2667 = vpack.c.b16 %v1875, %v1867
    %v2668 = vpack.c.b16 %v1876, %v1868
    %v2669 = vpack.c.b16 %v1877, %v1869
    %v2670 = vpack.c.b16 %v1878, %v1870
    %v2671 = vpack.c.b16 %v1879, %v1871
    %v2672 = vpack.c.b16 %v1888, %v1880
    %v2673 = vpack.c.b16 %v1889, %v1881
    %v2674 = vpack.c.b16 %v1890, %v1882
    %v2675 = vpack.c.b16 %v1891, %v1883
    %v2676 = vpack.c.b16 %v1892, %v1884
    %v2677 = vpack.c.b16 %v1893, %v1885
    %v2678 = vpack.c.b16 %v1894, %v1886
    %v2679 = vpack.c.b16 %v1895, %v1887
    %v2680 = vpack.c.b16 %v1904, %v1896
    %v2681 = vpack.c.b16 %v1905, %v1897
    %v2682 = vpack.c.b16 %v1906, %v1898
    %v2683 = vpack.c.b16 %v1907, %v1899
    %v2684 = vpack.c.b16 %v1908, %v1900
    %v2685 = vpack.c.b16 %v1909, %v1901
    %v2686 = vpack.c.b16 %v1910, %v1902
    %v2687 = vpack.c.b16 %v1911, %v1903
    %v2688 = vpack.c.b16 %v1920, %v1912
    %v2689 = vpack.c.b16 %v1921, %v1913
    %v2690 = vpack.c.b16 %v1922, %v1914
    %v2691 = vpack.c.b16 %v1923, %v1915
    %v2692 = vpack.c.b16 %v1924, %v1916
    %v2693 = vpack.c.b16 %v1925, %v1917
    %v2694 = vpack.c.b16 %v1926, %v1918
    %v2695 = vpack.c.b16 %v1927, %v1919
    %v2696 = vpack.c.b16 %v1936, %v1928
    %v2697 = vpack.c.b16 %v1937, %v1929
    %v2698 = vpack.c.b16 %v1938, %v1930
    %v2699 = vpack.c.b16 %v1939, %v1931
    %v2700 = vpack.c.b16 %v1940, %v1932
    %v2701 = vpack.c.b16 %v1941, %v1933
    %v2702 = vpack.c.b16 %v1942, %v1934
    %v2703 = vpack.c.b16 %v1943, %v1935
    %v2704 = vpack.c.b16 %v1952, %v1944
    %v2705 = vpack.c.b16 %v1953, %v1945
    %v2706 = vpack.c.b16 %v1954, %v1946
    %v2707 = vpack.c.b16 %v1955, %v1947
    %v2708 = vpack.c.b16 %v1956, %v1948
    %v2709 = vpack.c.b16 %v1957, %v1949
    %v2710 = vpack.c.b16 %v1958, %v1950
    %v2711 = vpack.c.b16 %v1959, %v1951
    %v2712 = vpack.c.b16 %v1968, %v1960
    %v2713 = vpack.c.b16 %v1969, %v1961
    %v2714 = vpack.c.b16 %v1970, %v1962
    %v2715 = vpack.c.b16 %v1971, %v1963
    %v2716 = vpack.c.b16 %v1972, %v1964
    %v2717 = vpack.c.b16 %v1973, %v1965
    %v2718 = vpack.c.b16 %v1974, %v1966
    %v2719 = vpack.c.b16 %v1975, %v1967
    %v2720 = vpack.c.b16 %v1984, %v1976
    %v2721 = vpack.c.b16 %v1985, %v1977
    %v2722 = vpack.c.b16 %v1986, %v1978
    %v2723 = vpack.c.b16 %v1987, %v1979
    %v2724 = vpack.c.b16 %v1988, %v1980
    %v2725 = vpack.c.b16 %v1989, %v1981
    %v2726 = vpack.c.b16 %v1990, %v1982
    %v2727 = vpack.c.b16 %v1991, %v1983
    %v2728 = vpack.c.b16 %v2000, %v1992
    %v2729 = vpack.c.b16 %v2001, %v1993
    %v2730 = vpack.c.b16 %v2002, %v1994
    %v2731 = vpack.c.b16 %v2003, %v1995
    %v2732 = vpack.c.b16 %v2004, %v1996
    %v2733 = vpack.c.b16 %v2005, %v1997
    %v2734 = vpack.c.b16 %v2006, %v1998
    %v2735 = vpack.c.b16 %v2007, %v1999
    %v2736 = vpack.c.b16 %v2016, %v2008
    %v2737 = vpack.c.b16 %v2017, %v2009
    %v2738 = vpack.c.b16 %v2018, %v2010
    %v2739 = vpack.c.b16 %v2019, %v2011
    %v2740 = vpack.c.b16 %v2020, %v2012
    %v2741 = vpack.c.b16 %v2021, %v2013
    %v2742 = vpack.c.b16 %v2022, %v2014
    %v2743 = vpack.c.b16 %v2023, %v2015
    %v2744 = vpack.c.b16 %v2032, %v2024
    %v2745 = vpack.c.b16 %v2033, %v2025
    %v2746 = vpack.c.b16 %v2034, %v2026
    %v2747 = vpack.c.b16 %v2035, %v2027
    %v2748 = vpack.c.b16 %v2036, %v2028
    %v2749 = vpack.c.b16 %v2037, %v2029
    %v2750 = vpack.c.b16 %v2038, %v2030
    %v2751 = vpack.c.b16 %v2039, %v2031
    %v2752 = vpack.c.b16 %v2048, %v2040
    %v2753 = vpack.c.b16 %v2049, %v2041
    %v2754 = vpack.c.b16 %v2050, %v2042
    %v2755 = vpack.c.b16 %v2051, %v2043
    %v2756 = vpack.c.b16 %v2052, %v2044
    %v2757 = vpack.c.b16 %v2053, %v2045
    %v2758 = vpack.c.b16 %v2054, %v2046
    %v2759 = vpack.c.b16 %v2055, %v2047
    %v2760 = vpack.c.b16 %v2064, %v2056
    %v2761 = vpack.c.b16 %v2065, %v2057
    %v2762 = vpack.c.b16 %v2066, %v2058
    %v2763 = vpack.c.b16 %v2067, %v2059
    %v2764 = vpack.c.b16 %v2068, %v2060
    %v2765 = vpack.c.b16 %v2069, %v2061
    %v2766 = vpack.c.b16 %v2070, %v2062
    %v2767 = vpack.c.b16 %v2071, %v2063
    %v2768 = vpack.c.b16 %v2080, %v2072
    %v2769 = vpack.c.b16 %v2081, %v2073
    %v2770 = vpack.c.b16 %v2082, %v2074
    %v2771 = vpack.c.b16 %v2083, %v2075
    %v2772 = vpack.c.b16 %v2084, %v2076
    %v2773 = vpack.c.b16 %v2085, %v2077
    %v2774 = vpack.c.b16 %v2086, %v2078
    %v2775 = vpack.c.b16 %v2087, %v2079
    %v2776 = vpack.c.b16 %v2096, %v2088
    %v2777 = vpack.c.b16 %v2097, %v2089
    %v2778 = vpack.c.b16 %v2098, %v2090
    %v2779 = vpack.c.b16 %v2099, %v2091
    %v2780 = vpack.c.b16 %v2100, %v2092
    %v2781 = vpack.c.b16 %v2101, %v2093
    %v2782 = vpack.c.b16 %v2102, %v2094
    %v2783 = vpack.c.b16 %v2103, %v2095
    %v2784 = vpack.c.b16 %v2112, %v2104
    %v2785 = vpack.c.b16 %v2113, %v2105
    %v2786 = vpack.c.b16 %v2114, %v2106
    %v2787 = vpack.c.b16 %v2115, %v2107
    %v2788 = vpack.c.b16 %v2116, %v2108
    %v2789 = vpack.c.b16 %v2117, %v2109
    %v2790 = vpack.c.b16 %v2118, %v2110
    %v2791 = vpack.c.b16 %v2119, %v2111
    %v2792 = vpack.c.b16 %v2128, %v2120
    %v2793 = vpack.c.b16 %v2129, %v2121
    %v2794 = vpack.c.b16 %v2130, %v2122
    %v2795 = vpack.c.b16 %v2131, %v2123
    %v2796 = vpack.c.b16 %v2132, %v2124
    %v2797 = vpack.c.b16 %v2133, %v2125
    %v2798 = vpack.c.b16 %v2134, %v2126
    %v2799 = vpack.c.b16 %v2135, %v2127
    %v2800 = vpack.c.b16 %v2144, %v2136
    %v2801 = vpack.c.b16 %v2145, %v2137
    %v2802 = vpack.c.b16 %v2146, %v2138
    %v2803 = vpack.c.b16 %v2147, %v2139
    %v2804 = vpack.c.b16 %v2148, %v2140
    %v2805 = vpack.c.b16 %v2149, %v2141
    %v2806 = vpack.c.b16 %v2150, %v2142
    %v2807 = vpack.c.b16 %v2151, %v2143
    %v2808 = vpack.c.b16 %v2160, %v2152
    %v2809 = vpack.c.b16 %v2161, %v2153
    %v2810 = vpack.c.b16 %v2162, %v2154
    %v2811 = vpack.c.b16 %v2163, %v2155
    %v2812 = vpack.c.b16 %v2164, %v2156
    %v2813 = vpack.c.b16 %v2165, %v2157
    %v2814 = vpack.c.b16 %v2166, %v2158
    %v2815 = vpack.c.b16 %v2167, %v2159
    %v2816 = vpack.c.b16 %v2176, %v2168
    %v2817 = vpack.c.b16 %v2177, %v2169
    %v2818 = vpack.c.b16 %v2178, %v2170
    %v2819 = vpack.c.b16 %v2179, %v2171
    %v2820 = vpack.c.b16 %v2180, %v2172
    %v2821 = vpack.c.b16 %v2181, %v2173
    %v2822 = vpack.c.b16 %v2182, %v2174
    %v2823 = vpack.c.b16 %v2183, %v2175
    %v2824 = vpack.c.b16 %v2192, %v2184
    %v2825 = vpack.c.b16 %v2193, %v2185
    %v2826 = vpack.c.b16 %v2194, %v2186
    %v2827 = vpack.c.b16 %v2195, %v2187
    %v2828 = vpack.c.b16 %v2196, %v2188
    %v2829 = vpack.c.b16 %v2197, %v2189
    %v2830 = vpack.c.b16 %v2198, %v2190
    %v2831 = vpack.c.b16 %v2199, %v2191
    %v2832 = vpack.c.b16 %v2208, %v2200
    %v2833 = vpack.c.b16 %v2209, %v2201
    %v2834 = vpack.c.b16 %v2210, %v2202
    %v2835 = vpack.c.b16 %v2211, %v2203
    %v2836 = vpack.c.b16 %v2212, %v2204
    %v2837 = vpack.c.b16 %v2213, %v2205
    %v2838 = vpack.c.b16 %v2214, %v2206
    %v2839 = vpack.c.b16 %v2215, %v2207
    %v2840 = vpack.c.b16 %v2224, %v2216
    %v2841 = vpack.c.b16 %v2225, %v2217
    %v2842 = vpack.c.b16 %v2226, %v2218
    %v2843 = vpack.c.b16 %v2227, %v2219
    %v2844 = vpack.c.b16 %v2228, %v2220
    %v2845 = vpack.c.b16 %v2229, %v2221
    %v2846 = vpack.c.b16 %v2230, %v2222
    %v2847 = vpack.c.b16 %v2231, %v2223
    %v2848 = vpack.c.b16 %v2240, %v2232
    %v2849 = vpack.c.b16 %v2241, %v2233
    %v2850 = vpack.c.b16 %v2242, %v2234
    %v2851 = vpack.c.b16 %v2243, %v2235
    %v2852 = vpack.c.b16 %v2244, %v2236
    %v2853 = vpack.c.b16 %v2245, %v2237
    %v2854 = vpack.c.b16 %v2246, %v2238
    %v2855 = vpack.c.b16 %v2247, %v2239
    %v2856 = vpack.c.b16 %v2256, %v2248
    %v2857 = vpack.c.b16 %v2257, %v2249
    %v2858 = vpack.c.b16 %v2258, %v2250
    %v2859 = vpack.c.b16 %v2259, %v2251
    %v2860 = vpack.c.b16 %v2260, %v2252
    %v2861 = vpack.c.b16 %v2261, %v2253
    %v2862 = vpack.c.b16 %v2262, %v2254
    %v2863 = vpack.c.b16 %v2263, %v2255
    %v2864 = vpack.c.b16 %v2272, %v2264
    %v2865 = vpack.c.b16 %v2273, %v2265
    %v2866 = vpack.c.b16 %v2274, %v2266
    %v2867 = vpack.c.b16 %v2275, %v2267
    %v2868 = vpack.c.b16 %v2276, %v2268
    %v2869 = vpack.c.b16 %v2277, %v2269
    %v2870 = vpack.c.b16 %v2278, %v2270
    %v2871 = vpack.c.b16 %v2279, %v2271
    %v2872 = vpack.c.b16 %v2288, %v2280
    %v2873 = vpack.c.b16 %v2289, %v2281
    %v2874 = vpack.c.b16 %v2290, %v2282
    %v2875 = vpack.c.b16 %v2291, %v2283
    %v2876 = vpack.c.b16 %v2292, %v2284
    %v2877 = vpack.c.b16 %v2293, %v2285
    %v2878 = vpack.c.b16 %v2294, %v2286
    %v2879 = vpack.c.b16 %v2295, %v2287
    %v2880 = vpack.c.b16 %v2304, %v2296
    %v2881 = vpack.c.b16 %v2305, %v2297
    %v2882 = vpack.c.b16 %v2306, %v2298
    %v2883 = vpack.c.b16 %v2307, %v2299
    %v2884 = vpack.c.b16 %v2308, %v2300
    %v2885 = vpack.c.b16 %v2309, %v2301
    %v2886 = vpack.c.b16 %v2310, %v2302
    %v2887 = vpack.c.b16 %v2311, %v2303
    %v2888 = vpack.c.b16 %v2320, %v2312
    %v2889 = vpack.c.b16 %v2321, %v2313
    %v2890 = vpack.c.b16 %v2322, %v2314
    %v2891 = vpack.c.b16 %v2323, %v2315
    %v2892 = vpack.c.b16 %v2324, %v2316
    %v2893 = vpack.c.b16 %v2325, %v2317
    %v2894 = vpack.c.b16 %v2326, %v2318
    %v2895 = vpack.c.b16 %v2327, %v2319
    %v2896 = vpack.c.b16 %v2336, %v2328
    %v2897 = vpack.c.b16 %v2337, %v2329
    %v2898 = vpack.c.b16 %v2338, %v2330
    %v2899 = vpack.c.b16 %v2339, %v2331
    %v2900 = vpack.c.b16 %v2340, %v2332
    %v2901 = vpack.c.b16 %v2341, %v2333
    %v2902 = vpack.c.b16 %v2342, %v2334
    %v2903 = vpack.c.b16 %v2343, %v2335
    %v2904 = vpack.c.b16 %v2352, %v2344
    %v2905 = vpack.c.b16 %v2353, %v2345
    %v2906 = vpack.c.b16 %v2354, %v2346
    %v2907 = vpack.c.b16 %v2355, %v2347
    %v2908 = vpack.c.b16 %v2356, %v2348
    %v2909 = vpack.c.b16 %v2357, %v2349
    %v2910 = vpack.c.b16 %v2358, %v2350
    %v2911 = vpack.c.b16 %v2359, %v2351
    %v2912 = vpack.c.b16 %v2368, %v2360
    %v2913 = vpack.c.b16 %v2369, %v2361
    %v2914 = vpack.c.b16 %v2370, %v2362
    %v2915 = vpack.c.b16 %v2371, %v2363
    %v2916 = vpack.c.b16 %v2372, %v2364
    %v2917 = vpack.c.b16 %v2373, %v2365
    %v2918 = vpack.c.b16 %v2374, %v2366
    %v2919 = vpack.c.b16 %v2375, %v2367
    %v2920 = vpack.c.b16 %v2384, %v2376
    %v2921 = vpack.c.b16 %v2385, %v2377
    %v2922 = vpack.c.b16 %v2386, %v2378
    %v2923 = vpack.c.b16 %v2387, %v2379
    %v2924 = vpack.c.b16 %v2388, %v2380
    %v2925 = vpack.c.b16 %v2389, %v2381
    %v2926 = vpack.c.b16 %v2390, %v2382
    %v2927 = vpack.c.b16 %v2391, %v2383
    %v2928 = vpack.c.b16 %v2400, %v2392
    %v2929 = vpack.c.b16 %v2401, %v2393
    %v2930 = vpack.c.b16 %v2402, %v2394
    %v2931 = vpack.c.b16 %v2403, %v2395
    %v2932 = vpack.c.b16 %v2404, %v2396
    %v2933 = vpack.c.b16 %v2405, %v2397
    %v2934 = vpack.c.b16 %v2406, %v2398
    %v2935 = vpack.c.b16 %v2407, %v2399
    %v2936 = vpack.c.b16 %v2416, %v2408
    %v2937 = vpack.c.b16 %v2417, %v2409
    %v2938 = vpack.c.b16 %v2418, %v2410
    %v2939 = vpack.c.b16 %v2419, %v2411
    %v2940 = vpack.c.b16 %v2420, %v2412
    %v2941 = vpack.c.b16 %v2421, %v2413
    %v2942 = vpack.c.b16 %v2422, %v2414
    %v2943 = vpack.c.b16 %v2423, %v2415
    %v2944 = vpack.c.b16 %v2432, %v2424
    %v2945 = vpack.c.b16 %v2433, %v2425
    %v2946 = vpack.c.b16 %v2434, %v2426
    %v2947 = vpack.c.b16 %v2435, %v2427
    %v2948 = vpack.c.b16 %v2436, %v2428
    %v2949 = vpack.c.b16 %v2437, %v2429
    %v2950 = vpack.c.b16 %v2438, %v2430
    %v2951 = vpack.c.b16 %v2439, %v2431
    %3464 = vmatprep.subr.bf16.mxu0 %v2441
    %3465 = vmatpush1.bf16.msra.mxu0 %v2440
    %3466 = vmatprep.subr.bf16.mxu0 %v2449
    %3467 = vmatpush1.bf16.msra.mxu0 %v2448
    %3468 = vmatprep.subr.bf16.mxu0 %v2457
    %3469 = vmatpush1.bf16.msra.mxu0 %v2456
    %3470 = vmatprep.subr.bf16.mxu0 %v2465
    %3471 = vmatpush1.bf16.msra.mxu0 %v2464
    %3472 = vmatprep.subr.bf16.mxu0 %v2473
    %3473 = vmatpush1.bf16.msra.mxu0 %v2472
    %3474 = vmatprep.subr.bf16.mxu0 %v2481
    %3475 = vmatpush1.bf16.msra.mxu0 %v2480
    %3476 = vmatprep.subr.bf16.mxu0 %v2489
    %3477 = vmatpush1.bf16.msra.mxu0 %v2488
    %3478 = vmatprep.subr.bf16.mxu0 %v2497
    %3479 = vmatpush1.bf16.msra.mxu0 %v2496
    %3480 = vmatprep.subr.bf16.mxu0 %v2505
    %3481 = vmatpush1.bf16.msra.mxu0 %v2504
    %3482 = vmatprep.subr.bf16.mxu0 %v2513
    %3483 = vmatpush1.bf16.msra.mxu0 %v2512
    %3484 = vmatprep.subr.bf16.mxu0 %v2521
    %3485 = vmatpush1.bf16.msra.mxu0 %v2520
    %3486 = vmatprep.subr.bf16.mxu0 %v2529
    %3487 = vmatpush1.bf16.msra.mxu0 %v2528
    %3488 = vmatprep.subr.bf16.mxu0 %v2537
    %3489 = vmatpush1.bf16.msra.mxu0 %v2536
    %3490 = vmatprep.subr.bf16.mxu0 %v2545
    %3491 = vmatpush1.bf16.msra.mxu0 %v2544
    %3492 = vmatprep.subr.bf16.mxu0 %v2553
    %3493 = vmatpush1.bf16.msra.mxu0 %v2552
    %3494 = vmatprep.subr.bf16.mxu0 %v2561
    %3495 = vmatpush1.bf16.msra.mxu0 %v2560
    %3496 = vmatprep.mubr.bf16.mxu0 %v343
    %3497 = vmatmul.mubr.bf16.gmra.mrb[0].mxu0 %v342
    %v3498 = vpop.f32.mrb[0].mxu0
    %v3499 = vadd.f32 %v867, %v3498
    %v3500 = vpop.f32.mrb[0].mxu0
    %v3501 = vadd.f32 %v871, %v3500
    %v3502 = vpop.f32.mrb[0].mxu0
    %v3503 = vpop.f32.mrb[0].mxu0
    %3504 = vdwg.mxu0
    %3505 = vmatprep.subr.bf16.mxu0 %v2569
    %3506 = vmatpush1.bf16.msra.mxu0 %v2568
    %3507 = vmatprep.subr.bf16.mxu0 %v2577
    %3508 = vmatpush1.bf16.msra.mxu0 %v2576
    %3509 = vmatprep.subr.bf16.mxu0 %v2585
    %3510 = vmatpush1.bf16.msra.mxu0 %v2584
    %3511 = vmatprep.subr.bf16.mxu0 %v2593
    %3512 = vmatpush1.bf16.msra.mxu0 %v2592
    %3513 = vmatprep.subr.bf16.mxu0 %v2601
    %3514 = vmatpush1.bf16.msra.mxu0 %v2600
    %3515 = vmatprep.subr.bf16.mxu0 %v2609
    %3516 = vmatpush1.bf16.msra.mxu0 %v2608
    %3517 = vmatprep.subr.bf16.mxu0 %v2617
    %3518 = vmatpush1.bf16.msra.mxu0 %v2616
    %3519 = vmatprep.subr.bf16.mxu0 %v2625
    %3520 = vmatpush1.bf16.msra.mxu0 %v2624
    %3521 = vmatprep.subr.bf16.mxu0 %v2633
    %3522 = vmatpush1.bf16.msra.mxu0 %v2632
    %3523 = vmatprep.subr.bf16.mxu0 %v2641
    %3524 = vmatpush1.bf16.msra.mxu0 %v2640
    %3525 = vmatprep.subr.bf16.mxu0 %v2649
    %3526 = vmatpush1.bf16.msra.mxu0 %v2648
    %3527 = vmatprep.subr.bf16.mxu0 %v2657
    %3528 = vmatpush1.bf16.msra.mxu0 %v2656
    %3529 = vmatprep.subr.bf16.mxu0 %v2665
    %3530 = vmatpush1.bf16.msra.mxu0 %v2664
    %3531 = vmatprep.subr.bf16.mxu0 %v2673
    %3532 = vmatpush1.bf16.msra.mxu0 %v2672
    %3533 = vmatprep.subr.bf16.mxu0 %v2681
    %3534 = vmatpush1.bf16.msra.mxu0 %v2680
    %3535 = vmatprep.subr.bf16.mxu0 %v2689
    %3536 = vmatpush1.bf16.msra.mxu0 %v2688
    %3537 = vmatprep.mubr.bf16.mxu0 %v345
    %3538 = vmatmul.mubr.bf16.gmra.mrb[0].mxu0 %v344
    %v3539 = vpop.f32.mrb[0].mxu0
    %v3540 = vadd.f32 %v3499, %v3539
    %v3541 = vpop.f32.mrb[0].mxu0
    %v3542 = vadd.f32 %v3501, %v3541
    %v3543 = vpop.f32.mrb[0].mxu0
    %v3544 = vpop.f32.mrb[0].mxu0
    %3545 = vdwg.mxu0
    %3546 = vmatprep.subr.bf16.mxu0 %v2697
    %3547 = vmatpush1.bf16.msra.mxu0 %v2696
    %3548 = vmatprep.subr.bf16.mxu0 %v2705
    %3549 = vmatpush1.bf16.msra.mxu0 %v2704
    %3550 = vmatprep.subr.bf16.mxu0 %v2713
    %3551 = vmatpush1.bf16.msra.mxu0 %v2712
    %3552 = vmatprep.subr.bf16.mxu0 %v2721
    %3553 = vmatpush1.bf16.msra.mxu0 %v2720
    %3554 = vmatprep.subr.bf16.mxu0 %v2729
    %3555 = vmatpush1.bf16.msra.mxu0 %v2728
    %3556 = vmatprep.subr.bf16.mxu0 %v2737
    %3557 = vmatpush1.bf16.msra.mxu0 %v2736
    %3558 = vmatprep.subr.bf16.mxu0 %v2745
    %3559 = vmatpush1.bf16.msra.mxu0 %v2744
    %3560 = vmatprep.subr.bf16.mxu0 %v2753
    %3561 = vmatpush1.bf16.msra.mxu0 %v2752
    %3562 = vmatprep.subr.bf16.mxu0 %v2761
    %3563 = vmatpush1.bf16.msra.mxu0 %v2760
    %3564 = vmatprep.subr.bf16.mxu0 %v2769
    %3565 = vmatpush1.bf16.msra.mxu0 %v2768
    %3566 = vmatprep.subr.bf16.mxu0 %v2777
    %3567 = vmatpush1.bf16.msra.mxu0 %v2776
    %3568 = vmatprep.subr.bf16.mxu0 %v2785
    %3569 = vmatpush1.bf16.msra.mxu0 %v2784
    %3570 = vmatprep.subr.bf16.mxu0 %v2793
    %3571 = vmatpush1.bf16.msra.mxu0 %v2792
    %3572 = vmatprep.subr.bf16.mxu0 %v2801
    %3573 = vmatpush1.bf16.msra.mxu0 %v2800
    %3574 = vmatprep.subr.bf16.mxu0 %v2809
    %3575 = vmatpush1.bf16.msra.mxu0 %v2808
    %3576 = vmatprep.subr.bf16.mxu0 %v2817
    %3577 = vmatpush1.bf16.msra.mxu0 %v2816
    %3578 = vmatprep.mubr.bf16.mxu0 %v347
    %3579 = vmatmul.mubr.bf16.gmra.mrb[0].mxu0 %v346
    %v3580 = vpop.f32.mrb[0].mxu0
    %v3581 = vadd.f32 %v3540, %v3580
    %v3582 = vpop.f32.mrb[0].mxu0
    %v3583 = vadd.f32 %v3542, %v3582
    %v3584 = vpop.f32.mrb[0].mxu0
    %v3585 = vpop.f32.mrb[0].mxu0
    %3586 = vdwg.mxu0
    %3587 = vmatprep.subr.bf16.mxu0 %v2825
    %3588 = vmatpush1.bf16.msra.mxu0 %v2824
    %3589 = vmatprep.subr.bf16.mxu0 %v2833
    %3590 = vmatpush1.bf16.msra.mxu0 %v2832
    %3591 = vmatprep.subr.bf16.mxu0 %v2841
    %3592 = vmatpush1.bf16.msra.mxu0 %v2840
    %3593 = vmatprep.subr.bf16.mxu0 %v2849
    %3594 = vmatpush1.bf16.msra.mxu0 %v2848
    %3595 = vmatprep.subr.bf16.mxu0 %v2857
    %3596 = vmatpush1.bf16.msra.mxu0 %v2856
    %3597 = vmatprep.subr.bf16.mxu0 %v2865
    %3598 = vmatpush1.bf16.msra.mxu0 %v2864
    %3599 = vmatprep.subr.bf16.mxu0 %v2873
    %3600 = vmatpush1.bf16.msra.mxu0 %v2872
    %3601 = vmatprep.subr.bf16.mxu0 %v2881
    %3602 = vmatpush1.bf16.msra.mxu0 %v2880
    %3603 = vmatprep.subr.bf16.mxu0 %v2889
    %3604 = vmatpush1.bf16.msra.mxu0 %v2888
    %3605 = vmatprep.subr.bf16.mxu0 %v2897
    %3606 = vmatpush1.bf16.msra.mxu0 %v2896
    %3607 = vmatprep.subr.bf16.mxu0 %v2905
    %3608 = vmatpush1.bf16.msra.mxu0 %v2904
    %3609 = vmatprep.subr.bf16.mxu0 %v2913
    %3610 = vmatpush1.bf16.msra.mxu0 %v2912
    %3611 = vmatprep.subr.bf16.mxu0 %v2921
    %3612 = vmatpush1.bf16.msra.mxu0 %v2920
    %3613 = vmatprep.subr.bf16.mxu0 %v2929
    %3614 = vmatpush1.bf16.msra.mxu0 %v2928
    %3615 = vmatprep.subr.bf16.mxu0 %v2937
    %3616 = vmatpush1.bf16.msra.mxu0 %v2936
    %3617 = vmatprep.subr.bf16.mxu0 %v2945
    %3618 = vmatpush1.bf16.msra.mxu0 %v2944
    %3619 = vmatprep.mubr.bf16.mxu0 %v349
    %3620 = vmatmul.mubr.bf16.gmra.mrb[0].mxu0 %v348
    %v3621 = vpop.f32.mrb[0].mxu0
    %v3622 = vadd.f32 %v3581, %v3621
    %v3623 = vpop.f32.mrb[0].mxu0
    %v3624 = vadd.f32 %v3583, %v3623
    %v3625 = vpop.f32.mrb[0].mxu0
    %v3626 = vpop.f32.mrb[0].mxu0
    %3627 = vdwg.mxu0
    %3628 = vmatprep.subr.bf16.mxu0 %v2443
    %3629 = vmatpush1.bf16.msra.mxu0 %v2442
    %3630 = vmatprep.subr.bf16.mxu0 %v2451
    %3631 = vmatpush1.bf16.msra.mxu0 %v2450
    %3632 = vmatprep.subr.bf16.mxu0 %v2459
    %3633 = vmatpush1.bf16.msra.mxu0 %v2458
    %3634 = vmatprep.subr.bf16.mxu0 %v2467
    %3635 = vmatpush1.bf16.msra.mxu0 %v2466
    %3636 = vmatprep.subr.bf16.mxu0 %v2475
    %3637 = vmatpush1.bf16.msra.mxu0 %v2474
    %3638 = vmatprep.subr.bf16.mxu0 %v2483
    %3639 = vmatpush1.bf16.msra.mxu0 %v2482
    %3640 = vmatprep.subr.bf16.mxu0 %v2491
    %3641 = vmatpush1.bf16.msra.mxu0 %v2490
    %3642 = vmatprep.subr.bf16.mxu0 %v2499
    %3643 = vmatpush1.bf16.msra.mxu0 %v2498
    %3644 = vmatprep.subr.bf16.mxu0 %v2507
    %3645 = vmatpush1.bf16.msra.mxu0 %v2506
    %3646 = vmatprep.subr.bf16.mxu0 %v2515
    %3647 = vmatpush1.bf16.msra.mxu0 %v2514
    %3648 = vmatprep.subr.bf16.mxu0 %v2523
    %3649 = vmatpush1.bf16.msra.mxu0 %v2522
    %3650 = vmatprep.subr.bf16.mxu0 %v2531
    %3651 = vmatpush1.bf16.msra.mxu0 %v2530
    %3652 = vmatprep.subr.bf16.mxu0 %v2539
    %3653 = vmatpush1.bf16.msra.mxu0 %v2538
    %3654 = vmatprep.subr.bf16.mxu0 %v2547
    %3655 = vmatpush1.bf16.msra.mxu0 %v2546
    %3656 = vmatprep.subr.bf16.mxu0 %v2555
    %3657 = vmatpush1.bf16.msra.mxu0 %v2554
    %3658 = vmatprep.subr.bf16.mxu0 %v2563
    %3659 = vmatpush1.bf16.msra.mxu0 %v2562
    %3660 = vmatprep.mubr.bf16.mxu0 %v343
    %3661 = vmatmul.mubr.bf16.gmra.mrb[0].mxu0 %v342
    %v3662 = vpop.f32.mrb[0].mxu0
    %v3663 = vadd.f32 %v875, %v3662
    %v3664 = vpop.f32.mrb[0].mxu0
    %v3665 = vadd.f32 %v879, %v3664
    %v3666 = vpop.f32.mrb[0].mxu0
    %v3667 = vpop.f32.mrb[0].mxu0
    %3668 = vdwg.mxu0
    %3669 = vmatprep.subr.bf16.mxu0 %v2571
    %3670 = vmatpush1.bf16.msra.mxu0 %v2570
    %3671 = vmatprep.subr.bf16.mxu0 %v2579
    %3672 = vmatpush1.bf16.msra.mxu0 %v2578
    %3673 = vmatprep.subr.bf16.mxu0 %v2587
    %3674 = vmatpush1.bf16.msra.mxu0 %v2586
    %3675 = vmatprep.subr.bf16.mxu0 %v2595
    %3676 = vmatpush1.bf16.msra.mxu0 %v2594
    %3677 = vmatprep.subr.bf16.mxu0 %v2603
    %3678 = vmatpush1.bf16.msra.mxu0 %v2602
    %3679 = vmatprep.subr.bf16.mxu0 %v2611
    %3680 = vmatpush1.bf16.msra.mxu0 %v2610
    %3681 = vmatprep.subr.bf16.mxu0 %v2619
    %3682 = vmatpush1.bf16.msra.mxu0 %v2618
    %3683 = vmatprep.subr.bf16.mxu0 %v2627
    %3684 = vmatpush1.bf16.msra.mxu0 %v2626
    %3685 = vmatprep.subr.bf16.mxu0 %v2635
    %3686 = vmatpush1.bf16.msra.mxu0 %v2634
    %3687 = vmatprep.subr.bf16.mxu0 %v2643
    %3688 = vmatpush1.bf16.msra.mxu0 %v2642
    %3689 = vmatprep.subr.bf16.mxu0 %v2651
    %3690 = vmatpush1.bf16.msra.mxu0 %v2650
    %3691 = vmatprep.subr.bf16.mxu0 %v2659
    %3692 = vmatpush1.bf16.msra.mxu0 %v2658
    %3693 = vmatprep.subr.bf16.mxu0 %v2667
    %3694 = vmatpush1.bf16.msra.mxu0 %v2666
    %3695 = vmatprep.subr.bf16.mxu0 %v2675
    %3696 = vmatpush1.bf16.msra.mxu0 %v2674
    %3697 = vmatprep.subr.bf16.mxu0 %v2683
    %3698 = vmatpush1.bf16.msra.mxu0 %v2682
    %3699 = vmatprep.subr.bf16.mxu0 %v2691
    %3700 = vmatpush1.bf16.msra.mxu0 %v2690
    %3701 = vmatprep.mubr.bf16.mxu0 %v345
    %3702 = vmatmul.mubr.bf16.gmra.mrb[0].mxu0 %v344
    %v3703 = vpop.f32.mrb[0].mxu0
    %v3704 = vadd.f32 %v3663, %v3703
    %v3705 = vpop.f32.mrb[0].mxu0
    %v3706 = vadd.f32 %v3665, %v3705
    %v3707 = vpop.f32.mrb[0].mxu0
    %v3708 = vpop.f32.mrb[0].mxu0
    %3709 = vdwg.mxu0
    %3710 = vmatprep.subr.bf16.mxu0 %v2699
    %3711 = vmatpush1.bf16.msra.mxu0 %v2698
    %3712 = vmatprep.subr.bf16.mxu0 %v2707
    %3713 = vmatpush1.bf16.msra.mxu0 %v2706
    %3714 = vmatprep.subr.bf16.mxu0 %v2715
    %3715 = vmatpush1.bf16.msra.mxu0 %v2714
    %3716 = vmatprep.subr.bf16.mxu0 %v2723
    %3717 = vmatpush1.bf16.msra.mxu0 %v2722
    %3718 = vmatprep.subr.bf16.mxu0 %v2731
    %3719 = vmatpush1.bf16.msra.mxu0 %v2730
    %3720 = vmatprep.subr.bf16.mxu0 %v2739
    %3721 = vmatpush1.bf16.msra.mxu0 %v2738
    %3722 = vmatprep.subr.bf16.mxu0 %v2747
    %3723 = vmatpush1.bf16.msra.mxu0 %v2746
    %3724 = vmatprep.subr.bf16.mxu0 %v2755
    %3725 = vmatpush1.bf16.msra.mxu0 %v2754
    %3726 = vmatprep.subr.bf16.mxu0 %v2763
    %3727 = vmatpush1.bf16.msra.mxu0 %v2762
    %3728 = vmatprep.subr.bf16.mxu0 %v2771
    %3729 = vmatpush1.bf16.msra.mxu0 %v2770
    %3730 = vmatprep.subr.bf16.mxu0 %v2779
    %3731 = vmatpush1.bf16.msra.mxu0 %v2778
    %3732 = vmatprep.subr.bf16.mxu0 %v2787
    %3733 = vmatpush1.bf16.msra.mxu0 %v2786
    %3734 = vmatprep.subr.bf16.mxu0 %v2795
    %3735 = vmatpush1.bf16.msra.mxu0 %v2794
    %3736 = vmatprep.subr.bf16.mxu0 %v2803
    %3737 = vmatpush1.bf16.msra.mxu0 %v2802
    %3738 = vmatprep.subr.bf16.mxu0 %v2811
    %3739 = vmatpush1.bf16.msra.mxu0 %v2810
    %3740 = vmatprep.subr.bf16.mxu0 %v2819
    %3741 = vmatpush1.bf16.msra.mxu0 %v2818
    %3742 = vmatprep.mubr.bf16.mxu0 %v347
    %3743 = vmatmul.mubr.bf16.gmra.mrb[0].mxu0 %v346
    %v3744 = vpop.f32.mrb[0].mxu0
    %v3745 = vadd.f32 %v3704, %v3744
    %v3746 = vpop.f32.mrb[0].mxu0
    %v3747 = vadd.f32 %v3706, %v3746
    %v3748 = vpop.f32.mrb[0].mxu0
    %v3749 = vpop.f32.mrb[0].mxu0
    %3750 = vdwg.mxu0
    %3751 = vmatprep.subr.bf16.mxu0 %v2827
    %3752 = vmatpush1.bf16.msra.mxu0 %v2826
    %3753 = vmatprep.subr.bf16.mxu0 %v2835
    %3754 = vmatpush1.bf16.msra.mxu0 %v2834
    %3755 = vmatprep.subr.bf16.mxu0 %v2843
    %3756 = vmatpush1.bf16.msra.mxu0 %v2842
    %3757 = vmatprep.subr.bf16.mxu0 %v2851
    %3758 = vmatpush1.bf16.msra.mxu0 %v2850
    %3759 = vmatprep.subr.bf16.mxu0 %v2859
    %3760 = vmatpush1.bf16.msra.mxu0 %v2858
    %3761 = vmatprep.subr.bf16.mxu0 %v2867
    %3762 = vmatpush1.bf16.msra.mxu0 %v2866
    %3763 = vmatprep.subr.bf16.mxu0 %v2875
    %3764 = vmatpush1.bf16.msra.mxu0 %v2874
    %3765 = vmatprep.subr.bf16.mxu0 %v2883
    %3766 = vmatpush1.bf16.msra.mxu0 %v2882
    %3767 = vmatprep.subr.bf16.mxu0 %v2891
    %3768 = vmatpush1.bf16.msra.mxu0 %v2890
    %3769 = vmatprep.subr.bf16.mxu0 %v2899
    %3770 = vmatpush1.bf16.msra.mxu0 %v2898
    %3771 = vmatprep.subr.bf16.mxu0 %v2907
    %3772 = vmatpush1.bf16.msra.mxu0 %v2906
    %3773 = vmatprep.subr.bf16.mxu0 %v2915
    %3774 = vmatpush1.bf16.msra.mxu0 %v2914
    %3775 = vmatprep.subr.bf16.mxu0 %v2923
    %3776 = vmatpush1.bf16.msra.mxu0 %v2922
    %3777 = vmatprep.subr.bf16.mxu0 %v2931
    %3778 = vmatpush1.bf16.msra.mxu0 %v2930
    %3779 = vmatprep.subr.bf16.mxu0 %v2939
    %3780 = vmatpush1.bf16.msra.mxu0 %v2938
    %3781 = vmatprep.subr.bf16.mxu0 %v2947
    %3782 = vmatpush1.bf16.msra.mxu0 %v2946
    %3783 = vmatprep.mubr.bf16.mxu0 %v349
    %3784 = vmatmul.mubr.bf16.gmra.mrb[0].mxu0 %v348
    %v3785 = vpop.f32.mrb[0].mxu0
    %v3786 = vadd.f32 %v3745, %v3785
    %v3787 = vpop.f32.mrb[0].mxu0
    %v3788 = vadd.f32 %v3747, %v3787
    %v3789 = vpop.f32.mrb[0].mxu0
    %v3790 = vpop.f32.mrb[0].mxu0
    %3791 = vdwg.mxu0
    %3792 = vmatprep.subr.bf16.mxu0 %v2445
    %3793 = vmatpush1.bf16.msra.mxu0 %v2444
    %3794 = vmatprep.subr.bf16.mxu0 %v2453
    %3795 = vmatpush1.bf16.msra.mxu0 %v2452
    %3796 = vmatprep.subr.bf16.mxu0 %v2461
    %3797 = vmatpush1.bf16.msra.mxu0 %v2460
    %3798 = vmatprep.subr.bf16.mxu0 %v2469
    %3799 = vmatpush1.bf16.msra.mxu0 %v2468
    %3800 = vmatprep.subr.bf16.mxu0 %v2477
    %3801 = vmatpush1.bf16.msra.mxu0 %v2476
    %3802 = vmatprep.subr.bf16.mxu0 %v2485
    %3803 = vmatpush1.bf16.msra.mxu0 %v2484
    %3804 = vmatprep.subr.bf16.mxu0 %v2493
    %3805 = vmatpush1.bf16.msra.mxu0 %v2492
    %3806 = vmatprep.subr.bf16.mxu0 %v2501
    %3807 = vmatpush1.bf16.msra.mxu0 %v2500
    %3808 = vmatprep.subr.bf16.mxu0 %v2509
    %3809 = vmatpush1.bf16.msra.mxu0 %v2508
    %3810 = vmatprep.subr.bf16.mxu0 %v2517
    %3811 = vmatpush1.bf16.msra.mxu0 %v2516
    %3812 = vmatprep.subr.bf16.mxu0 %v2525
    %3813 = vmatpush1.bf16.msra.mxu0 %v2524
    %3814 = vmatprep.subr.bf16.mxu0 %v2533
    %3815 = vmatpush1.bf16.msra.mxu0 %v2532
    %3816 = vmatprep.subr.bf16.mxu0 %v2541
    %3817 = vmatpush1.bf16.msra.mxu0 %v2540
    %3818 = vmatprep.subr.bf16.mxu0 %v2549
    %3819 = vmatpush1.bf16.msra.mxu0 %v2548
    %3820 = vmatprep.subr.bf16.mxu0 %v2557
    %3821 = vmatpush1.bf16.msra.mxu0 %v2556
    %3822 = vmatprep.subr.bf16.mxu0 %v2565
    %3823 = vmatpush1.bf16.msra.mxu0 %v2564
    %3824 = vmatprep.mubr.bf16.mxu0 %v343
    %3825 = vmatmul.mubr.bf16.gmra.mrb[0].mxu0 %v342
    %v3826 = vpop.f32.mrb[0].mxu0
    %v3827 = vadd.f32 %v883, %v3826
    %v3828 = vpop.f32.mrb[0].mxu0
    %v3829 = vadd.f32 %v887, %v3828
    %v3830 = vpop.f32.mrb[0].mxu0
    %v3831 = vpop.f32.mrb[0].mxu0
    %3832 = vdwg.mxu0
    %3833 = vmatprep.subr.bf16.mxu0 %v2573
    %3834 = vmatpush1.bf16.msra.mxu0 %v2572
    %3835 = vmatprep.subr.bf16.mxu0 %v2581
    %3836 = vmatpush1.bf16.msra.mxu0 %v2580
    %3837 = vmatprep.subr.bf16.mxu0 %v2589
    %3838 = vmatpush1.bf16.msra.mxu0 %v2588
    %3839 = vmatprep.subr.bf16.mxu0 %v2597
    %3840 = vmatpush1.bf16.msra.mxu0 %v2596
    %3841 = vmatprep.subr.bf16.mxu0 %v2605
    %3842 = vmatpush1.bf16.msra.mxu0 %v2604
    %3843 = vmatprep.subr.bf16.mxu0 %v2613
    %3844 = vmatpush1.bf16.msra.mxu0 %v2612
    %3845 = vmatprep.subr.bf16.mxu0 %v2621
    %3846 = vmatpush1.bf16.msra.mxu0 %v2620
    %3847 = vmatprep.subr.bf16.mxu0 %v2629
    %3848 = vmatpush1.bf16.msra.mxu0 %v2628
    %3849 = vmatprep.subr.bf16.mxu0 %v2637
    %3850 = vmatpush1.bf16.msra.mxu0 %v2636
    %3851 = vmatprep.subr.bf16.mxu0 %v2645
    %3852 = vmatpush1.bf16.msra.mxu0 %v2644
    %3853 = vmatprep.subr.bf16.mxu0 %v2653
    %3854 = vmatpush1.bf16.msra.mxu0 %v2652
    %3855 = vmatprep.subr.bf16.mxu0 %v2661
    %3856 = vmatpush1.bf16.msra.mxu0 %v2660
    %3857 = vmatprep.subr.bf16.mxu0 %v2669
    %3858 = vmatpush1.bf16.msra.mxu0 %v2668
    %3859 = vmatprep.subr.bf16.mxu0 %v2677
    %3860 = vmatpush1.bf16.msra.mxu0 %v2676
    %3861 = vmatprep.subr.bf16.mxu0 %v2685
    %3862 = vmatpush1.bf16.msra.mxu0 %v2684
    %3863 = vmatprep.subr.bf16.mxu0 %v2693
    %3864 = vmatpush1.bf16.msra.mxu0 %v2692
    %3865 = vmatprep.mubr.bf16.mxu0 %v345
    %3866 = vmatmul.mubr.bf16.gmra.mrb[0].mxu0 %v344
    %v3867 = vpop.f32.mrb[0].mxu0
    %v3868 = vadd.f32 %v3827, %v3867
    %v3869 = vpop.f32.mrb[0].mxu0
    %v3870 = vadd.f32 %v3829, %v3869
    %v3871 = vpop.f32.mrb[0].mxu0
    %v3872 = vpop.f32.mrb[0].mxu0
    %3873 = vdwg.mxu0
    %3874 = vmatprep.subr.bf16.mxu0 %v2701
    %3875 = vmatpush1.bf16.msra.mxu0 %v2700
    %3876 = vmatprep.subr.bf16.mxu0 %v2709
    %3877 = vmatpush1.bf16.msra.mxu0 %v2708
    %3878 = vmatprep.subr.bf16.mxu0 %v2717
    %3879 = vmatpush1.bf16.msra.mxu0 %v2716
    %3880 = vmatprep.subr.bf16.mxu0 %v2725
    %3881 = vmatpush1.bf16.msra.mxu0 %v2724
    %3882 = vmatprep.subr.bf16.mxu0 %v2733
    %3883 = vmatpush1.bf16.msra.mxu0 %v2732
    %3884 = vmatprep.subr.bf16.mxu0 %v2741
    %3885 = vmatpush1.bf16.msra.mxu0 %v2740
    %3886 = vmatprep.subr.bf16.mxu0 %v2749
    %3887 = vmatpush1.bf16.msra.mxu0 %v2748
    %3888 = vmatprep.subr.bf16.mxu0 %v2757
    %3889 = vmatpush1.bf16.msra.mxu0 %v2756
    %3890 = vmatprep.subr.bf16.mxu0 %v2765
    %3891 = vmatpush1.bf16.msra.mxu0 %v2764
    %3892 = vmatprep.subr.bf16.mxu0 %v2773
    %3893 = vmatpush1.bf16.msra.mxu0 %v2772
    %3894 = vmatprep.subr.bf16.mxu0 %v2781
    %3895 = vmatpush1.bf16.msra.mxu0 %v2780
    %3896 = vmatprep.subr.bf16.mxu0 %v2789
    %3897 = vmatpush1.bf16.msra.mxu0 %v2788
    %3898 = vmatprep.subr.bf16.mxu0 %v2797
    %3899 = vmatpush1.bf16.msra.mxu0 %v2796
    %3900 = vmatprep.subr.bf16.mxu0 %v2805
    %3901 = vmatpush1.bf16.msra.mxu0 %v2804
    %3902 = vmatprep.subr.bf16.mxu0 %v2813
    %3903 = vmatpush1.bf16.msra.mxu0 %v2812
    %3904 = vmatprep.subr.bf16.mxu0 %v2821
    %3905 = vmatpush1.bf16.msra.mxu0 %v2820
    %3906 = vmatprep.mubr.bf16.mxu0 %v347
    %3907 = vmatmul.mubr.bf16.gmra.mrb[0].mxu0 %v346
    %v3908 = vpop.f32.mrb[0].mxu0
    %v3909 = vadd.f32 %v3868, %v3908
    %v3910 = vpop.f32.mrb[0].mxu0
    %v3911 = vadd.f32 %v3870, %v3910
    %v3912 = vpop.f32.mrb[0].mxu0
    %v3913 = vpop.f32.mrb[0].mxu0
    %3914 = vdwg.mxu0
    %3915 = vmatprep.subr.bf16.mxu0 %v2829
    %3916 = vmatpush1.bf16.msra.mxu0 %v2828
    %3917 = vmatprep.subr.bf16.mxu0 %v2837
    %3918 = vmatpush1.bf16.msra.mxu0 %v2836
    %3919 = vmatprep.subr.bf16.mxu0 %v2845
    %3920 = vmatpush1.bf16.msra.mxu0 %v2844
    %3921 = vmatprep.subr.bf16.mxu0 %v2853
    %3922 = vmatpush1.bf16.msra.mxu0 %v2852
    %3923 = vmatprep.subr.bf16.mxu0 %v2861
    %3924 = vmatpush1.bf16.msra.mxu0 %v2860
    %3925 = vmatprep.subr.bf16.mxu0 %v2869
    %3926 = vmatpush1.bf16.msra.mxu0 %v2868
    %3927 = vmatprep.subr.bf16.mxu0 %v2877
    %3928 = vmatpush1.bf16.msra.mxu0 %v2876
    %3929 = vmatprep.subr.bf16.mxu0 %v2885
    %3930 = vmatpush1.bf16.msra.mxu0 %v2884
    %3931 = vmatprep.subr.bf16.mxu0 %v2893
    %3932 = vmatpush1.bf16.msra.mxu0 %v2892
    %3933 = vmatprep.subr.bf16.mxu0 %v2901
    %3934 = vmatpush1.bf16.msra.mxu0 %v2900
    %3935 = vmatprep.subr.bf16.mxu0 %v2909
    %3936 = vmatpush1.bf16.msra.mxu0 %v2908
    %3937 = vmatprep.subr.bf16.mxu0 %v2917
    %3938 = vmatpush1.bf16.msra.mxu0 %v2916
    %3939 = vmatprep.subr.bf16.mxu0 %v2925
    %3940 = vmatpush1.bf16.msra.mxu0 %v2924
    %3941 = vmatprep.subr.bf16.mxu0 %v2933
    %3942 = vmatpush1.bf16.msra.mxu0 %v2932
    %3943 = vmatprep.subr.bf16.mxu0 %v2941
    %3944 = vmatpush1.bf16.msra.mxu0 %v2940
    %3945 = vmatprep.subr.bf16.mxu0 %v2949
    %3946 = vmatpush1.bf16.msra.mxu0 %v2948
    %3947 = vmatprep.mubr.bf16.mxu0 %v349
    %3948 = vmatmul.mubr.bf16.gmra.mrb[0].mxu0 %v348
    %v3949 = vpop.f32.mrb[0].mxu0
    %v3950 = vadd.f32 %v3909, %v3949
    %v3951 = vpop.f32.mrb[0].mxu0
    %v3952 = vadd.f32 %v3911, %v3951
    %v3953 = vpop.f32.mrb[0].mxu0
    %v3954 = vpop.f32.mrb[0].mxu0
    %3955 = vdwg.mxu0
    %3956 = vmatprep.subr.bf16.mxu0 %v2447
    %3957 = vmatpush1.bf16.msra.mxu0 %v2446
    %3958 = vmatprep.subr.bf16.mxu0 %v2455
    %3959 = vmatpush1.bf16.msra.mxu0 %v2454
    %3960 = vmatprep.subr.bf16.mxu0 %v2463
    %3961 = vmatpush1.bf16.msra.mxu0 %v2462
    %3962 = vmatprep.subr.bf16.mxu0 %v2471
    %3963 = vmatpush1.bf16.msra.mxu0 %v2470
    %3964 = vmatprep.subr.bf16.mxu0 %v2479
    %3965 = vmatpush1.bf16.msra.mxu0 %v2478
    %3966 = vmatprep.subr.bf16.mxu0 %v2487
    %3967 = vmatpush1.bf16.msra.mxu0 %v2486
    %3968 = vmatprep.subr.bf16.mxu0 %v2495
    %3969 = vmatpush1.bf16.msra.mxu0 %v2494
    %3970 = vmatprep.subr.bf16.mxu0 %v2503
    %3971 = vmatpush1.bf16.msra.mxu0 %v2502
    %3972 = vmatprep.subr.bf16.mxu0 %v2511
    %3973 = vmatpush1.bf16.msra.mxu0 %v2510
    %3974 = vmatprep.subr.bf16.mxu0 %v2519
    %3975 = vmatpush1.bf16.msra.mxu0 %v2518
    %3976 = vmatprep.subr.bf16.mxu0 %v2527
    %3977 = vmatpush1.bf16.msra.mxu0 %v2526
    %3978 = vmatprep.subr.bf16.mxu0 %v2535
    %3979 = vmatpush1.bf16.msra.mxu0 %v2534
    %3980 = vmatprep.subr.bf16.mxu0 %v2543
    %3981 = vmatpush1.bf16.msra.mxu0 %v2542
    %3982 = vmatprep.subr.bf16.mxu0 %v2551
    %3983 = vmatpush1.bf16.msra.mxu0 %v2550
    %3984 = vmatprep.subr.bf16.mxu0 %v2559
    %3985 = vmatpush1.bf16.msra.mxu0 %v2558
    %3986 = vmatprep.subr.bf16.mxu0 %v2567
    %3987 = vmatpush1.bf16.msra.mxu0 %v2566
    %3988 = vmatprep.mubr.bf16.mxu0 %v343
    %3989 = vmatmul.mubr.bf16.gmra.mrb[0].mxu0 %v342
    %v3990 = vpop.f32.mrb[0].mxu0
    %v3991 = vadd.f32 %v891, %v3990
    %v3992 = vpop.f32.mrb[0].mxu0
    %v3993 = vadd.f32 %v895, %v3992
    %v3994 = vpop.f32.mrb[0].mxu0
    %v3995 = vpop.f32.mrb[0].mxu0
    %3996 = vdwg.mxu0
    %3997 = vmatprep.subr.bf16.mxu0 %v2575
    %3998 = vmatpush1.bf16.msra.mxu0 %v2574
    %3999 = vmatprep.subr.bf16.mxu0 %v2583
    %4000 = vmatpush1.bf16.msra.mxu0 %v2582
    %4001 = vmatprep.subr.bf16.mxu0 %v2591
    %4002 = vmatpush1.bf16.msra.mxu0 %v2590
    %4003 = vmatprep.subr.bf16.mxu0 %v2599
    %4004 = vmatpush1.bf16.msra.mxu0 %v2598
    %4005 = vmatprep.subr.bf16.mxu0 %v2607
    %4006 = vmatpush1.bf16.msra.mxu0 %v2606
    %4007 = vmatprep.subr.bf16.mxu0 %v2615
    %4008 = vmatpush1.bf16.msra.mxu0 %v2614
    %4009 = vmatprep.subr.bf16.mxu0 %v2623
    %4010 = vmatpush1.bf16.msra.mxu0 %v2622
    %4011 = vmatprep.subr.bf16.mxu0 %v2631
    %4012 = vmatpush1.bf16.msra.mxu0 %v2630
    %4013 = vmatprep.subr.bf16.mxu0 %v2639
    %4014 = vmatpush1.bf16.msra.mxu0 %v2638
    %4015 = vmatprep.subr.bf16.mxu0 %v2647
    %4016 = vmatpush1.bf16.msra.mxu0 %v2646
    %4017 = vmatprep.subr.bf16.mxu0 %v2655
    %4018 = vmatpush1.bf16.msra.mxu0 %v2654
    %4019 = vmatprep.subr.bf16.mxu0 %v2663
    %4020 = vmatpush1.bf16.msra.mxu0 %v2662
    %4021 = vmatprep.subr.bf16.mxu0 %v2671
    %4022 = vmatpush1.bf16.msra.mxu0 %v2670
    %4023 = vmatprep.subr.bf16.mxu0 %v2679
    %4024 = vmatpush1.bf16.msra.mxu0 %v2678
    %4025 = vmatprep.subr.bf16.mxu0 %v2687
    %4026 = vmatpush1.bf16.msra.mxu0 %v2686
    %4027 = vmatprep.subr.bf16.mxu0 %v2695
    %4028 = vmatpush1.bf16.msra.mxu0 %v2694
    %4029 = vmatprep.mubr.bf16.mxu0 %v345
    %4030 = vmatmul.mubr.bf16.gmra.mrb[0].mxu0 %v344
    %v4031 = vpop.f32.mrb[0].mxu0
    %v4032 = vadd.f32 %v3991, %v4031
    %v4033 = vpop.f32.mrb[0].mxu0
    %v4034 = vadd.f32 %v3993, %v4033
    %v4035 = vpop.f32.mrb[0].mxu0
    %v4036 = vpop.f32.mrb[0].mxu0
    %4037 = vdwg.mxu0
    %4038 = vmatprep.subr.bf16.mxu0 %v2703
    %4039 = vmatpush1.bf16.msra.mxu0 %v2702
    %4040 = vmatprep.subr.bf16.mxu0 %v2711
    %4041 = vmatpush1.bf16.msra.mxu0 %v2710
    %4042 = vmatprep.subr.bf16.mxu0 %v2719
    %4043 = vmatpush1.bf16.msra.mxu0 %v2718
    %4044 = vmatprep.subr.bf16.mxu0 %v2727
    %4045 = vmatpush1.bf16.msra.mxu0 %v2726
    %4046 = vmatprep.subr.bf16.mxu0 %v2735
    %4047 = vmatpush1.bf16.msra.mxu0 %v2734
    %4048 = vmatprep.subr.bf16.mxu0 %v2743
    %4049 = vmatpush1.bf16.msra.mxu0 %v2742
    %4050 = vmatprep.subr.bf16.mxu0 %v2751
    %4051 = vmatpush1.bf16.msra.mxu0 %v2750
    %4052 = vmatprep.subr.bf16.mxu0 %v2759
    %4053 = vmatpush1.bf16.msra.mxu0 %v2758
    %4054 = vmatprep.subr.bf16.mxu0 %v2767
    %4055 = vmatpush1.bf16.msra.mxu0 %v2766
    %4056 = vmatprep.subr.bf16.mxu0 %v2775
    %4057 = vmatpush1.bf16.msra.mxu0 %v2774
    %4058 = vmatprep.subr.bf16.mxu0 %v2783
    %4059 = vmatpush1.bf16.msra.mxu0 %v2782
    %4060 = vmatprep.subr.bf16.mxu0 %v2791
    %4061 = vmatpush1.bf16.msra.mxu0 %v2790
    %4062 = vmatprep.subr.bf16.mxu0 %v2799
    %4063 = vmatpush1.bf16.msra.mxu0 %v2798
    %4064 = vmatprep.subr.bf16.mxu0 %v2807
    %4065 = vmatpush1.bf16.msra.mxu0 %v2806
    %4066 = vmatprep.subr.bf16.mxu0 %v2815
    %4067 = vmatpush1.bf16.msra.mxu0 %v2814
    %4068 = vmatprep.subr.bf16.mxu0 %v2823
    %4069 = vmatpush1.bf16.msra.mxu0 %v2822
    %4070 = vmatprep.mubr.bf16.mxu0 %v347
    %4071 = vmatmul.mubr.bf16.gmra.mrb[0].mxu0 %v346
    %v4072 = vpop.f32.mrb[0].mxu0
    %v4073 = vadd.f32 %v4032, %v4072
    %v4074 = vpop.f32.mrb[0].mxu0
    %v4075 = vadd.f32 %v4034, %v4074
    %v4076 = vpop.f32.mrb[0].mxu0
    %v4077 = vpop.f32.mrb[0].mxu0
    %4078 = vdwg.mxu0
    %4079 = vmatprep.subr.bf16.mxu0 %v2831
    %4080 = vmatpush1.bf16.msra.mxu0 %v2830
    %4081 = vmatprep.subr.bf16.mxu0 %v2839
    %4082 = vmatpush1.bf16.msra.mxu0 %v2838
    %4083 = vmatprep.subr.bf16.mxu0 %v2847
    %4084 = vmatpush1.bf16.msra.mxu0 %v2846
    %4085 = vmatprep.subr.bf16.mxu0 %v2855
    %4086 = vmatpush1.bf16.msra.mxu0 %v2854
    %4087 = vmatprep.subr.bf16.mxu0 %v2863
    %4088 = vmatpush1.bf16.msra.mxu0 %v2862
    %4089 = vmatprep.subr.bf16.mxu0 %v2871
    %4090 = vmatpush1.bf16.msra.mxu0 %v2870
    %4091 = vmatprep.subr.bf16.mxu0 %v2879
    %4092 = vmatpush1.bf16.msra.mxu0 %v2878
    %4093 = vmatprep.subr.bf16.mxu0 %v2887
    %4094 = vmatpush1.bf16.msra.mxu0 %v2886
    %4095 = vmatprep.subr.bf16.mxu0 %v2895
    %4096 = vmatpush1.bf16.msra.mxu0 %v2894
    %4097 = vmatprep.subr.bf16.mxu0 %v2903
    %4098 = vmatpush1.bf16.msra.mxu0 %v2902
    %4099 = vmatprep.subr.bf16.mxu0 %v2911
    %4100 = vmatpush1.bf16.msra.mxu0 %v2910
    %4101 = vmatprep.subr.bf16.mxu0 %v2919
    %4102 = vmatpush1.bf16.msra.mxu0 %v2918
    %4103 = vmatprep.subr.bf16.mxu0 %v2927
    %4104 = vmatpush1.bf16.msra.mxu0 %v2926
    %4105 = vmatprep.subr.bf16.mxu0 %v2935
    %4106 = vmatpush1.bf16.msra.mxu0 %v2934
    %4107 = vmatprep.subr.bf16.mxu0 %v2943
    %4108 = vmatpush1.bf16.msra.mxu0 %v2942
    %4109 = vmatprep.subr.bf16.mxu0 %v2951
    %4110 = vmatpush1.bf16.msra.mxu0 %v2950
    %4111 = vmatprep.mubr.bf16.mxu0 %v349
    %4112 = vmatmul.mubr.bf16.gmra.mrb[0].mxu0 %v348
    %v4113 = vpop.f32.mrb[0].mxu0
    %v4114 = vadd.f32 %v4073, %v4113
    %v4115 = vpop.f32.mrb[0].mxu0
    %v4116 = vadd.f32 %v4075, %v4115
    %v4117 = vpop.f32.mrb[0].mxu0
    %v4118 = vpop.f32.mrb[0].mxu0
    %4119 = vdwg.mxu0
    %v4120 = vmax.f32 %v3622, 0.0
    %v4121 = vmax.f32 %v3624, 0.0
    %v4122 = vmax.f32 %v3786, 0.0
    %v4123 = vmax.f32 %v3788, 0.0
    %v4124 = vmax.f32 %v3950, 0.0
    %v4125 = vmax.f32 %v3952, 0.0
    %v4126 = vmax.f32 %v4114, 0.0
    %v4127 = vmax.f32 %v4116, 0.0
    %v4128 = vpack.c.bf16 %v4120, %v4120
    %v4129 = vpack.c.bf16 %v4121, %v4121
    %v4130 = vpack.c.bf16 %v4122, %v4122
    %v4131 = vpack.c.bf16 %v4123, %v4123
    %v4132 = vpack.c.bf16 %v4124, %v4124
    %v4133 = vpack.c.bf16 %v4125, %v4125
    %v4134 = vpack.c.bf16 %v4126, %v4126
    %v4135 = vpack.c.bf16 %v4127, %v4127
    %v4136 = vld [vmem:[#allocation10] sm:$0xf]
    %v4137 = vld [vmem:[#allocation10 + $0x4] sm:$0xf]
    %v4138 = vld [vmem:[#allocation10 + $0x8] sm:$0xf]
    %v4139 = vld [vmem:[#allocation10 + $0xc] sm:$0xf]
    %v4140 = vld [vmem:[#allocation10 + $0x10] sm:$0xf]
    %v4141 = vld [vmem:[#allocation10 + $0x14] sm:$0xf]
    %v4142 = vld [vmem:[#allocation10 + $0x18] sm:$0xf]
    %v4143 = vld [vmem:[#allocation10 + $0x1c] sm:$0xf]
    %v4144 = vld [vmem:[#allocation10 + $0x20] sm:$0xf]
    %v4145 = vld [vmem:[#allocation10 + $0x24] sm:$0xf]
    %v4146 = vld [vmem:[#allocation10 + $0x28] sm:$0xf]
    %v4147 = vld [vmem:[#allocation10 + $0x2c] sm:$0xf]
    %v4148 = vld [vmem:[#allocation10 + $0x30] sm:$0xf]
    %v4149 = vld [vmem:[#allocation10 + $0x34] sm:$0xf]
    %v4150 = vld [vmem:[#allocation10 + $0x38] sm:$0xf]
    %v4151 = vld [vmem:[#allocation10 + $0x3c] sm:$0xf]
    %v4152 = vld [vmem:[#allocation10 + $0x40] sm:$0xf]
    %v4153 = vld [vmem:[#allocation10 + $0x44] sm:$0xf]
    %v4154 = vld [vmem:[#allocation10 + $0x48] sm:$0xf]
    %v4155 = vld [vmem:[#allocation10 + $0x4c] sm:$0xf]
    %v4156 = vld [vmem:[#allocation10 + $0x50] sm:$0xf]
    %v4157 = vld [vmem:[#allocation10 + $0x54] sm:$0xf]
    %v4158 = vld [vmem:[#allocation10 + $0x58] sm:$0xf]
    %v4159 = vld [vmem:[#allocation10 + $0x5c] sm:$0xf]
    %v4160 = vld [vmem:[#allocation10 + $0x60] sm:$0xf]
    %v4161 = vld [vmem:[#allocation10 + $0x64] sm:$0xf]
    %v4162 = vld [vmem:[#allocation10 + $0x68] sm:$0xf]
    %v4163 = vld [vmem:[#allocation10 + $0x6c] sm:$0xf]
    %v4164 = vld [vmem:[#allocation10 + $0x70] sm:$0xf]
    %v4165 = vld [vmem:[#allocation10 + $0x74] sm:$0xf]
    %v4166 = vld [vmem:[#allocation10 + $0x78] sm:$0xf]
    %v4167 = vld [vmem:[#allocation10 + $0x7c] sm:$0xf]
    %v4168 = vld [vmem:[#allocation10 + $0x80] sm:$0xf]
    %v4169 = vld [vmem:[#allocation10 + $0x84] sm:$0xf]
    %v4170 = vld [vmem:[#allocation10 + $0x88] sm:$0xf]
    %v4171 = vld [vmem:[#allocation10 + $0x8c] sm:$0xf]
    %v4172 = vld [vmem:[#allocation10 + $0x90] sm:$0xf]
    %v4173 = vld [vmem:[#allocation10 + $0x94] sm:$0xf]
    %v4174 = vld [vmem:[#allocation10 + $0x98] sm:$0xf]
    %v4175 = vld [vmem:[#allocation10 + $0x9c] sm:$0xf]
    %v4176 = vld [vmem:[#allocation10 + $0xa0] sm:$0xf]
    %v4177 = vld [vmem:[#allocation10 + $0xa4] sm:$0xf]
    %v4178 = vld [vmem:[#allocation10 + $0xa8] sm:$0xf]
    %v4179 = vld [vmem:[#allocation10 + $0xac] sm:$0xf]
    %v4180 = vld [vmem:[#allocation10 + $0xb0] sm:$0xf]
    %v4181 = vld [vmem:[#allocation10 + $0xb4] sm:$0xf]
    %v4182 = vld [vmem:[#allocation10 + $0xb8] sm:$0xf]
    %v4183 = vld [vmem:[#allocation10 + $0xbc] sm:$0xf]
    %v4184 = vld [vmem:[#allocation10 + $0xc0] sm:$0xf]
    %v4185 = vld [vmem:[#allocation10 + $0xc4] sm:$0xf]
    %v4186 = vld [vmem:[#allocation10 + $0xc8] sm:$0xf]
    %v4187 = vld [vmem:[#allocation10 + $0xcc] sm:$0xf]
    %v4188 = vld [vmem:[#allocation10 + $0xd0] sm:$0xf]
    %v4189 = vld [vmem:[#allocation10 + $0xd4] sm:$0xf]
    %v4190 = vld [vmem:[#allocation10 + $0xd8] sm:$0xf]
    %v4191 = vld [vmem:[#allocation10 + $0xdc] sm:$0xf]
    %v4192 = vld [vmem:[#allocation10 + $0xe0] sm:$0xf]
    %v4193 = vld [vmem:[#allocation10 + $0xe4] sm:$0xf]
    %v4194 = vld [vmem:[#allocation10 + $0xe8] sm:$0xf]
    %v4195 = vld [vmem:[#allocation10 + $0xec] sm:$0xf]
    %v4196 = vld [vmem:[#allocation10 + $0xf0] sm:$0xf]
    %v4197 = vld [vmem:[#allocation10 + $0xf4] sm:$0xf]
    %v4198 = vld [vmem:[#allocation10 + $0xf8] sm:$0xf]
    %v4199 = vld [vmem:[#allocation10 + $0xfc] sm:$0xf]
    %v4200 = vld [vmem:[#allocation10 + $0x100] sm:$0xf]
    %v4201 = vld [vmem:[#allocation10 + $0x104] sm:$0xf]
    %v4202 = vld [vmem:[#allocation10 + $0x108] sm:$0xf]
    %v4203 = vld [vmem:[#allocation10 + $0x10c] sm:$0xf]
    %v4204 = vld [vmem:[#allocation10 + $0x110] sm:$0xf]
    %v4205 = vld [vmem:[#allocation10 + $0x114] sm:$0xf]
    %v4206 = vld [vmem:[#allocation10 + $0x118] sm:$0xf]
    %v4207 = vld [vmem:[#allocation10 + $0x11c] sm:$0xf]
    %v4208 = vld [vmem:[#allocation10 + $0x120] sm:$0xf]
    %v4209 = vld [vmem:[#allocation10 + $0x124] sm:$0xf]
    %v4210 = vld [vmem:[#allocation10 + $0x128] sm:$0xf]
    %v4211 = vld [vmem:[#allocation10 + $0x12c] sm:$0xf]
    %v4212 = vld [vmem:[#allocation10 + $0x130] sm:$0xf]
    %v4213 = vld [vmem:[#allocation10 + $0x134] sm:$0xf]
    %v4214 = vld [vmem:[#allocation10 + $0x138] sm:$0xf]
    %v4215 = vld [vmem:[#allocation10 + $0x13c] sm:$0xf]
    %v4216 = vld [vmem:[#allocation10 + $0x140] sm:$0xf]
    %v4217 = vld [vmem:[#allocation10 + $0x144] sm:$0xf]
    %v4218 = vld [vmem:[#allocation10 + $0x148] sm:$0xf]
    %v4219 = vld [vmem:[#allocation10 + $0x14c] sm:$0xf]
    %v4220 = vld [vmem:[#allocation10 + $0x150] sm:$0xf]
    %v4221 = vld [vmem:[#allocation10 + $0x154] sm:$0xf]
    %v4222 = vld [vmem:[#allocation10 + $0x158] sm:$0xf]
    %v4223 = vld [vmem:[#allocation10 + $0x15c] sm:$0xf]
    %v4224 = vld [vmem:[#allocation10 + $0x160] sm:$0xf]
    %v4225 = vld [vmem:[#allocation10 + $0x164] sm:$0xf]
    %v4226 = vld [vmem:[#allocation10 + $0x168] sm:$0xf]
    %v4227 = vld [vmem:[#allocation10 + $0x16c] sm:$0xf]
    %v4228 = vld [vmem:[#allocation10 + $0x170] sm:$0xf]
    %v4229 = vld [vmem:[#allocation10 + $0x174] sm:$0xf]
    %v4230 = vld [vmem:[#allocation10 + $0x178] sm:$0xf]
    %v4231 = vld [vmem:[#allocation10 + $0x17c] sm:$0xf]
    %v4232 = vld [vmem:[#allocation10 + $0x180] sm:$0xf]
    %v4233 = vld [vmem:[#allocation10 + $0x184] sm:$0xf]
    %v4234 = vld [vmem:[#allocation10 + $0x188] sm:$0xf]
    %v4235 = vld [vmem:[#allocation10 + $0x18c] sm:$0xf]
    %v4236 = vld [vmem:[#allocation10 + $0x190] sm:$0xf]
    %v4237 = vld [vmem:[#allocation10 + $0x194] sm:$0xf]
    %v4238 = vld [vmem:[#allocation10 + $0x198] sm:$0xf]
    %v4239 = vld [vmem:[#allocation10 + $0x19c] sm:$0xf]
    %v4240 = vld [vmem:[#allocation10 + $0x1a0] sm:$0xf]
    %v4241 = vld [vmem:[#allocation10 + $0x1a4] sm:$0xf]
    %v4242 = vld [vmem:[#allocation10 + $0x1a8] sm:$0xf]
    %v4243 = vld [vmem:[#allocation10 + $0x1ac] sm:$0xf]
    %v4244 = vld [vmem:[#allocation10 + $0x1b0] sm:$0xf]
    %v4245 = vld [vmem:[#allocation10 + $0x1b4] sm:$0xf]
    %v4246 = vld [vmem:[#allocation10 + $0x1b8] sm:$0xf]
    %v4247 = vld [vmem:[#allocation10 + $0x1bc] sm:$0xf]
    %v4248 = vld [vmem:[#allocation10 + $0x1c0] sm:$0xf]
    %v4249 = vld [vmem:[#allocation10 + $0x1c4] sm:$0xf]
    %v4250 = vld [vmem:[#allocation10 + $0x1c8] sm:$0xf]
    %v4251 = vld [vmem:[#allocation10 + $0x1cc] sm:$0xf]
    %v4252 = vld [vmem:[#allocation10 + $0x1d0] sm:$0xf]
    %v4253 = vld [vmem:[#allocation10 + $0x1d4] sm:$0xf]
    %v4254 = vld [vmem:[#allocation10 + $0x1d8] sm:$0xf]
    %v4255 = vld [vmem:[#allocation10 + $0x1dc] sm:$0xf]
    %v4256 = vld [vmem:[#allocation10 + $0x1e0] sm:$0xf]
    %v4257 = vld [vmem:[#allocation10 + $0x1e4] sm:$0xf]
    %v4258 = vld [vmem:[#allocation10 + $0x1e8] sm:$0xf]
    %v4259 = vld [vmem:[#allocation10 + $0x1ec] sm:$0xf]
    %v4260 = vld [vmem:[#allocation10 + $0x1f0] sm:$0xf]
    %v4261 = vld [vmem:[#allocation10 + $0x1f4] sm:$0xf]
    %v4262 = vld [vmem:[#allocation10 + $0x1f8] sm:$0xf]
    %v4263 = vld [vmem:[#allocation10 + $0x1fc] sm:$0xf]
    %v4264 = vld [vmem:[#allocation11] sm:$0x1]
    %v4266 = vlaneseq
    %v4267 = vshrl.u32 %v4266, 7
    %v4268 = vsub.s32 0, %v4267
    %v4269 = vrot.slane %v4264, %v4268
    %v4399 = vunpack.c.l.b16 %v4136
    %v4400 = vunpack.c.l.b16 %v4137
    %v4401 = vunpack.c.l.b16 %v4138
    %v4402 = vunpack.c.l.b16 %v4139
    %v4403 = vunpack.c.l.b16 %v4140
    %v4404 = vunpack.c.l.b16 %v4141
    %v4405 = vunpack.c.l.b16 %v4142
    %v4406 = vunpack.c.l.b16 %v4143
    %v4407 = vunpack.c.l.b16 %v4144
    %v4408 = vunpack.c.l.b16 %v4145
    %v4409 = vunpack.c.l.b16 %v4146
    %v4410 = vunpack.c.l.b16 %v4147
    %v4411 = vunpack.c.l.b16 %v4148
    %v4412 = vunpack.c.l.b16 %v4149
    %v4413 = vunpack.c.l.b16 %v4150
    %v4414 = vunpack.c.l.b16 %v4151
    %v4415 = vunpack.c.l.b16 %v4152
    %v4416 = vunpack.c.l.b16 %v4153
    %v4417 = vunpack.c.l.b16 %v4154
    %v4418 = vunpack.c.l.b16 %v4155
    %v4419 = vunpack.c.l.b16 %v4156
    %v4420 = vunpack.c.l.b16 %v4157
    %v4421 = vunpack.c.l.b16 %v4158
    %v4422 = vunpack.c.l.b16 %v4159
    %v4423 = vunpack.c.l.b16 %v4160
    %v4424 = vunpack.c.l.b16 %v4161
    %v4425 = vunpack.c.l.b16 %v4162
    %v4426 = vunpack.c.l.b16 %v4163
    %v4427 = vunpack.c.l.b16 %v4164
    %v4428 = vunpack.c.l.b16 %v4165
    %v4429 = vunpack.c.l.b16 %v4166
    %v4430 = vunpack.c.l.b16 %v4167
    %v4431 = vunpack.c.l.b16 %v4168
    %v4432 = vunpack.c.l.b16 %v4169
    %v4433 = vunpack.c.l.b16 %v4170
    %v4434 = vunpack.c.l.b16 %v4171
    %v4435 = vunpack.c.l.b16 %v4172
    %v4436 = vunpack.c.l.b16 %v4173
    %v4437 = vunpack.c.l.b16 %v4174
    %v4438 = vunpack.c.l.b16 %v4175
    %v4439 = vunpack.c.l.b16 %v4176
    %v4440 = vunpack.c.l.b16 %v4177
    %v4441 = vunpack.c.l.b16 %v4178
    %v4442 = vunpack.c.l.b16 %v4179
    %v4443 = vunpack.c.l.b16 %v4180
    %v4444 = vunpack.c.l.b16 %v4181
    %v4445 = vunpack.c.l.b16 %v4182
    %v4446 = vunpack.c.l.b16 %v4183
    %v4447 = vunpack.c.l.b16 %v4184
    %v4448 = vunpack.c.l.b16 %v4185
    %v4449 = vunpack.c.l.b16 %v4186
    %v4450 = vunpack.c.l.b16 %v4187
    %v4451 = vunpack.c.l.b16 %v4188
    %v4452 = vunpack.c.l.b16 %v4189
    %v4453 = vunpack.c.l.b16 %v4190
    %v4454 = vunpack.c.l.b16 %v4191
    %v4455 = vunpack.c.l.b16 %v4192
    %v4456 = vunpack.c.l.b16 %v4193
    %v4457 = vunpack.c.l.b16 %v4194
    %v4458 = vunpack.c.l.b16 %v4195
    %v4459 = vunpack.c.l.b16 %v4196
    %v4460 = vunpack.c.l.b16 %v4197
    %v4461 = vunpack.c.l.b16 %v4198
    %v4462 = vunpack.c.l.b16 %v4199
    %v4463 = vunpack.c.l.b16 %v4200
    %v4464 = vunpack.c.l.b16 %v4201
    %v4465 = vunpack.c.l.b16 %v4202
    %v4466 = vunpack.c.l.b16 %v4203
    %v4467 = vunpack.c.l.b16 %v4204
    %v4468 = vunpack.c.l.b16 %v4205
    %v4469 = vunpack.c.l.b16 %v4206
    %v4470 = vunpack.c.l.b16 %v4207
    %v4471 = vunpack.c.l.b16 %v4208
    %v4472 = vunpack.c.l.b16 %v4209
    %v4473 = vunpack.c.l.b16 %v4210
    %v4474 = vunpack.c.l.b16 %v4211
    %v4475 = vunpack.c.l.b16 %v4212
    %v4476 = vunpack.c.l.b16 %v4213
    %v4477 = vunpack.c.l.b16 %v4214
    %v4478 = vunpack.c.l.b16 %v4215
    %v4479 = vunpack.c.l.b16 %v4216
    %v4480 = vunpack.c.l.b16 %v4217
    %v4481 = vunpack.c.l.b16 %v4218
    %v4482 = vunpack.c.l.b16 %v4219
    %v4483 = vunpack.c.l.b16 %v4220
    %v4484 = vunpack.c.l.b16 %v4221
    %v4485 = vunpack.c.l.b16 %v4222
    %v4486 = vunpack.c.l.b16 %v4223
    %v4487 = vunpack.c.l.b16 %v4224
    %v4488 = vunpack.c.l.b16 %v4225
    %v4489 = vunpack.c.l.b16 %v4226
    %v4490 = vunpack.c.l.b16 %v4227
    %v4491 = vunpack.c.l.b16 %v4228
    %v4492 = vunpack.c.l.b16 %v4229
    %v4493 = vunpack.c.l.b16 %v4230
    %v4494 = vunpack.c.l.b16 %v4231
    %v4495 = vunpack.c.l.b16 %v4232
    %v4496 = vunpack.c.l.b16 %v4233
    %v4497 = vunpack.c.l.b16 %v4234
    %v4498 = vunpack.c.l.b16 %v4235
    %v4499 = vunpack.c.l.b16 %v4236
    %v4500 = vunpack.c.l.b16 %v4237
    %v4501 = vunpack.c.l.b16 %v4238
    %v4502 = vunpack.c.l.b16 %v4239
    %v4503 = vunpack.c.l.b16 %v4240
    %v4504 = vunpack.c.l.b16 %v4241
    %v4505 = vunpack.c.l.b16 %v4242
    %v4506 = vunpack.c.l.b16 %v4243
    %v4507 = vunpack.c.l.b16 %v4244
    %v4508 = vunpack.c.l.b16 %v4245
    %v4509 = vunpack.c.l.b16 %v4246
    %v4510 = vunpack.c.l.b16 %v4247
    %v4511 = vunpack.c.l.b16 %v4248
    %v4512 = vunpack.c.l.b16 %v4249
    %v4513 = vunpack.c.l.b16 %v4250
    %v4514 = vunpack.c.l.b16 %v4251
    %v4515 = vunpack.c.l.b16 %v4252
    %v4516 = vunpack.c.l.b16 %v4253
    %v4517 = vunpack.c.l.b16 %v4254
    %v4518 = vunpack.c.l.b16 %v4255
    %v4519 = vunpack.c.l.b16 %v4256
    %v4520 = vunpack.c.l.b16 %v4257
    %v4521 = vunpack.c.l.b16 %v4258
    %v4522 = vunpack.c.l.b16 %v4259
    %v4523 = vunpack.c.l.b16 %v4260
    %v4524 = vunpack.c.l.b16 %v4261
    %v4525 = vunpack.c.l.b16 %v4262
    %v4526 = vunpack.c.l.b16 %v4263
    %v4527 = vpack.c.b16 %v4400, %v4399
    %v4528 = vpack.c.b16 %v4402, %v4401
    %v4529 = vpack.c.b16 %v4404, %v4403
    %v4530 = vpack.c.b16 %v4406, %v4405
    %v4531 = vpack.c.b16 %v4408, %v4407
    %v4532 = vpack.c.b16 %v4410, %v4409
    %v4533 = vpack.c.b16 %v4412, %v4411
    %v4534 = vpack.c.b16 %v4414, %v4413
    %v4535 = vpack.c.b16 %v4416, %v4415
    %v4536 = vpack.c.b16 %v4418, %v4417
    %v4537 = vpack.c.b16 %v4420, %v4419
    %v4538 = vpack.c.b16 %v4422, %v4421
    %v4539 = vpack.c.b16 %v4424, %v4423
    %v4540 = vpack.c.b16 %v4426, %v4425
    %v4541 = vpack.c.b16 %v4428, %v4427
    %v4542 = vpack.c.b16 %v4430, %v4429
    %v4543 = vpack.c.b16 %v4432, %v4431
    %v4544 = vpack.c.b16 %v4434, %v4433
    %v4545 = vpack.c.b16 %v4436, %v4435
    %v4546 = vpack.c.b16 %v4438, %v4437
    %v4547 = vpack.c.b16 %v4440, %v4439
    %v4548 = vpack.c.b16 %v4442, %v4441
    %v4549 = vpack.c.b16 %v4444, %v4443
    %v4550 = vpack.c.b16 %v4446, %v4445
    %v4551 = vpack.c.b16 %v4448, %v4447
    %v4552 = vpack.c.b16 %v4450, %v4449
    %v4553 = vpack.c.b16 %v4452, %v4451
    %v4554 = vpack.c.b16 %v4454, %v4453
    %v4555 = vpack.c.b16 %v4456, %v4455
    %v4556 = vpack.c.b16 %v4458, %v4457
    %v4557 = vpack.c.b16 %v4460, %v4459
    %v4558 = vpack.c.b16 %v4462, %v4461
    %v4559 = vpack.c.b16 %v4464, %v4463
    %v4560 = vpack.c.b16 %v4466, %v4465
    %v4561 = vpack.c.b16 %v4468, %v4467
    %v4562 = vpack.c.b16 %v4470, %v4469
    %v4563 = vpack.c.b16 %v4472, %v4471
    %v4564 = vpack.c.b16 %v4474, %v4473
    %v4565 = vpack.c.b16 %v4476, %v4475
    %v4566 = vpack.c.b16 %v4478, %v4477
    %v4567 = vpack.c.b16 %v4480, %v4479
    %v4568 = vpack.c.b16 %v4482, %v4481
    %v4569 = vpack.c.b16 %v4484, %v4483
    %v4570 = vpack.c.b16 %v4486, %v4485
    %v4571 = vpack.c.b16 %v4488, %v4487
    %v4572 = vpack.c.b16 %v4490, %v4489
    %v4573 = vpack.c.b16 %v4492, %v4491
    %v4574 = vpack.c.b16 %v4494, %v4493
    %v4575 = vpack.c.b16 %v4496, %v4495
    %v4576 = vpack.c.b16 %v4498, %v4497
    %v4577 = vpack.c.b16 %v4500, %v4499
    %v4578 = vpack.c.b16 %v4502, %v4501
    %v4579 = vpack.c.b16 %v4504, %v4503
    %v4580 = vpack.c.b16 %v4506, %v4505
    %v4581 = vpack.c.b16 %v4508, %v4507
    %v4582 = vpack.c.b16 %v4510, %v4509
    %v4583 = vpack.c.b16 %v4512, %v4511
    %v4584 = vpack.c.b16 %v4514, %v4513
    %v4585 = vpack.c.b16 %v4516, %v4515
    %v4586 = vpack.c.b16 %v4518, %v4517
    %v4587 = vpack.c.b16 %v4520, %v4519
    %v4588 = vpack.c.b16 %v4522, %v4521
    %v4589 = vpack.c.b16 %v4524, %v4523
    %v4590 = vpack.c.b16 %v4526, %v4525
    %4655 = vmatprep.subr.bf16.mxu0 0
    %4656 = vmatpush1.bf16.msra.mxu0 %v4527
    %4657 = vmatprep.subr.bf16.mxu0 0
    %4658 = vmatpush1.bf16.msra.mxu0 %v4528
    %4659 = vmatprep.subr.bf16.mxu0 0
    %4660 = vmatpush1.bf16.msra.mxu0 %v4529
    %4661 = vmatprep.subr.bf16.mxu0 0
    %4662 = vmatpush1.bf16.msra.mxu0 %v4530
    %4663 = vmatprep.subr.bf16.mxu0 0
    %4664 = vmatpush1.bf16.msra.mxu0 %v4531
    %4665 = vmatprep.subr.bf16.mxu0 0
    %4666 = vmatpush1.bf16.msra.mxu0 %v4532
    %4667 = vmatprep.subr.bf16.mxu0 0
    %4668 = vmatpush1.bf16.msra.mxu0 %v4533
    %4669 = vmatprep.subr.bf16.mxu0 0
    %4670 = vmatpush1.bf16.msra.mxu0 %v4534
    %4671 = vmatprep.subr.bf16.mxu0 0
    %4672 = vmatpush1.bf16.msra.mxu0 %v4535
    %4673 = vmatprep.subr.bf16.mxu0 0
    %4674 = vmatpush1.bf16.msra.mxu0 %v4536
    %4675 = vmatprep.subr.bf16.mxu0 0
    %4676 = vmatpush1.bf16.msra.mxu0 %v4537
    %4677 = vmatprep.subr.bf16.mxu0 0
    %4678 = vmatpush1.bf16.msra.mxu0 %v4538
    %4679 = vmatprep.subr.bf16.mxu0 0
    %4680 = vmatpush1.bf16.msra.mxu0 %v4539
    %4681 = vmatprep.subr.bf16.mxu0 0
    %4682 = vmatpush1.bf16.msra.mxu0 %v4540
    %4683 = vmatprep.subr.bf16.mxu0 0
    %4684 = vmatpush1.bf16.msra.mxu0 %v4541
    %4685 = vmatprep.subr.bf16.mxu0 0
    %4686 = vmatpush1.bf16.msra.mxu0 %v4542
    %4687 = vmatprep.mubr.bf16.mxu0 %v4129
    %4688 = vmatmul.mubr.bf16.gmra.mrb[0].mxu0 %v4128
    %v4689 = vpop.f32.mrb[0].mxu0
    %v4690 = vadd.f32 %v4269, %v4689
    %v4691 = vpop.f32.mrb[0].mxu0
    %v4692 = vpop.f32.mrb[0].mxu0
    %v4693 = vpop.f32.mrb[0].mxu0
    %4694 = vdwg.mxu0
    %4695 = vmatprep.subr.bf16.mxu0 0
    %4696 = vmatpush1.bf16.msra.mxu0 %v4543
    %4697 = vmatprep.subr.bf16.mxu0 0
    %4698 = vmatpush1.bf16.msra.mxu0 %v4544
    %4699 = vmatprep.subr.bf16.mxu0 0
    %4700 = vmatpush1.bf16.msra.mxu0 %v4545
    %4701 = vmatprep.subr.bf16.mxu0 0
    %4702 = vmatpush1.bf16.msra.mxu0 %v4546
    %4703 = vmatprep.subr.bf16.mxu0 0
    %4704 = vmatpush1.bf16.msra.mxu0 %v4547
    %4705 = vmatprep.subr.bf16.mxu0 0
    %4706 = vmatpush1.bf16.msra.mxu0 %v4548
    %4707 = vmatprep.subr.bf16.mxu0 0
    %4708 = vmatpush1.bf16.msra.mxu0 %v4549
    %4709 = vmatprep.subr.bf16.mxu0 0
    %4710 = vmatpush1.bf16.msra.mxu0 %v4550
    %4711 = vmatprep.subr.bf16.mxu0 0
    %4712 = vmatpush1.bf16.msra.mxu0 %v4551
    %4713 = vmatprep.subr.bf16.mxu0 0
    %4714 = vmatpush1.bf16.msra.mxu0 %v4552
    %4715 = vmatprep.subr.bf16.mxu0 0
    %4716 = vmatpush1.bf16.msra.mxu0 %v4553
    %4717 = vmatprep.subr.bf16.mxu0 0
    %4718 = vmatpush1.bf16.msra.mxu0 %v4554
    %4719 = vmatprep.subr.bf16.mxu0 0
    %4720 = vmatpush1.bf16.msra.mxu0 %v4555
    %4721 = vmatprep.subr.bf16.mxu0 0
    %4722 = vmatpush1.bf16.msra.mxu0 %v4556
    %4723 = vmatprep.subr.bf16.mxu0 0
    %4724 = vmatpush1.bf16.msra.mxu0 %v4557
    %4725 = vmatprep.subr.bf16.mxu0 0
    %4726 = vmatpush1.bf16.msra.mxu0 %v4558
    %4727 = vmatprep.mubr.bf16.mxu0 %v4131
    %4728 = vmatmul.mubr.bf16.gmra.mrb[0].mxu0 %v4130
    %v4729 = vpop.f32.mrb[0].mxu0
    %v4730 = vadd.f32 %v4690, %v4729
    %v4731 = vpop.f32.mrb[0].mxu0
    %v4732 = vpop.f32.mrb[0].mxu0
    %v4733 = vpop.f32.mrb[0].mxu0
    %4734 = vdwg.mxu0
    %4735 = vmatprep.subr.bf16.mxu0 0
    %4736 = vmatpush1.bf16.msra.mxu0 %v4559
    %4737 = vmatprep.subr.bf16.mxu0 0
    %4738 = vmatpush1.bf16.msra.mxu0 %v4560
    %4739 = vmatprep.subr.bf16.mxu0 0
    %4740 = vmatpush1.bf16.msra.mxu0 %v4561
    %4741 = vmatprep.subr.bf16.mxu0 0
    %4742 = vmatpush1.bf16.msra.mxu0 %v4562
    %4743 = vmatprep.subr.bf16.mxu0 0
    %4744 = vmatpush1.bf16.msra.mxu0 %v4563
    %4745 = vmatprep.subr.bf16.mxu0 0
    %4746 = vmatpush1.bf16.msra.mxu0 %v4564
    %4747 = vmatprep.subr.bf16.mxu0 0
    %4748 = vmatpush1.bf16.msra.mxu0 %v4565
    %4749 = vmatprep.subr.bf16.mxu0 0
    %4750 = vmatpush1.bf16.msra.mxu0 %v4566
    %4751 = vmatprep.subr.bf16.mxu0 0
    %4752 = vmatpush1.bf16.msra.mxu0 %v4567
    %4753 = vmatprep.subr.bf16.mxu0 0
    %4754 = vmatpush1.bf16.msra.mxu0 %v4568
    %4755 = vmatprep.subr.bf16.mxu0 0
    %4756 = vmatpush1.bf16.msra.mxu0 %v4569
    %4757 = vmatprep.subr.bf16.mxu0 0
    %4758 = vmatpush1.bf16.msra.mxu0 %v4570
    %4759 = vmatprep.subr.bf16.mxu0 0
    %4760 = vmatpush1.bf16.msra.mxu0 %v4571
    %4761 = vmatprep.subr.bf16.mxu0 0
    %4762 = vmatpush1.bf16.msra.mxu0 %v4572
    %4763 = vmatprep.subr.bf16.mxu0 0
    %4764 = vmatpush1.bf16.msra.mxu0 %v4573
    %4765 = vmatprep.subr.bf16.mxu0 0
    %4766 = vmatpush1.bf16.msra.mxu0 %v4574
    %4767 = vmatprep.mubr.bf16.mxu0 %v4133
    %4768 = vmatmul.mubr.bf16.gmra.mrb[0].mxu0 %v4132
    %v4769 = vpop.f32.mrb[0].mxu0
    %v4770 = vadd.f32 %v4730, %v4769
    %v4771 = vpop.f32.mrb[0].mxu0
    %v4772 = vpop.f32.mrb[0].mxu0
    %v4773 = vpop.f32.mrb[0].mxu0
    %4774 = vdwg.mxu0
    %4775 = vmatprep.subr.bf16.mxu0 0
    %4776 = vmatpush1.bf16.msra.mxu0 %v4575
    %4777 = vmatprep.subr.bf16.mxu0 0
    %4778 = vmatpush1.bf16.msra.mxu0 %v4576
    %4779 = vmatprep.subr.bf16.mxu0 0
    %4780 = vmatpush1.bf16.msra.mxu0 %v4577
    %4781 = vmatprep.subr.bf16.mxu0 0
    %4782 = vmatpush1.bf16.msra.mxu0 %v4578
    %4783 = vmatprep.subr.bf16.mxu0 0
    %4784 = vmatpush1.bf16.msra.mxu0 %v4579
    %4785 = vmatprep.subr.bf16.mxu0 0
    %4786 = vmatpush1.bf16.msra.mxu0 %v4580
    %4787 = vmatprep.subr.bf16.mxu0 0
    %4788 = vmatpush1.bf16.msra.mxu0 %v4581
    %4789 = vmatprep.subr.bf16.mxu0 0
    %4790 = vmatpush1.bf16.msra.mxu0 %v4582
    %4791 = vmatprep.subr.bf16.mxu0 0
    %4792 = vmatpush1.bf16.msra.mxu0 %v4583
    %4793 = vmatprep.subr.bf16.mxu0 0
    %4794 = vmatpush1.bf16.msra.mxu0 %v4584
    %4795 = vmatprep.subr.bf16.mxu0 0
    %4796 = vmatpush1.bf16.msra.mxu0 %v4585
    %4797 = vmatprep.subr.bf16.mxu0 0
    %4798 = vmatpush1.bf16.msra.mxu0 %v4586
    %4799 = vmatprep.subr.bf16.mxu0 0
    %4800 = vmatpush1.bf16.msra.mxu0 %v4587
    %4801 = vmatprep.subr.bf16.mxu0 0
    %4802 = vmatpush1.bf16.msra.mxu0 %v4588
    %4803 = vmatprep.subr.bf16.mxu0 0
    %4804 = vmatpush1.bf16.msra.mxu0 %v4589
    %4805 = vmatprep.subr.bf16.mxu0 0
    %4806 = vmatpush1.bf16.msra.mxu0 %v4590
    %4807 = vmatprep.mubr.bf16.mxu0 %v4135
    %4808 = vmatmul.mubr.bf16.gmra.mrb[0].mxu0 %v4134
    %v4809 = vpop.f32.mrb[0].mxu0
    %v4810 = vadd.f32 %v4770, %v4809
    %v4811 = vpop.f32.mrb[0].mxu0
    %v4812 = vpop.f32.mrb[0].mxu0
    %v4813 = vpop.f32.mrb[0].mxu0
    %4814 = vdwg.mxu0
    %v4815 = vsub.f32 0.0, %v4810
    %v4816 = vmul.f32 %v4815, 1.442695
    %v4817 = vpow.pop %v4816
    %v4818 = vadd.f32 %v4817, 1.0
    %v4819 = vrcp.pop %v4818
    %v4820 = vpack.c.bf16 %v4819, %v4819
    %4821 = vst [vmem:[#allocation13] sm:$0xf] %v4820
    // Predicated region
    $region54: #{tpu_custom_call.1} parent=1 // pred_check
      _
    $region55: #{tpu_custom_call.1} parent=1 // pred_check_branch
      %4823 = sbr.rel (0) target = $region57
    $region56: #{tpu_custom_call.1} parent=1 // pred_region
      %s4825 = ssub.s32 64, 64
      %4826 = vsyncadd [#allocation4], %s4825
      %s4828 = sshll.u32 [#allocation13], 4
      %s4829 = int_to_ptr.vmem [resolvable:$true] %s4828
      %4831 = dma.vmem_to_hbm [thread:$0]  %s4829, 64, %s7, [#allocation4]
    $region57: #{tpu_custom_call.1} parent=1 // pred_fallthru
      _
    // Predicated region
    $region58: #{tpu_custom_call.1} parent=1 // pred_check
      _
    $region59: #{tpu_custom_call.1} parent=1 // pred_check_branch
      %4833 = sbr.rel (0) target = $region61
    $region60: #{tpu_custom_call.1} parent=1 // pred_region
      %4834 = dma.done [#allocation4], 64
    $region61: #{tpu_custom_call.1} parent=1 // pred_fallthru
      _
    %4835 = vsyncpa [#allocation3], 1
    %4836 = vsyncpa [#allocation6], 1
    %4837 = vsyncpa [#allocation9], 1
    %4838 = vsyncpa [#allocation12], 1
    %4839 = vsyncpa [#allocation4], 1

</llo_original>
